<compile_context>
chip_gen: v6e
topology: v6e:2x2x1
jax: 0.10.0
libtpu: 0.0.40
codegen_flags: <defaults>
</compile_context>

<pallas_src>
import numpy as np
import jax
import jax.numpy as jnp
from jax.experimental import pallas as pl
from jax.experimental.pallas import tpu as pltpu

LANES = 128  # lane-dense channel padding


def round_up(a, m):
    return ((a + m - 1) // m) * m


def make_chunks(m_out, max_rows=128):
    """Split an M dimension into <=max_rows chunks (multiples of 8)."""
    n_ch = max(1, -(-m_out // max_rows))
    size = round_up(-(-m_out // n_ch), 8)
    chunks, lo = [], 0
    while lo < m_out:
        sz = min(size, m_out - lo)
        chunks.append((lo, sz))
        lo += sz
    return chunks


# ----------------------------------------------------------------------------
# Fused kernel factory
# ----------------------------------------------------------------------------
def _make_fused_kernel(plan):
    conv = plan["conv"]
    nb = len(conv)
    mid = plan["mid_channels"]
    n_dense = plan["n_dense"]
    out_rows = plan["out_rows"]

    def kernel(*refs):
        pos = 0
        x_ref = refs[pos]; pos += 1
        cw = refs[pos:pos + 2 * nb]; pos += 2 * nb
        p_ref = refs[pos]; pos += 1
        w1f_ref = refs[pos]; pos += 1
        b1_ref = refs[pos]; pos += 1
        dw = refs[pos:pos + 2 * (n_dense - 1)]; pos += 2 * (n_dense - 1)
        out_ref = refs[pos]; pos += 1
        scratches = refs[pos:]

        def conv_rows(load_fn, w_ref, b_ref, blk, lo, size):
            """Tap-packed implicit-GEMM conv (+bias+ReLU) for `size` rows."""
            cin = blk["cin"]
            packed = None
            for t, (ti, tj) in enumerate(blk["taps"]):
                d = ti * blk["row_stride"] + tj
                patch = load_fn(lo + d, size)           # (size, 128)
                if t:
                    # lanes >= cin are exactly zero, so rolling packs tap t
                    # into its own lane band of the K dimension.
                    patch = pltpu.roll(patch, shift=t * cin, axis=1)
                packed = patch if packed is None else packed + patch
            acc = jnp.dot(packed, w_ref[...], preferred_element_type=jnp.float32)
            return jnp.maximum(acc + b_ref[...], 0.0)

        # -------- conv stack: intermediates stay in VMEM scratch --------
        load = lambda lo, size: x_ref[0, lo:lo + size, :]
        pooled = None
        for b in range(nb):
            blk = conv[b]
            w_ref, b_ref = cw[2 * b], cw[2 * b + 1]
            if b < nb - 1:
                dst = scratches[b]
                for lo, size in blk["chunks"]:
                    dst[lo:lo + size, :] = conv_rows(load, w_ref, b_ref, blk, lo, size)
                if blk["s_out"] > blk["m_out"]:          # zero halo rows
                    dst[blk["m_out"]:blk["s_out"], :] = jnp.zeros(
                        (blk["s_out"] - blk["m_out"], LANES), jnp.float32)
                load = (lambda ref: lambda lo, size: ref[lo:lo + size, :])(dst)
            else:
                acc = conv_rows(load, w_ref, b_ref, blk, 0, blk["m_out"])
                # fused adaptive avg-pool: (pr, m_out) @ (m_out, 128)
                pooled = jnp.dot(p_ref[...], acc,
                                 preferred_element_type=jnp.float32)

        # -------- dense head (fused) --------
        # dense-1 folded over pooled features: per-channel broadcast + reduce.
        accm = pooled[:, 0:1] * w1f_ref[0]
        for c in range(1, mid):
            accm = accm + pooled[:, c:c + 1] * w1f_ref[c]
        h = jnp.sum(accm, axis=0, keepdims=True) + b1_ref[...]   # (1, U)
        if n_dense > 1:
            h = jnp.maximum(h, 0.0)
        h = jnp.broadcast_to(h, (out_rows, h.shape[-1]))          # (8, U)
        for k in range(n_dense - 1):
            wd, bd = dw[2 * k], dw[2 * k + 1]
            h = jnp.dot(h, wd[...], preferred_element_type=jnp.float32) + bd[...]
            if k < n_dense - 2:
                h = jnp.maximum(h, 0.0)
        out_ref[0, :, :] = h

    return kernel


# ----------------------------------------------------------------------------
# pallas_call wrapper
# ----------------------------------------------------------------------------
def fused_forward_call(x, kp):
    n = x.shape[0]
    kernel = _make_fused_kernel(kp["plan"])

    in_specs = [pl.BlockSpec((1, kp["s_in0"], LANES), lambda i: (i, 0, 0))]
    args = [x]
    for wc, bc in zip(kp["conv_ws"], kp["conv_bs"]):
        in_specs.append(pl.BlockSpec(wc.shape, lambda i: (0, 0)))
        in_specs.append(pl.BlockSpec(bc.shape, lambda i: (0, 0)))
        args += [wc, bc]
    in_specs.append(pl.BlockSpec(kp["P"].shape, lambda i: (0, 0)))
    args.append(kp["P"])
    in_specs.append(pl.BlockSpec(kp["w1f"].shape, lambda i: (0, 0, 0)))
    args.append(kp["w1f"])
    in_specs.append(pl.BlockSpec(kp["b1"].shape, lambda i: (0, 0)))
    args.append(kp["b1"])
    for wd, bd in zip(kp["dense_ws"], kp["dense_bs"]):
        in_specs.append(pl.BlockSpec(wd.shape, lambda i: (0, 0)))
        in_specs.append(pl.BlockSpec(bd.shape, lambda i: (0, 0)))
        args += [wd, bd]

    out_rows = kp["plan"]["out_rows"]
    out_dim = kp["out_dim_p"]
    scratch_shapes = [pltpu.VMEM((s, LANES), jnp.float32)
                      for s in kp["scratch_rows"]]

    return pl.pallas_call(
        kernel,
        out_shape=jax.ShapeDtypeStruct((n, out_rows, out_dim), jnp.float32),
        grid=(n,),
        in_specs=in_specs,
        out_specs=pl.BlockSpec((1, out_rows, out_dim), lambda i: (i, 0, 0)),
        scratch_shapes=scratch_shapes,
        compiler_params=pltpu.CompilerParams(
            dimension_semantics=("parallel",)),
    )(*args)


# ----------------------------------------------------------------------------
# Forward pass
# ----------------------------------------------------------------------------
def forward(x_nchw, kp):
    n, cin, h, w = x_nchw.shape
    # One-time, tiny: NCHW -> (N, H*W, Cin), pad spatial halo + channels to 128.
    x = jnp.transpose(x_nchw, (0, 2, 3, 1)).reshape(n, h * w, cin)
    x = jnp.pad(x, ((0, 0), (0, kp["s_in0"] - h * w), (0, LANES - cin)))
    out = fused_forward_call(x, kp)           # (N, 8, out_dim_p)
    return out[:, 0, :kp["latent"]]


# ----------------------------------------------------------------------------
# Parameter construction
# ----------------------------------------------------------------------------
def init_raw_params(key, in_channels, *, num_blocks, mid_channels, ksize,
                    pool_out, dense_units, num_hidden_dense, latent):
    params = {"conv": [], "dense": []}
    cin = in_channels
    for _ in range(num_blocks):
        key, kw_, kb_ = jax.random.split(key, 3)
        fan_in = ksize * ksize * cin
        w = jax.random.normal(kw_, (ksize, ksize, cin, mid_channels),
                              jnp.float32) / np.sqrt(fan_in)
        b = jax.random.normal(kb_, (mid_channels,), jnp.float32) * 0.01
        params["conv"].append((w, b))
        cin = mid_channels
    dims = [mid_channels * pool_out * pool_out] + \
           [dense_units] * num_hidden_dense + [latent]
    for din, dout in zip(dims[:-1], dims[1:]):
        key, kw_, kb_ = jax.random.split(key, 3)
        w = jax.random.normal(kw_, (din, dout), jnp.float32) / np.sqrt(din)
        b = jax.random.normal(kb_, (dout,), jnp.float32) * 0.01
        params["dense"].append((w, b))
    return params


def _pool_bins(n, out):
    # Same binning as torch AdaptiveAvgPool2d.
    return [((i * n) // out, -((-(i + 1) * n) // out)) for i in range(out)]


def build_pool_matrix(ho, wo, row_stride, pool_out, pr, m_out):
    """(pr, m_out) matrix mapping the flat conv output to pooling bins."""
    P = np.zeros((pr, m_out), np.float32)
    bh = _pool_bins(ho, pool_out)
    bw = _pool_bins(wo, pool_out)
    for oh, (hs, he) in enumerate(bh):
        for ow, (cs, ce) in enumerate(bw):
            q = oh * pool_out + ow
            inv = 1.0 / ((he - hs) * (ce - cs))
            for r in range(hs, he):
                P[q, r * row_stride + cs:r * row_stride + ce] = inv
    return P


def _pack_conv_weight(wnp, cin, cout, taps):
    """Tap-packed GEMM weight (128,128), robust to the roll sign convention.

    Tap t content lands at lanes [t*cin, (t+1)*cin) for a jnp.roll-style shift,
    or [(128 - t*cin) % 128, ...) for the opposite convention.  Lanes outside
    the used bands of the packed activations are exactly zero, so both bands
    are populated whenever they do not collide across different taps.
    """
    wp = np.zeros((LANES, LANES), np.float32)
    owner, ok_dual = {}, True
    for t in range(len(taps)):
        fwd = range(t * cin, (t + 1) * cin)
        bstart = (LANES - t * cin) % LANES
        bwd = range(bstart, bstart + cin)
        for r in list(fwd) + list(bwd):
            if r in owner and owner[r] != t:
                ok_dual = False
            owner[r] = t
    for t, (i, j) in enumerate(taps):
        wp[t * cin:(t + 1) * cin, :cout] = wnp[i, j]
    if ok_dual:
        for t, (i, j) in enumerate(taps):
            bstart = (LANES - t * cin) % LANES
            wp[bstart:bstart + cin, :cout] = wnp[i, j]
    return wp


def build_kernel_params(raw, in_channels, H, W, *, num_blocks, mid_channels,
                        ksize, pool_out, dense_units, num_hidden_dense, latent):
    assert num_blocks >= 1, "num_blocks == 0 path not implemented"
    kh = kw = ksize
    pool2 = pool_out * pool_out
    pr = round_up(pool2, 8)
    taps = tuple((i, j) for i in range(kh) for j in range(kw))
    d_max = (kh - 1) * W + (kw - 1)

    # --- geometry ---
    geoms = []
    h_k, w_k = H, W
    for (wc, _) in raw["conv"]:
        cin, cout = int(wc.shape[2]), int(wc.shape[3])
        assert kh * kw * cin <= LANES, "tap packing needs kh*kw*cin <= 128"
        assert cout <= LANES
        ho, wo = h_k - kh + 1, w_k - kw + 1
        assert ho > 0 and wo > 0
        geoms.append(dict(cin=cin, cout=cout, ho=ho, wo=wo, m_out=ho * W))
        h_k, w_k = ho, wo

    nb = num_blocks
    s_need = [d_max + g["m_out"] for g in geoms]
    s_in0 = round_up(max(H * W, s_need[0]), 8)

    conv_plan, conv_ws, conv_bs = [], [], []
    for b, ((wc, bc), g) in enumerate(zip(raw["conv"], geoms)):
        cin, cout, m_out = g["cin"], g["cout"], g["m_out"]
        conv_ws.append(jnp.asarray(_pack_conv_weight(np.asarray(wc), cin, cout, taps)))
        bp = np.zeros((1, LANES), np.float32)
        bp[0, :cout] = np.asarray(bc)
        conv_bs.append(jnp.asarray(bp))
        blk = dict(cin=cin, m_out=m_out, row_stride=W, taps=taps)
        if b < nb - 1:
            blk["s_out"] = round_up(max(m_out, s_need[b + 1]), 8)
            blk["chunks"] = make_chunks(m_out)
        conv_plan.append(blk)

    last = geoms[-1]
    P = jnp.asarray(build_pool_matrix(last["ho"], last["wo"], W, pool_out,
                                      pr, last["m_out"]))

    # --- dense: fold NCHW flatten + pooling layout into a small W1 tensor ---
    w1, b1 = raw["dense"][0]
    din, dout = int(w1.shape[0]), int(w1.shape[1])
    c_last = last["cout"]
    assert din == c_last * pool2
    u1p = round_up(dout, LANES)
    w1f = np.zeros((c_last, pr, u1p), np.float32)
    w1f[:, :pool2, :dout] = np.asarray(w1).reshape(c_last, pool2, dout)
    b1p = np.zeros((1, u1p), np.float32)
    b1p[0, :dout] = np.asarray(b1)

    dws, dbs = [], []
    prev = u1p
    for (wd, bd) in raw["dense"][1:]:
        di, do = int(wd.shape[0]), int(wd.shape[1])
        dop = round_up(do, LANES)
        wpd = np.zeros((prev, dop), np.float32)
        wpd[:di, :do] = np.asarray(wd)
        bpd = np.zeros((1, dop), np.float32)
        bpd[0, :do] = np.asarray(bd)
        dws.append(jnp.asarray(wpd))
        dbs.append(jnp.asarray(bpd))
        prev = dop

    plan = dict(conv=conv_plan, mid_channels=c_last,
                n_dense=len(raw["dense"]), out_rows=8)
    return dict(plan=plan, s_in0=s_in0, latent=latent, out_dim_p=prev,
                conv_ws=conv_ws, conv_bs=conv_bs, P=P,
                w1f=jnp.asarray(w1f), b1=jnp.asarray(b1p),
                dense_ws=dws, dense_bs=dbs,
                scratch_rows=[blk["s_out"] for blk in conv_plan[:-1]])


# ----------------------------------------------------------------------------
# Pure-JAX reference (for correctness check)
# ----------------------------------------------------------------------------
def ref_adaptive_avgpool_nchw(x, out_size):
    N, C, H, W = x.shape
    rows = []
    for oh in range(out_size):
        hs, he = (oh * H) // out_size, -((-(oh + 1) * H) // out_size)
        cols = []
        for ow in range(out_size):
            ws_, we = (ow * W) // out_size, -((-(ow + 1) * W) // out_size)
            cols.append(jnp.mean(x[:, :, hs:he, ws_:we], axis=(2, 3)))
        rows.append(jnp.stack(cols, axis=-1))
    return jnp.stack(rows, axis=-2)


def reference_forward(x_nchw, raw, pool_out):
    x = x_nchw
    for (w, b) in raw["conv"]:
        w_oihw = jnp.transpose(w, (3, 2, 0, 1))
        x = jax.lax.conv_general_dilated(
            x, w_oihw, (1, 1), "VALID",
            dimension_numbers=("NCHW", "OIHW", "NCHW"),
            precision=jax.lax.Precision.HIGHEST)
        x = jnp.maximum(x + b[None, :, None, None], 0.0)
    x = ref_adaptive_avgpool_nchw(x, pool_out)
    x = x.reshape(x.shape[0], -1)
    nd = len(raw["dense"])
    for k, (w, b) in enumerate(raw["dense"]):
        x = jnp.dot(x, w, precision=jax.lax.Precision.HIGHEST) + b
        if k < nd - 1:
            x = jnp.maximum(x, 0.0)
    return x


# ----------------------------------------------------------------------------
# Driver
# ----------------------------------------------------------------------------
if __name__ == "__main__":
    # Small config consistent with the module (stride=1, no BN, no skip, relu,
    # adaptive_avgpool_size=7, 2 hidden dense layers).
    N, Cin, H, W = 2, 4, 16, 16
    cfg = dict(num_blocks=2, mid_channels=8, ksize=3, pool_out=7,
               dense_units=64, num_hidden_dense=2, latent=16)

    x = jax.random.normal(jax.random.PRNGKey(0), (N, Cin, H, W), jnp.float32)

    raw = init_raw_params(jax.random.PRNGKey(42), Cin, **cfg)
    kp = build_kernel_params(raw, Cin, H, W, **cfg)

    fwd = jax.jit(lambda inp: forward(inp, kp))
    out = jax.block_until_ready(fwd(x))
    assert out.shape == (N, cfg["latent"])

    ref = jax.block_until_ready(reference_forward(x, raw, cfg["pool_out"]))
    np.testing.assert_allclose(np.asarray(out), np.asarray(ref),
                               rtol=1e-2, atol=1e-2)
    print("KERNEL_OK")
</pallas_src>

<mosaic_0001>
module attributes {stable_mosaic.version = 11 : i64} {
  func.func @kernel(%arg0: i32, %arg1: memref<1x264x128xf32, #tpu.memory_space<vmem>>, %arg2: memref<128x128xf32, #tpu.memory_space<vmem>>, %arg3: memref<1x128xf32, #tpu.memory_space<vmem>>, %arg4: memref<128x128xf32, #tpu.memory_space<vmem>>, %arg5: memref<1x128xf32, #tpu.memory_space<vmem>>, %arg6: memref<56x192xf32, #tpu.memory_space<vmem>>, %arg7: memref<8x56x128xf32, #tpu.memory_space<vmem>>, %arg8: memref<1x128xf32, #tpu.memory_space<vmem>>, %arg9: memref<128x128xf32, #tpu.memory_space<vmem>>, %arg10: memref<1x128xf32, #tpu.memory_space<vmem>>, %arg11: memref<128x128xf32, #tpu.memory_space<vmem>>, %arg12: memref<1x128xf32, #tpu.memory_space<vmem>>, %arg13: memref<1x8x128xf32, #tpu.memory_space<vmem>>, %arg14: memref<232x128xf32, #tpu.memory_space<vmem>>) attributes {dimension_semantics = [#tpu.dimension_semantics<parallel>], iteration_bounds = array<i64: 2>, scalar_prefetch = 0 : i64, scratch_operands = 1 : i64, tpu.core_type = #tpu.core_type<tc>, window_params = [{transform_indices = @transform_0, window_bounds = array<i64: 1, 264, 128>}, {pipeline_mode = #tpu.pipeline_mode<synchronous>, transform_indices = @transform_1, window_bounds = array<i64: 128, 128>}, {pipeline_mode = #tpu.pipeline_mode<synchronous>, transform_indices = @transform_2, window_bounds = array<i64: 1, 128>}, {pipeline_mode = #tpu.pipeline_mode<synchronous>, transform_indices = @transform_3, window_bounds = array<i64: 128, 128>}, {pipeline_mode = #tpu.pipeline_mode<synchronous>, transform_indices = @transform_4, window_bounds = array<i64: 1, 128>}, {pipeline_mode = #tpu.pipeline_mode<synchronous>, transform_indices = @transform_5, window_bounds = array<i64: 56, 192>}, {pipeline_mode = #tpu.pipeline_mode<synchronous>, transform_indices = @transform_6, window_bounds = array<i64: 8, 56, 128>}, {pipeline_mode = #tpu.pipeline_mode<synchronous>, transform_indices = @transform_7, window_bounds = array<i64: 1, 128>}, {pipeline_mode = #tpu.pipeline_mode<synchronous>, transform_indices = @transform_8, window_bounds = array<i64: 128, 128>}, {pipeline_mode = #tpu.pipeline_mode<synchronous>, transform_indices = @transform_9, window_bounds = array<i64: 1, 128>}, {pipeline_mode = #tpu.pipeline_mode<synchronous>, transform_indices = @transform_10, window_bounds = array<i64: 128, 128>}, {pipeline_mode = #tpu.pipeline_mode<synchronous>, transform_indices = @transform_11, window_bounds = array<i64: 1, 128>}, {transform_indices = @transform_12, window_bounds = array<i64: 1, 8, 128>}]} {
    %c0 = arith.constant 0 : index
    %c0_0 = arith.constant 0 : index
    %c0_1 = arith.constant 0 : index
    %0 = vector.load %arg1[%c0, %c0_0, %c0_1] : memref<1x264x128xf32, #tpu.memory_space<vmem>>, vector<1x112x128xf32>
    %1 = vector.shape_cast %0 : vector<1x112x128xf32> to vector<112x128xf32>
    %c0_2 = arith.constant 0 : index
    %c1 = arith.constant 1 : index
    %c0_3 = arith.constant 0 : index
    %2 = vector.load %arg1[%c0_2, %c1, %c0_3] : memref<1x264x128xf32, #tpu.memory_space<vmem>>, vector<1x112x128xf32>
    %3 = vector.shape_cast %2 : vector<1x112x128xf32> to vector<112x128xf32>
    %c4_i32 = arith.constant 4 : i32
    %4 = tpu.dynamic_rotate %3 by %c4_i32 dim 1 : vector<112x128xf32>, i32 -> vector<112x128xf32>
    %5 = arith.addf %1, %4 : vector<112x128xf32>
    %c0_4 = arith.constant 0 : index
    %c2 = arith.constant 2 : index
    %c0_5 = arith.constant 0 : index
    %6 = vector.load %arg1[%c0_4, %c2, %c0_5] : memref<1x264x128xf32, #tpu.memory_space<vmem>>, vector<1x112x128xf32>
    %7 = vector.shape_cast %6 : vector<1x112x128xf32> to vector<112x128xf32>
    %c8_i32 = arith.constant 8 : i32
    %8 = tpu.dynamic_rotate %7 by %c8_i32 dim 1 : vector<112x128xf32>, i32 -> vector<112x128xf32>
    %9 = arith.addf %5, %8 : vector<112x128xf32>
    %c0_6 = arith.constant 0 : index
    %c16 = arith.constant 16 : index
    %c0_7 = arith.constant 0 : index
    %10 = vector.load %arg1[%c0_6, %c16, %c0_7] : memref<1x264x128xf32, #tpu.memory_space<vmem>>, vector<1x112x128xf32>
    %11 = vector.shape_cast %10 : vector<1x112x128xf32> to vector<112x128xf32>
    %c12_i32 = arith.constant 12 : i32
    %12 = tpu.dynamic_rotate %11 by %c12_i32 dim 1 : vector<112x128xf32>, i32 -> vector<112x128xf32>
    %13 = arith.addf %9, %12 : vector<112x128xf32>
    %c0_8 = arith.constant 0 : index
    %c17 = arith.constant 17 : index
    %c0_9 = arith.constant 0 : index
    %14 = vector.load %arg1[%c0_8, %c17, %c0_9] : memref<1x264x128xf32, #tpu.memory_space<vmem>>, vector<1x112x128xf32>
    %15 = vector.shape_cast %14 : vector<1x112x128xf32> to vector<112x128xf32>
    %c16_i32 = arith.constant 16 : i32
    %16 = tpu.dynamic_rotate %15 by %c16_i32 dim 1 : vector<112x128xf32>, i32 -> vector<112x128xf32>
    %17 = arith.addf %13, %16 : vector<112x128xf32>
    %c0_10 = arith.constant 0 : index
    %c18 = arith.constant 18 : index
    %c0_11 = arith.constant 0 : index
    %18 = vector.load %arg1[%c0_10, %c18, %c0_11] : memref<1x264x128xf32, #tpu.memory_space<vmem>>, vector<1x112x128xf32>
    %19 = vector.shape_cast %18 : vector<1x112x128xf32> to vector<112x128xf32>
    %c20_i32 = arith.constant 20 : i32
    %20 = tpu.dynamic_rotate %19 by %c20_i32 dim 1 : vector<112x128xf32>, i32 -> vector<112x128xf32>
    %21 = arith.addf %17, %20 : vector<112x128xf32>
    %c0_12 = arith.constant 0 : index
    %c32 = arith.constant 32 : index
    %c0_13 = arith.constant 0 : index
    %22 = vector.load %arg1[%c0_12, %c32, %c0_13] : memref<1x264x128xf32, #tpu.memory_space<vmem>>, vector<1x112x128xf32>
    %23 = vector.shape_cast %22 : vector<1x112x128xf32> to vector<112x128xf32>
    %c24_i32 = arith.constant 24 : i32
    %24 = tpu.dynamic_rotate %23 by %c24_i32 dim 1 : vector<112x128xf32>, i32 -> vector<112x128xf32>
    %25 = arith.addf %21, %24 : vector<112x128xf32>
    %c0_14 = arith.constant 0 : index
    %c33 = arith.constant 33 : index
    %c0_15 = arith.constant 0 : index
    %26 = vector.load %arg1[%c0_14, %c33, %c0_15] : memref<1x264x128xf32, #tpu.memory_space<vmem>>, vector<1x112x128xf32>
    %27 = vector.shape_cast %26 : vector<1x112x128xf32> to vector<112x128xf32>
    %c28_i32 = arith.constant 28 : i32
    %28 = tpu.dynamic_rotate %27 by %c28_i32 dim 1 : vector<112x128xf32>, i32 -> vector<112x128xf32>
    %29 = arith.addf %25, %28 : vector<112x128xf32>
    %c0_16 = arith.constant 0 : index
    %c34 = arith.constant 34 : index
    %c0_17 = arith.constant 0 : index
    %30 = vector.load %arg1[%c0_16, %c34, %c0_17] : memref<1x264x128xf32, #tpu.memory_space<vmem>>, vector<1x112x128xf32>
    %31 = vector.shape_cast %30 : vector<1x112x128xf32> to vector<112x128xf32>
    %c32_i32 = arith.constant 32 : i32
    %32 = tpu.dynamic_rotate %31 by %c32_i32 dim 1 : vector<112x128xf32>, i32 -> vector<112x128xf32>
    %33 = arith.addf %29, %32 : vector<112x128xf32>
    %c0_18 = arith.constant 0 : index
    %c0_19 = arith.constant 0 : index
    %34 = vector.load %arg2[%c0_18, %c0_19] : memref<128x128xf32, #tpu.memory_space<vmem>>, vector<128x128xf32>
    %cst = arith.constant dense<0.000000e+00> : vector<112x128xf32>
    %35 = tpu.matmul %33, %34, %cst {dimension_numbers = #tpu.dot_dimension_numbers<[1], [0], [0], [1], [0, 0, 1, 1], [], []>} : vector<112x128xf32>, vector<128x128xf32>, vector<112x128xf32> -> vector<112x128xf32>
    %c0_20 = arith.constant 0 : index
    %c0_21 = arith.constant 0 : index
    %36 = vector.load %arg3[%c0_20, %c0_21] : memref<1x128xf32, #tpu.memory_space<vmem>>, vector<1x128xf32>
    %37 = vector.broadcast %36 : vector<1x128xf32> to vector<112x128xf32>
    %38 = arith.addf %35, %37 : vector<112x128xf32>
    %cst_22 = arith.constant 0.000000e+00 : f32
    %39 = vector.broadcast %cst_22 : f32 to vector<112x128xf32>
    %40 = arith.maximumf %38, %39 : vector<112x128xf32>
    %c0_23 = arith.constant 0 : index
    %c0_24 = arith.constant 0 : index
    %41 = vector.load %arg14[%c0_23, %c0_24] : memref<232x128xf32, #tpu.memory_space<vmem>>, vector<112x128xf32>
    tpu.vector_store %arg14[%c0_23, %c0_24], %40 {strides = array<i32>} : memref<232x128xf32, #tpu.memory_space<vmem>>, vector<112x128xf32>,
    %c0_25 = arith.constant 0 : index
    %c112 = arith.constant 112 : index
    %c0_26 = arith.constant 0 : index
    %42 = vector.load %arg1[%c0_25, %c112, %c0_26] : memref<1x264x128xf32, #tpu.memory_space<vmem>>, vector<1x112x128xf32>
    %43 = vector.shape_cast %42 : vector<1x112x128xf32> to vector<112x128xf32>
    %c0_27 = arith.constant 0 : index
    %c113 = arith.constant 113 : index
    %c0_28 = arith.constant 0 : index
    %44 = vector.load %arg1[%c0_27, %c113, %c0_28] : memref<1x264x128xf32, #tpu.memory_space<vmem>>, vector<1x112x128xf32>
    %45 = vector.shape_cast %44 : vector<1x112x128xf32> to vector<112x128xf32>
    %c4_i32_29 = arith.constant 4 : i32
    %46 = tpu.dynamic_rotate %45 by %c4_i32_29 dim 1 : vector<112x128xf32>, i32 -> vector<112x128xf32>
    %47 = arith.addf %43, %46 : vector<112x128xf32>
    %c0_30 = arith.constant 0 : index
    %c114 = arith.constant 114 : index
    %c0_31 = arith.constant 0 : index
    %48 = vector.load %arg1[%c0_30, %c114, %c0_31] : memref<1x264x128xf32, #tpu.memory_space<vmem>>, vector<1x112x128xf32>
    %49 = vector.shape_cast %48 : vector<1x112x128xf32> to vector<112x128xf32>
    %c8_i32_32 = arith.constant 8 : i32
    %50 = tpu.dynamic_rotate %49 by %c8_i32_32 dim 1 : vector<112x128xf32>, i32 -> vector<112x128xf32>
    %51 = arith.addf %47, %50 : vector<112x128xf32>
    %c0_33 = arith.constant 0 : index
    %c128 = arith.constant 128 : index
    %c0_34 = arith.constant 0 : index
    %52 = vector.load %arg1[%c0_33, %c128, %c0_34] : memref<1x264x128xf32, #tpu.memory_space<vmem>>, vector<1x112x128xf32>
    %53 = vector.shape_cast %52 : vector<1x112x128xf32> to vector<112x128xf32>
    %c12_i32_35 = arith.constant 12 : i32
    %54 = tpu.dynamic_rotate %53 by %c12_i32_35 dim 1 : vector<112x128xf32>, i32 -> vector<112x128xf32>
    %55 = arith.addf %51, %54 : vector<112x128xf32>
    %c0_36 = arith.constant 0 : index
    %c129 = arith.constant 129 : index
    %c0_37 = arith.constant 0 : index
    %56 = vector.load %arg1[%c0_36, %c129, %c0_37] : memref<1x264x128xf32, #tpu.memory_space<vmem>>, vector<1x112x128xf32>
    %57 = vector.shape_cast %56 : vector<1x112x128xf32> to vector<112x128xf32>
    %c16_i32_38 = arith.constant 16 : i32
    %58 = tpu.dynamic_rotate %57 by %c16_i32_38 dim 1 : vector<112x128xf32>, i32 -> vector<112x128xf32>
    %59 = arith.addf %55, %58 : vector<112x128xf32>
    %c0_39 = arith.constant 0 : index
    %c130 = arith.constant 130 : index
    %c0_40 = arith.constant 0 : index
    %60 = vector.load %arg1[%c0_39, %c130, %c0_40] : memref<1x264x128xf32, #tpu.memory_space<vmem>>, vector<1x112x128xf32>
    %61 = vector.shape_cast %60 : vector<1x112x128xf32> to vector<112x128xf32>
    %c20_i32_41 = arith.constant 20 : i32
    %62 = tpu.dynamic_rotate %61 by %c20_i32_41 dim 1 : vector<112x128xf32>, i32 -> vector<112x128xf32>
    %63 = arith.addf %59, %62 : vector<112x128xf32>
    %c0_42 = arith.constant 0 : index
    %c144 = arith.constant 144 : index
    %c0_43 = arith.constant 0 : index
    %64 = vector.load %arg1[%c0_42, %c144, %c0_43] : memref<1x264x128xf32, #tpu.memory_space<vmem>>, vector<1x112x128xf32>
    %65 = vector.shape_cast %64 : vector<1x112x128xf32> to vector<112x128xf32>
    %c24_i32_44 = arith.constant 24 : i32
    %66 = tpu.dynamic_rotate %65 by %c24_i32_44 dim 1 : vector<112x128xf32>, i32 -> vector<112x128xf32>
    %67 = arith.addf %63, %66 : vector<112x128xf32>
    %c0_45 = arith.constant 0 : index
    %c145 = arith.constant 145 : index
    %c0_46 = arith.constant 0 : index
    %68 = vector.load %arg1[%c0_45, %c145, %c0_46] : memref<1x264x128xf32, #tpu.memory_space<vmem>>, vector<1x112x128xf32>
    %69 = vector.shape_cast %68 : vector<1x112x128xf32> to vector<112x128xf32>
    %c28_i32_47 = arith.constant 28 : i32
    %70 = tpu.dynamic_rotate %69 by %c28_i32_47 dim 1 : vector<112x128xf32>, i32 -> vector<112x128xf32>
    %71 = arith.addf %67, %70 : vector<112x128xf32>
    %c0_48 = arith.constant 0 : index
    %c146 = arith.constant 146 : index
    %c0_49 = arith.constant 0 : index
    %72 = vector.load %arg1[%c0_48, %c146, %c0_49] : memref<1x264x128xf32, #tpu.memory_space<vmem>>, vector<1x112x128xf32>
    %73 = vector.shape_cast %72 : vector<1x112x128xf32> to vector<112x128xf32>
    %c32_i32_50 = arith.constant 32 : i32
    %74 = tpu.dynamic_rotate %73 by %c32_i32_50 dim 1 : vector<112x128xf32>, i32 -> vector<112x128xf32>
    %75 = arith.addf %71, %74 : vector<112x128xf32>
    %c0_51 = arith.constant 0 : index
    %c0_52 = arith.constant 0 : index
    %76 = vector.load %arg2[%c0_51, %c0_52] : memref<128x128xf32, #tpu.memory_space<vmem>>, vector<128x128xf32>
    %cst_53 = arith.constant dense<0.000000e+00> : vector<112x128xf32>
    %77 = tpu.matmul %75, %76, %cst_53 {dimension_numbers = #tpu.dot_dimension_numbers<[1], [0], [0], [1], [0, 0, 1, 1], [], []>} : vector<112x128xf32>, vector<128x128xf32>, vector<112x128xf32> -> vector<112x128xf32>
    %c0_54 = arith.constant 0 : index
    %c0_55 = arith.constant 0 : index
    %78 = vector.load %arg3[%c0_54, %c0_55] : memref<1x128xf32, #tpu.memory_space<vmem>>, vector<1x128xf32>
    %79 = vector.broadcast %78 : vector<1x128xf32> to vector<112x128xf32>
    %80 = arith.addf %77, %79 : vector<112x128xf32>
    %cst_56 = arith.constant 0.000000e+00 : f32
    %81 = vector.broadcast %cst_56 : f32 to vector<112x128xf32>
    %82 = arith.maximumf %80, %81 : vector<112x128xf32>
    %c112_57 = arith.constant 112 : index
    %c0_58 = arith.constant 0 : index
    %83 = vector.load %arg14[%c112_57, %c0_58] : memref<232x128xf32, #tpu.memory_space<vmem>>, vector<112x128xf32>
    tpu.vector_store %arg14[%c112_57, %c0_58], %82 {strides = array<i32>} : memref<232x128xf32, #tpu.memory_space<vmem>>, vector<112x128xf32>,
    %cst_59 = arith.constant 0.000000e+00 : f32
    %84 = vector.broadcast %cst_59 : f32 to vector<8x128xf32>
    %c224 = arith.constant 224 : index
    %c0_60 = arith.constant 0 : index
    %85 = vector.load %arg14[%c224, %c0_60] : memref<232x128xf32, #tpu.memory_space<vmem>>, vector<8x128xf32>
    tpu.vector_store %arg14[%c224, %c0_60], %84 {strides = array<i32>} : memref<232x128xf32, #tpu.memory_space<vmem>>, vector<8x128xf32>,
    %c0_61 = arith.constant 0 : index
    %c0_62 = arith.constant 0 : index
    %86 = vector.load %arg14[%c0_61, %c0_62] : memref<232x128xf32, #tpu.memory_space<vmem>>, vector<192x128xf32>
    %c1_63 = arith.constant 1 : index
    %c0_64 = arith.constant 0 : index
    %87 = vector.load %arg14[%c1_63, %c0_64] : memref<232x128xf32, #tpu.memory_space<vmem>>, vector<192x128xf32>
    %c8_i32_65 = arith.constant 8 : i32
    %88 = tpu.dynamic_rotate %87 by %c8_i32_65 dim 1 : vector<192x128xf32>, i32 -> vector<192x128xf32>
    %89 = arith.addf %86, %88 : vector<192x128xf32>
    %c2_66 = arith.constant 2 : index
    %c0_67 = arith.constant 0 : index
    %90 = vector.load %arg14[%c2_66, %c0_67] : memref<232x128xf32, #tpu.memory_space<vmem>>, vector<192x128xf32>
    %c16_i32_68 = arith.constant 16 : i32
    %91 = tpu.dynamic_rotate %90 by %c16_i32_68 dim 1 : vector<192x128xf32>, i32 -> vector<192x128xf32>
    %92 = arith.addf %89, %91 : vector<192x128xf32>
    %c16_69 = arith.constant 16 : index
    %c0_70 = arith.constant 0 : index
    %93 = vector.load %arg14[%c16_69, %c0_70] : memref<232x128xf32, #tpu.memory_space<vmem>>, vector<192x128xf32>
    %c24_i32_71 = arith.constant 24 : i32
    %94 = tpu.dynamic_rotate %93 by %c24_i32_71 dim 1 : vector<192x128xf32>, i32 -> vector<192x128xf32>
    %95 = arith.addf %92, %94 : vector<192x128xf32>
    %c17_72 = arith.constant 17 : index
    %c0_73 = arith.constant 0 : index
    %96 = vector.load %arg14[%c17_72, %c0_73] : memref<232x128xf32, #tpu.memory_space<vmem>>, vector<192x128xf32>
    %c32_i32_74 = arith.constant 32 : i32
    %97 = tpu.dynamic_rotate %96 by %c32_i32_74 dim 1 : vector<192x128xf32>, i32 -> vector<192x128xf32>
    %98 = arith.addf %95, %97 : vector<192x128xf32>
    %c18_75 = arith.constant 18 : index
    %c0_76 = arith.constant 0 : index
    %99 = vector.load %arg14[%c18_75, %c0_76] : memref<232x128xf32, #tpu.memory_space<vmem>>, vector<192x128xf32>
    %c40_i32 = arith.constant 40 : i32
    %100 = tpu.dynamic_rotate %99 by %c40_i32 dim 1 : vector<192x128xf32>, i32 -> vector<192x128xf32>
    %101 = arith.addf %98, %100 : vector<192x128xf32>
    %c32_77 = arith.constant 32 : index
    %c0_78 = arith.constant 0 : index
    %102 = vector.load %arg14[%c32_77, %c0_78] : memref<232x128xf32, #tpu.memory_space<vmem>>, vector<192x128xf32>
    %c48_i32 = arith.constant 48 : i32
    %103 = tpu.dynamic_rotate %102 by %c48_i32 dim 1 : vector<192x128xf32>, i32 -> vector<192x128xf32>
    %104 = arith.addf %101, %103 : vector<192x128xf32>
    %c33_79 = arith.constant 33 : index
    %c0_80 = arith.constant 0 : index
    %105 = vector.load %arg14[%c33_79, %c0_80] : memref<232x128xf32, #tpu.memory_space<vmem>>, vector<192x128xf32>
    %c56_i32 = arith.constant 56 : i32
    %106 = tpu.dynamic_rotate %105 by %c56_i32 dim 1 : vector<192x128xf32>, i32 -> vector<192x128xf32>
    %107 = arith.addf %104, %106 : vector<192x128xf32>
    %c34_81 = arith.constant 34 : index
    %c0_82 = arith.constant 0 : index
    %108 = vector.load %arg14[%c34_81, %c0_82] : memref<232x128xf32, #tpu.memory_space<vmem>>, vector<192x128xf32>
    %c64_i32 = arith.constant 64 : i32
    %109 = tpu.dynamic_rotate %108 by %c64_i32 dim 1 : vector<192x128xf32>, i32 -> vector<192x128xf32>
    %110 = arith.addf %107, %109 : vector<192x128xf32>
    %c0_83 = arith.constant 0 : index
    %c0_84 = arith.constant 0 : index
    %111 = vector.load %arg4[%c0_83, %c0_84] : memref<128x128xf32, #tpu.memory_space<vmem>>, vector<128x128xf32>
    %cst_85 = arith.constant dense<0.000000e+00> : vector<192x128xf32>
    %112 = tpu.matmul %110, %111, %cst_85 {dimension_numbers = #tpu.dot_dimension_numbers<[1], [0], [0], [1], [0, 0, 1, 1], [], []>} : vector<192x128xf32>, vector<128x128xf32>, vector<192x128xf32> -> vector<192x128xf32>
    %c0_86 = arith.constant 0 : index
    %c0_87 = arith.constant 0 : index
    %113 = vector.load %arg5[%c0_86, %c0_87] : memref<1x128xf32, #tpu.memory_space<vmem>>, vector<1x128xf32>
    %114 = vector.broadcast %113 : vector<1x128xf32> to vector<192x128xf32>
    %115 = arith.addf %112, %114 : vector<192x128xf32>
    %cst_88 = arith.constant 0.000000e+00 : f32
    %116 = vector.broadcast %cst_88 : f32 to vector<192x128xf32>
    %117 = arith.maximumf %115, %116 : vector<192x128xf32>
    %c0_89 = arith.constant 0 : index
    %c0_90 = arith.constant 0 : index
    %118 = vector.load %arg6[%c0_89, %c0_90] : memref<56x192xf32, #tpu.memory_space<vmem>>, vector<56x192xf32>
    %cst_91 = arith.constant dense<0.000000e+00> : vector<56x128xf32>
    %119 = tpu.matmul %118, %117, %cst_91 {dimension_numbers = #tpu.dot_dimension_numbers<[1], [0], [0], [1], [0, 0, 1, 1], [], []>} : vector<56x192xf32>, vector<192x128xf32>, vector<56x128xf32> -> vector<56x128xf32>
    %120 = vector.extract_strided_slice %119 {offsets = [0, 0], sizes = [56, 1], strides = [1, 1]} : vector<56x128xf32> to vector<56x1xf32>
    %c0_92 = arith.constant 0 : index
    %c0_93 = arith.constant 0 : index
    %c0_94 = arith.constant 0 : index
    %121 = vector.load %arg7[%c0_92, %c0_93, %c0_94] : memref<8x56x128xf32, #tpu.memory_space<vmem>>, vector<1x56x128xf32>
    %122 = vector.shape_cast %121 : vector<1x56x128xf32> to vector<56x128xf32>
    %123 = vector.broadcast %120 : vector<56x1xf32> to vector<56x128xf32>
    %124 = arith.mulf %123, %122 : vector<56x128xf32>
    %125 = vector.extract_strided_slice %119 {offsets = [0, 1], sizes = [56, 1], strides = [1, 1]} : vector<56x128xf32> to vector<56x1xf32>
    %c1_95 = arith.constant 1 : index
    %c0_96 = arith.constant 0 : index
    %c0_97 = arith.constant 0 : index
    %126 = vector.load %arg7[%c1_95, %c0_96, %c0_97] : memref<8x56x128xf32, #tpu.memory_space<vmem>>, vector<1x56x128xf32>
    %127 = vector.shape_cast %126 : vector<1x56x128xf32> to vector<56x128xf32>
    %128 = vector.broadcast %125 : vector<56x1xf32> to vector<56x128xf32>
    %129 = arith.mulf %128, %127 : vector<56x128xf32>
    %130 = arith.addf %124, %129 : vector<56x128xf32>
    %131 = vector.extract_strided_slice %119 {offsets = [0, 2], sizes = [56, 1], strides = [1, 1]} : vector<56x128xf32> to vector<56x1xf32>
    %c2_98 = arith.constant 2 : index
    %c0_99 = arith.constant 0 : index
    %c0_100 = arith.constant 0 : index
    %132 = vector.load %arg7[%c2_98, %c0_99, %c0_100] : memref<8x56x128xf32, #tpu.memory_space<vmem>>, vector<1x56x128xf32>
    %133 = vector.shape_cast %132 : vector<1x56x128xf32> to vector<56x128xf32>
    %134 = vector.broadcast %131 : vector<56x1xf32> to vector<56x128xf32>
    %135 = arith.mulf %134, %133 : vector<56x128xf32>
    %136 = arith.addf %130, %135 : vector<56x128xf32>
    %137 = vector.extract_strided_slice %119 {offsets = [0, 3], sizes = [56, 1], strides = [1, 1]} : vector<56x128xf32> to vector<56x1xf32>
    %c3 = arith.constant 3 : index
    %c0_101 = arith.constant 0 : index
    %c0_102 = arith.constant 0 : index
    %138 = vector.load %arg7[%c3, %c0_101, %c0_102] : memref<8x56x128xf32, #tpu.memory_space<vmem>>, vector<1x56x128xf32>
    %139 = vector.shape_cast %138 : vector<1x56x128xf32> to vector<56x128xf32>
    %140 = vector.broadcast %137 : vector<56x1xf32> to vector<56x128xf32>
    %141 = arith.mulf %140, %139 : vector<56x128xf32>
    %142 = arith.addf %136, %141 : vector<56x128xf32>
    %143 = vector.extract_strided_slice %119 {offsets = [0, 4], sizes = [56, 1], strides = [1, 1]} : vector<56x128xf32> to vector<56x1xf32>
    %c4 = arith.constant 4 : index
    %c0_103 = arith.constant 0 : index
    %c0_104 = arith.constant 0 : index
    %144 = vector.load %arg7[%c4, %c0_103, %c0_104] : memref<8x56x128xf32, #tpu.memory_space<vmem>>, vector<1x56x128xf32>
    %145 = vector.shape_cast %144 : vector<1x56x128xf32> to vector<56x128xf32>
    %146 = vector.broadcast %143 : vector<56x1xf32> to vector<56x128xf32>
    %147 = arith.mulf %146, %145 : vector<56x128xf32>
    %148 = arith.addf %142, %147 : vector<56x128xf32>
    %149 = vector.extract_strided_slice %119 {offsets = [0, 5], sizes = [56, 1], strides = [1, 1]} : vector<56x128xf32> to vector<56x1xf32>
    %c5 = arith.constant 5 : index
    %c0_105 = arith.constant 0 : index
    %c0_106 = arith.constant 0 : index
    %150 = vector.load %arg7[%c5, %c0_105, %c0_106] : memref<8x56x128xf32, #tpu.memory_space<vmem>>, vector<1x56x128xf32>
    %151 = vector.shape_cast %150 : vector<1x56x128xf32> to vector<56x128xf32>
    %152 = vector.broadcast %149 : vector<56x1xf32> to vector<56x128xf32>
    %153 = arith.mulf %152, %151 : vector<56x128xf32>
    %154 = arith.addf %148, %153 : vector<56x128xf32>
    %155 = vector.extract_strided_slice %119 {offsets = [0, 6], sizes = [56, 1], strides = [1, 1]} : vector<56x128xf32> to vector<56x1xf32>
    %c6 = arith.constant 6 : index
    %c0_107 = arith.constant 0 : index
    %c0_108 = arith.constant 0 : index
    %156 = vector.load %arg7[%c6, %c0_107, %c0_108] : memref<8x56x128xf32, #tpu.memory_space<vmem>>, vector<1x56x128xf32>
    %157 = vector.shape_cast %156 : vector<1x56x128xf32> to vector<56x128xf32>
    %158 = vector.broadcast %155 : vector<56x1xf32> to vector<56x128xf32>
    %159 = arith.mulf %158, %157 : vector<56x128xf32>
    %160 = arith.addf %154, %159 : vector<56x128xf32>
    %161 = vector.extract_strided_slice %119 {offsets = [0, 7], sizes = [56, 1], strides = [1, 1]} : vector<56x128xf32> to vector<56x1xf32>
    %c7 = arith.constant 7 : index
    %c0_109 = arith.constant 0 : index
    %c0_110 = arith.constant 0 : index
    %162 = vector.load %arg7[%c7, %c0_109, %c0_110] : memref<8x56x128xf32, #tpu.memory_space<vmem>>, vector<1x56x128xf32>
    %163 = vector.shape_cast %162 : vector<1x56x128xf32> to vector<56x128xf32>
    %164 = vector.broadcast %161 : vector<56x1xf32> to vector<56x128xf32>
    %165 = arith.mulf %164, %163 : vector<56x128xf32>
    %166 = arith.addf %160, %165 : vector<56x128xf32>
    %cst_111 = arith.constant dense<0.000000e+00> : vector<128xf32>
    %167 = vector.multi_reduction <add>, %166, %cst_111 [0] : vector<56x128xf32> to vector<128xf32>
    %168 = vector.shape_cast %167 : vector<128xf32> to vector<1x128xf32>
    %c0_112 = arith.constant 0 : index
    %c0_113 = arith.constant 0 : index
    %169 = vector.load %arg8[%c0_112, %c0_113] : memref<1x128xf32, #tpu.memory_space<vmem>>, vector<1x128xf32>
    %170 = arith.addf %168, %169 : vector<1x128xf32>
    %cst_114 = arith.constant 0.000000e+00 : f32
    %171 = vector.broadcast %cst_114 : f32 to vector<1x128xf32>
    %172 = arith.maximumf %170, %171 : vector<1x128xf32>
    %173 = vector.shape_cast %172 : vector<1x128xf32> to vector<1x128xf32>
    %174 = vector.broadcast %173 : vector<1x128xf32> to vector<8x128xf32>
    %c0_115 = arith.constant 0 : index
    %c0_116 = arith.constant 0 : index
    %175 = vector.load %arg9[%c0_115, %c0_116] : memref<128x128xf32, #tpu.memory_space<vmem>>, vector<128x128xf32>
    %cst_117 = arith.constant dense<0.000000e+00> : vector<8x128xf32>
    %176 = tpu.matmul %174, %175, %cst_117 {dimension_numbers = #tpu.dot_dimension_numbers<[1], [0], [0], [1], [0, 0, 1, 1], [], []>} : vector<8x128xf32>, vector<128x128xf32>, vector<8x128xf32> -> vector<8x128xf32>
    %c0_118 = arith.constant 0 : index
    %c0_119 = arith.constant 0 : index
    %177 = vector.load %arg10[%c0_118, %c0_119] : memref<1x128xf32, #tpu.memory_space<vmem>>, vector<1x128xf32>
    %178 = vector.broadcast %177 : vector<1x128xf32> to vector<8x128xf32>
    %179 = arith.addf %176, %178 : vector<8x128xf32>
    %cst_120 = arith.constant 0.000000e+00 : f32
    %180 = vector.broadcast %cst_120 : f32 to vector<8x128xf32>
    %181 = arith.maximumf %179, %180 : vector<8x128xf32>
    %c0_121 = arith.constant 0 : index
    %c0_122 = arith.constant 0 : index
    %182 = vector.load %arg11[%c0_121, %c0_122] : memref<128x128xf32, #tpu.memory_space<vmem>>, vector<128x128xf32>
    %cst_123 = arith.constant dense<0.000000e+00> : vector<8x128xf32>
    %183 = tpu.matmul %181, %182, %cst_123 {dimension_numbers = #tpu.dot_dimension_numbers<[1], [0], [0], [1], [0, 0, 1, 1], [], []>} : vector<8x128xf32>, vector<128x128xf32>, vector<8x128xf32> -> vector<8x128xf32>
    %c0_124 = arith.constant 0 : index
    %c0_125 = arith.constant 0 : index
    %184 = vector.load %arg12[%c0_124, %c0_125] : memref<1x128xf32, #tpu.memory_space<vmem>>, vector<1x128xf32>
    %185 = vector.broadcast %184 : vector<1x128xf32> to vector<8x128xf32>
    %186 = arith.addf %183, %185 : vector<8x128xf32>
    %c0_126 = arith.constant 0 : index
    %c0_127 = arith.constant 0 : index
    %c0_128 = arith.constant 0 : index
    %187 = vector.load %arg13[%c0_126, %c0_127, %c0_128] : memref<1x8x128xf32, #tpu.memory_space<vmem>>, vector<1x8x128xf32>
    %188 = vector.shape_cast %187 : vector<1x8x128xf32> to vector<8x128xf32>
    %189 = vector.shape_cast %186 : vector<8x128xf32> to vector<1x8x128xf32>
    tpu.vector_store %arg13[%c0_126, %c0_127, %c0_128], %189 {strides = array<i32>} : memref<1x8x128xf32, #tpu.memory_space<vmem>>, vector<1x8x128xf32>,
    return
  }
  func.func @transform_0(%arg0: i32) -> (i32, i32, i32) {
    %c0_i32 = arith.constant 0 : i32
    %c0_i32_0 = arith.constant 0 : i32
    %c0_i32_1 = arith.constant 0 : i32
    return %arg0, %c0_i32, %c0_i32_0 : i32, i32, i32
  }
  func.func @transform_1(%arg0: i32) -> (i32, i32) {
    %c0_i32 = arith.constant 0 : i32
    %c0_i32_0 = arith.constant 0 : i32
    %c0_i32_1 = arith.constant 0 : i32
    return %c0_i32, %c0_i32_0 : i32, i32
  }
  func.func @transform_2(%arg0: i32) -> (i32, i32) {
    %c0_i32 = arith.constant 0 : i32
    %c0_i32_0 = arith.constant 0 : i32
    %c0_i32_1 = arith.constant 0 : i32
    return %c0_i32, %c0_i32_0 : i32, i32
  }
  func.func @transform_3(%arg0: i32) -> (i32, i32) {
    %c0_i32 = arith.constant 0 : i32
    %c0_i32_0 = arith.constant 0 : i32
    %c0_i32_1 = arith.constant 0 : i32
    return %c0_i32, %c0_i32_0 : i32, i32
  }
  func.func @transform_4(%arg0: i32) -> (i32, i32) {
    %c0_i32 = arith.constant 0 : i32
    %c0_i32_0 = arith.constant 0 : i32
    %c0_i32_1 = arith.constant 0 : i32
    return %c0_i32, %c0_i32_0 : i32, i32
  }
  func.func @transform_5(%arg0: i32) -> (i32, i32) {
    %c0_i32 = arith.constant 0 : i32
    %c0_i32_0 = arith.constant 0 : i32
    %c0_i32_1 = arith.constant 0 : i32
    return %c0_i32, %c0_i32_0 : i32, i32
  }
  func.func @transform_6(%arg0: i32) -> (i32, i32, i32) {
    %c0_i32 = arith.constant 0 : i32
    %c0_i32_0 = arith.constant 0 : i32
    %c0_i32_1 = arith.constant 0 : i32
    %c0_i32_2 = arith.constant 0 : i32
    return %c0_i32, %c0_i32_0, %c0_i32_1 : i32, i32, i32
  }
  func.func @transform_7(%arg0: i32) -> (i32, i32) {
    %c0_i32 = arith.constant 0 : i32
    %c0_i32_0 = arith.constant 0 : i32
    %c0_i32_1 = arith.constant 0 : i32
    return %c0_i32, %c0_i32_0 : i32, i32
  }
  func.func @transform_8(%arg0: i32) -> (i32, i32) {
    %c0_i32 = arith.constant 0 : i32
    %c0_i32_0 = arith.constant 0 : i32
    %c0_i32_1 = arith.constant 0 : i32
    return %c0_i32, %c0_i32_0 : i32, i32
  }
  func.func @transform_9(%arg0: i32) -> (i32, i32) {
    %c0_i32 = arith.constant 0 : i32
    %c0_i32_0 = arith.constant 0 : i32
    %c0_i32_1 = arith.constant 0 : i32
    return %c0_i32, %c0_i32_0 : i32, i32
  }
  func.func @transform_10(%arg0: i32) -> (i32, i32) {
    %c0_i32 = arith.constant 0 : i32
    %c0_i32_0 = arith.constant 0 : i32
    %c0_i32_1 = arith.constant 0 : i32
    return %c0_i32, %c0_i32_0 : i32, i32
  }
  func.func @transform_11(%arg0: i32) -> (i32, i32) {
    %c0_i32 = arith.constant 0 : i32
    %c0_i32_0 = arith.constant 0 : i32
    %c0_i32_1 = arith.constant 0 : i32
    return %c0_i32, %c0_i32_0 : i32, i32
  }
  func.func @transform_12(%arg0: i32) -> (i32, i32, i32) {
    %c0_i32 = arith.constant 0 : i32
    %c0_i32_0 = arith.constant 0 : i32
    %c0_i32_1 = arith.constant 0 : i32
    return %arg0, %c0_i32, %c0_i32_0 : i32, i32, i32
  }
}

</mosaic_0001>

<llo_original>
// kernel: _lambda_.1
$region0: #{_lambda_.1}
  #allocation0 [shape = 'u32[]', space=smem, size = 0x4, offset = 0x4, fixed_abs, tag = 'smem constant byte address 0x4 - core index']
  #allocation1 [shape = 'u32[144,128]{1,0:T(1,128)}', space=vmem, size = 0x12000, scoped, tag = 'internal scratch']
  #allocation2 [shape = 'f32[232,128]{1,0:T(8,128)}', space=vmem, size = 0x1d000, scoped, tag = 'scratch operand']
  %s0 = inlined_call_operand.vmem [shape: f32[2,264,128], index: 0, kind: input, shape index: {}]
  %s1 = inlined_call_operand.vmem [shape: f32[128,128], index: 1, kind: input, shape index: {}]
  %s2 = inlined_call_operand.vmem [shape: f32[1,128], index: 2, kind: input, shape index: {}]
  %s3 = inlined_call_operand.vmem [shape: f32[128,128], index: 3, kind: input, shape index: {}]
  %s4 = inlined_call_operand.vmem [shape: f32[1,128], index: 4, kind: input, shape index: {}]
  %s5 = inlined_call_operand.vmem [shape: f32[56,192], index: 5, kind: input, shape index: {}]
  %s6 = inlined_call_operand.vmem [shape: f32[8,56,128], index: 6, kind: input, shape index: {}]
  %s7 = inlined_call_operand.vmem [shape: f32[1,128], index: 7, kind: input, shape index: {}]
  %s8 = inlined_call_operand.vmem [shape: f32[128,128], index: 8, kind: input, shape index: {}]
  %s9 = inlined_call_operand.vmem [shape: f32[1,128], index: 9, kind: input, shape index: {}]
  %s10 = inlined_call_operand.vmem [shape: f32[128,128], index: 10, kind: input, shape index: {}]
  %s11 = inlined_call_operand.vmem [shape: f32[1,128], index: 11, kind: input, shape index: {}]
  %s12 = inlined_call_operand.vmem [shape: f32[2,8,128], index: 12, kind: output, shape index: {}]
  %s13 = sld [smem:[#allocation0]]
  $region81: #{_lambda_.1} parent=0
    _
  %s15 = ssub.s32 1, %s13
  %s16 = scalar_select 0, %s15, %s13
  loop: start=0, step=1, limit=4
  $region2: #{_lambda_.1} parent=0 // loop_pre_header
    _
  $region3: #{_lambda_.1} parent=0 // loop_header
    %s18 = sphi 0, %s22
    %p19 = scmp.ge.s32.totalorder %s18, 4
    %s28 = sphi 0, %s30
    %s31 = sphi 0, %s28
    %s32 = sphi 0, %s31
    %s48 = sphi 0, %s32
    %s52 = sphi 0, %s52
    %s54 = sphi 0, %s52
    %s55 = sphi 0, %s54
    %s69 = sphi 0, %s55
    %s73 = sphi 0, %s73
    %s75 = sphi 0, %s73
    %s76 = sphi 0, %s75
    %s90 = sphi 0, %s76
    %s94 = sphi 0, %s94
    %s96 = sphi 0, %s94
    %s97 = sphi 0, %s96
    %s111 = sphi 0, %s97
    %s115 = sphi 0, %s115
    %s117 = sphi 0, %s115
    %s118 = sphi 0, %s117
    %s132 = sphi 0, %s118
    %s136 = sphi 0, %s136
    %s138 = sphi 0, %s136
    %s139 = sphi 0, %s138
    %s153 = sphi 0, %s139
    %s157 = sphi 0, %s157
    %s159 = sphi 0, %s157
    %s160 = sphi 0, %s159
    %s174 = sphi 0, %s160
    %s178 = sphi 0, %s178
    %s180 = sphi 0, %s178
    %s181 = sphi 0, %s180
    %s195 = sphi 0, %s181
    %s199 = sphi 0, %s199
    %s201 = sphi 0, %s199
    %s202 = sphi 0, %s201
    %s216 = sphi 0, %s202
    %s220 = sphi 0, %s220
    %s222 = sphi 0, %s220
    %s223 = sphi 0, %s222
    %s237 = sphi 0, %s223
    %s241 = sphi 0, %s241
    %s243 = sphi 0, %s241
    %s244 = sphi 0, %s243
    %s258 = sphi 0, %s244
    %s262 = sphi 0, %s262
    %s264 = sphi 0, %s262
    %s265 = sphi 0, %s264
    %s279 = sphi 0, %s265
    %s285 = sphi 0, %s287
    %s288 = sphi 0, %s285
    %s289 = sphi 0, %s288
    %s305 = sphi 0, %s289
  $region4: #{_lambda_.1} parent=0 // loop_header_branch
    %21 = sbr.rel (%p19) target = $region8
  $region5: #{_lambda_.1} parent=0 // loop_body
    %s23 = ssub.s32 %s18, 1
    %s24 = ssub.s32 %s18, 2
    %s25 = sadd.s32 %s18, 1
    %s26 = ssub.s32 %s18, %s25
    %p27 = scmp.eq.s32.totalorder %s26, 0
    %s29 = sadd.s32 %s28, 1
    %s30 = scalar_select %p27, %s28, %s29
    %p33 = pneg %p27
    %p34 = scmp.eq.s32.totalorder %s18, 1
    %p35 = por %p33, %p34
    %p36 = scmp.ne.s32.totalorder %s28, %s31
    %p37 = scmp.eq.s32.totalorder %s18, 0
    %p38 = por %p36, %p37
    %p39 = scmp.ne.s32.totalorder %s28, %s31
    %p40 = scmp.eq.s32.totalorder %s23, 1
    %p41 = por %p39, %p40
    %p42 = scmp.ne.s32.totalorder %s31, %s32
    %p43 = scmp.eq.s32.totalorder %s23, 0
    %p44 = por %p42, %p43
    %p45 = scmp.ne.s32.totalorder %s31, %s32
    %p46 = scmp.eq.s32.totalorder %s24, 1
    %p47 = por %p45, %p46
    %p49 = scmp.ne.s32.totalorder %s32, %s48
    %p50 = scmp.eq.s32.totalorder %s24, 0
    %p51 = por %p49, %p50
    %s53 = sadd.s32 %s52, 1
    %p56 = scmp.eq.s32.totalorder %s18, 1
    %p57 = scmp.ne.s32.totalorder %s52, %s54
    %p58 = scmp.eq.s32.totalorder %s18, 0
    %p59 = por %p57, %p58
    %p60 = scmp.ne.s32.totalorder %s52, %s54
    %p61 = scmp.eq.s32.totalorder %s23, 1
    %p62 = por %p60, %p61
    %p63 = scmp.ne.s32.totalorder %s54, %s55
    %p64 = scmp.eq.s32.totalorder %s23, 0
    %p65 = por %p63, %p64
    %p66 = scmp.ne.s32.totalorder %s54, %s55
    %p67 = scmp.eq.s32.totalorder %s24, 1
    %p68 = por %p66, %p67
    %p70 = scmp.ne.s32.totalorder %s55, %s69
    %p71 = scmp.eq.s32.totalorder %s24, 0
    %p72 = por %p70, %p71
    %s74 = sadd.s32 %s73, 1
    %p77 = scmp.eq.s32.totalorder %s18, 1
    %p78 = scmp.ne.s32.totalorder %s73, %s75
    %p79 = scmp.eq.s32.totalorder %s18, 0
    %p80 = por %p78, %p79
    %p81 = scmp.ne.s32.totalorder %s73, %s75
    %p82 = scmp.eq.s32.totalorder %s23, 1
    %p83 = por %p81, %p82
    %p84 = scmp.ne.s32.totalorder %s75, %s76
    %p85 = scmp.eq.s32.totalorder %s23, 0
    %p86 = por %p84, %p85
    %p87 = scmp.ne.s32.totalorder %s75, %s76
    %p88 = scmp.eq.s32.totalorder %s24, 1
    %p89 = por %p87, %p88
    %p91 = scmp.ne.s32.totalorder %s76, %s90
    %p92 = scmp.eq.s32.totalorder %s24, 0
    %p93 = por %p91, %p92
    %s95 = sadd.s32 %s94, 1
    %p98 = scmp.eq.s32.totalorder %s18, 1
    %p99 = scmp.ne.s32.totalorder %s94, %s96
    %p100 = scmp.eq.s32.totalorder %s18, 0
    %p101 = por %p99, %p100
    %p102 = scmp.ne.s32.totalorder %s94, %s96
    %p103 = scmp.eq.s32.totalorder %s23, 1
    %p104 = por %p102, %p103
    %p105 = scmp.ne.s32.totalorder %s96, %s97
    %p106 = scmp.eq.s32.totalorder %s23, 0
    %p107 = por %p105, %p106
    %p108 = scmp.ne.s32.totalorder %s96, %s97
    %p109 = scmp.eq.s32.totalorder %s24, 1
    %p110 = por %p108, %p109
    %p112 = scmp.ne.s32.totalorder %s97, %s111
    %p113 = scmp.eq.s32.totalorder %s24, 0
    %p114 = por %p112, %p113
    %s116 = sadd.s32 %s115, 1
    %p119 = scmp.eq.s32.totalorder %s18, 1
    %p120 = scmp.ne.s32.totalorder %s115, %s117
    %p121 = scmp.eq.s32.totalorder %s18, 0
    %p122 = por %p120, %p121
    %p123 = scmp.ne.s32.totalorder %s115, %s117
    %p124 = scmp.eq.s32.totalorder %s23, 1
    %p125 = por %p123, %p124
    %p126 = scmp.ne.s32.totalorder %s117, %s118
    %p127 = scmp.eq.s32.totalorder %s23, 0
    %p128 = por %p126, %p127
    %p129 = scmp.ne.s32.totalorder %s117, %s118
    %p130 = scmp.eq.s32.totalorder %s24, 1
    %p131 = por %p129, %p130
    %p133 = scmp.ne.s32.totalorder %s118, %s132
    %p134 = scmp.eq.s32.totalorder %s24, 0
    %p135 = por %p133, %p134
    %s137 = sadd.s32 %s136, 1
    %p140 = scmp.eq.s32.totalorder %s18, 1
    %p141 = scmp.ne.s32.totalorder %s136, %s138
    %p142 = scmp.eq.s32.totalorder %s18, 0
    %p143 = por %p141, %p142
    %p144 = scmp.ne.s32.totalorder %s136, %s138
    %p145 = scmp.eq.s32.totalorder %s23, 1
    %p146 = por %p144, %p145
    %p147 = scmp.ne.s32.totalorder %s138, %s139
    %p148 = scmp.eq.s32.totalorder %s23, 0
    %p149 = por %p147, %p148
    %p150 = scmp.ne.s32.totalorder %s138, %s139
    %p151 = scmp.eq.s32.totalorder %s24, 1
    %p152 = por %p150, %p151
    %p154 = scmp.ne.s32.totalorder %s139, %s153
    %p155 = scmp.eq.s32.totalorder %s24, 0
    %p156 = por %p154, %p155
    %s158 = sadd.s32 %s157, 1
    %p161 = scmp.eq.s32.totalorder %s18, 1
    %p162 = scmp.ne.s32.totalorder %s157, %s159
    %p163 = scmp.eq.s32.totalorder %s18, 0
    %p164 = por %p162, %p163
    %p165 = scmp.ne.s32.totalorder %s157, %s159
    %p166 = scmp.eq.s32.totalorder %s23, 1
    %p167 = por %p165, %p166
    %p168 = scmp.ne.s32.totalorder %s159, %s160
    %p169 = scmp.eq.s32.totalorder %s23, 0
    %p170 = por %p168, %p169
    %p171 = scmp.ne.s32.totalorder %s159, %s160
    %p172 = scmp.eq.s32.totalorder %s24, 1
    %p173 = por %p171, %p172
    %p175 = scmp.ne.s32.totalorder %s160, %s174
    %p176 = scmp.eq.s32.totalorder %s24, 0
    %p177 = por %p175, %p176
    %s179 = sadd.s32 %s178, 1
    %p182 = scmp.eq.s32.totalorder %s18, 1
    %p183 = scmp.ne.s32.totalorder %s178, %s180
    %p184 = scmp.eq.s32.totalorder %s18, 0
    %p185 = por %p183, %p184
    %p186 = scmp.ne.s32.totalorder %s178, %s180
    %p187 = scmp.eq.s32.totalorder %s23, 1
    %p188 = por %p186, %p187
    %p189 = scmp.ne.s32.totalorder %s180, %s181
    %p190 = scmp.eq.s32.totalorder %s23, 0
    %p191 = por %p189, %p190
    %p192 = scmp.ne.s32.totalorder %s180, %s181
    %p193 = scmp.eq.s32.totalorder %s24, 1
    %p194 = por %p192, %p193
    %p196 = scmp.ne.s32.totalorder %s181, %s195
    %p197 = scmp.eq.s32.totalorder %s24, 0
    %p198 = por %p196, %p197
    %s200 = sadd.s32 %s199, 1
    %p203 = scmp.eq.s32.totalorder %s18, 1
    %p204 = scmp.ne.s32.totalorder %s199, %s201
    %p205 = scmp.eq.s32.totalorder %s18, 0
    %p206 = por %p204, %p205
    %p207 = scmp.ne.s32.totalorder %s199, %s201
    %p208 = scmp.eq.s32.totalorder %s23, 1
    %p209 = por %p207, %p208
    %p210 = scmp.ne.s32.totalorder %s201, %s202
    %p211 = scmp.eq.s32.totalorder %s23, 0
    %p212 = por %p210, %p211
    %p213 = scmp.ne.s32.totalorder %s201, %s202
    %p214 = scmp.eq.s32.totalorder %s24, 1
    %p215 = por %p213, %p214
    %p217 = scmp.ne.s32.totalorder %s202, %s216
    %p218 = scmp.eq.s32.totalorder %s24, 0
    %p219 = por %p217, %p218
    %s221 = sadd.s32 %s220, 1
    %p224 = scmp.eq.s32.totalorder %s18, 1
    %p225 = scmp.ne.s32.totalorder %s220, %s222
    %p226 = scmp.eq.s32.totalorder %s18, 0
    %p227 = por %p225, %p226
    %p228 = scmp.ne.s32.totalorder %s220, %s222
    %p229 = scmp.eq.s32.totalorder %s23, 1
    %p230 = por %p228, %p229
    %p231 = scmp.ne.s32.totalorder %s222, %s223
    %p232 = scmp.eq.s32.totalorder %s23, 0
    %p233 = por %p231, %p232
    %p234 = scmp.ne.s32.totalorder %s222, %s223
    %p235 = scmp.eq.s32.totalorder %s24, 1
    %p236 = por %p234, %p235
    %p238 = scmp.ne.s32.totalorder %s223, %s237
    %p239 = scmp.eq.s32.totalorder %s24, 0
    %p240 = por %p238, %p239
    %s242 = sadd.s32 %s241, 1
    %p245 = scmp.eq.s32.totalorder %s18, 1
    %p246 = scmp.ne.s32.totalorder %s241, %s243
    %p247 = scmp.eq.s32.totalorder %s18, 0
    %p248 = por %p246, %p247
    %p249 = scmp.ne.s32.totalorder %s241, %s243
    %p250 = scmp.eq.s32.totalorder %s23, 1
    %p251 = por %p249, %p250
    %p252 = scmp.ne.s32.totalorder %s243, %s244
    %p253 = scmp.eq.s32.totalorder %s23, 0
    %p254 = por %p252, %p253
    %p255 = scmp.ne.s32.totalorder %s243, %s244
    %p256 = scmp.eq.s32.totalorder %s24, 1
    %p257 = por %p255, %p256
    %p259 = scmp.ne.s32.totalorder %s244, %s258
    %p260 = scmp.eq.s32.totalorder %s24, 0
    %p261 = por %p259, %p260
    %s263 = sadd.s32 %s262, 1
    %p266 = scmp.eq.s32.totalorder %s18, 1
    %p267 = scmp.ne.s32.totalorder %s262, %s264
    %p268 = scmp.eq.s32.totalorder %s18, 0
    %p269 = por %p267, %p268
    %p270 = scmp.ne.s32.totalorder %s262, %s264
    %p271 = scmp.eq.s32.totalorder %s23, 1
    %p272 = por %p270, %p271
    %p273 = scmp.ne.s32.totalorder %s264, %s265
    %p274 = scmp.eq.s32.totalorder %s23, 0
    %p275 = por %p273, %p274
    %p276 = scmp.ne.s32.totalorder %s264, %s265
    %p277 = scmp.eq.s32.totalorder %s24, 1
    %p278 = por %p276, %p277
    %p280 = scmp.ne.s32.totalorder %s265, %s279
    %p281 = scmp.eq.s32.totalorder %s24, 0
    %p282 = por %p280, %p281
    %s283 = ssub.s32 %s18, %s25
    %p284 = scmp.eq.s32.totalorder %s283, 0
    %s286 = sadd.s32 %s285, 1
    %s287 = scalar_select %p284, %s285, %s286
    %p290 = pneg %p284
    %p291 = scmp.eq.s32.totalorder %s18, 1
    %p292 = por %p290, %p291
    %p293 = scmp.ne.s32.totalorder %s285, %s288
    %p294 = scmp.eq.s32.totalorder %s18, 0
    %p295 = por %p293, %p294
    %p296 = scmp.ne.s32.totalorder %s285, %s288
    %p297 = scmp.eq.s32.totalorder %s23, 1
    %p298 = por %p296, %p297
    %p299 = scmp.ne.s32.totalorder %s288, %s289
    %p300 = scmp.eq.s32.totalorder %s23, 0
    %p301 = por %p299, %p300
    %p302 = scmp.ne.s32.totalorder %s288, %s289
    %p303 = scmp.eq.s32.totalorder %s24, 1
    %p304 = por %p302, %p303
    %p306 = scmp.ne.s32.totalorder %s289, %s305
    %p307 = scmp.eq.s32.totalorder %s24, 0
    %p308 = por %p306, %p307
    %p309 = scmp.le.s32.totalorder 1, %s18
    %p310 = scmp.lt.s32.totalorder %s18, 3
    %p311 = pnand %p309, %p310
    %p312 = pneg %p311
    // Predicated region
    $region9: #{_lambda_.1} parent=5 // pred_check
      _
    $region10: #{_lambda_.1} parent=5 // pred_check_branch
      %314 = sbr.rel (%p311) target = $region12
    $region11: #{_lambda_.1} parent=5 // pred_region
      %s315 = ssub.s32 %s18, 1
      // Predicated region
      $region13: #{_lambda_.1} parent=11 // pred_check
        %p316 = pneg %p65
      $region14: #{_lambda_.1} parent=11 // pred_check_branch
        %318 = sbr.rel (%p316) target = $region16
      $region15: #{_lambda_.1} parent=11 // pred_region
        _
      $region16: #{_lambda_.1} parent=11 // pred_fallthru
        _
      // Predicated region
      $region17: #{_lambda_.1} parent=11 // pred_check
        %p319 = pneg %p86
      $region18: #{_lambda_.1} parent=11 // pred_check_branch
        %321 = sbr.rel (%p319) target = $region20
      $region19: #{_lambda_.1} parent=11 // pred_region
        _
      $region20: #{_lambda_.1} parent=11 // pred_fallthru
        _
      // Predicated region
      $region21: #{_lambda_.1} parent=11 // pred_check
        %p322 = pneg %p107
      $region22: #{_lambda_.1} parent=11 // pred_check_branch
        %324 = sbr.rel (%p322) target = $region24
      $region23: #{_lambda_.1} parent=11 // pred_region
        _
      $region24: #{_lambda_.1} parent=11 // pred_fallthru
        _
      // Predicated region
      $region25: #{_lambda_.1} parent=11 // pred_check
        %p325 = pneg %p128
      $region26: #{_lambda_.1} parent=11 // pred_check_branch
        %327 = sbr.rel (%p325) target = $region28
      $region27: #{_lambda_.1} parent=11 // pred_region
        _
      $region28: #{_lambda_.1} parent=11 // pred_fallthru
        _
      // Predicated region
      $region29: #{_lambda_.1} parent=11 // pred_check
        %p328 = pneg %p149
      $region30: #{_lambda_.1} parent=11 // pred_check_branch
        %330 = sbr.rel (%p328) target = $region32
      $region31: #{_lambda_.1} parent=11 // pred_region
        _
      $region32: #{_lambda_.1} parent=11 // pred_fallthru
        _
      // Predicated region
      $region33: #{_lambda_.1} parent=11 // pred_check
        %p331 = pneg %p170
      $region34: #{_lambda_.1} parent=11 // pred_check_branch
        %333 = sbr.rel (%p331) target = $region36
      $region35: #{_lambda_.1} parent=11 // pred_region
        _
      $region36: #{_lambda_.1} parent=11 // pred_fallthru
        _
      // Predicated region
      $region37: #{_lambda_.1} parent=11 // pred_check
        %p334 = pneg %p191
      $region38: #{_lambda_.1} parent=11 // pred_check_branch
        %336 = sbr.rel (%p334) target = $region40
      $region39: #{_lambda_.1} parent=11 // pred_region
        _
      $region40: #{_lambda_.1} parent=11 // pred_fallthru
        _
      // Predicated region
      $region41: #{_lambda_.1} parent=11 // pred_check
        %p337 = pneg %p212
      $region42: #{_lambda_.1} parent=11 // pred_check_branch
        %339 = sbr.rel (%p337) target = $region44
      $region43: #{_lambda_.1} parent=11 // pred_region
        _
      $region44: #{_lambda_.1} parent=11 // pred_fallthru
        _
      // Predicated region
      $region45: #{_lambda_.1} parent=11 // pred_check
        %p340 = pneg %p233
      $region46: #{_lambda_.1} parent=11 // pred_check_branch
        %342 = sbr.rel (%p340) target = $region48
      $region47: #{_lambda_.1} parent=11 // pred_region
        _
      $region48: #{_lambda_.1} parent=11 // pred_fallthru
        _
      // Predicated region
      $region49: #{_lambda_.1} parent=11 // pred_check
        %p343 = pneg %p254
      $region50: #{_lambda_.1} parent=11 // pred_check_branch
        %345 = sbr.rel (%p343) target = $region52
      $region51: #{_lambda_.1} parent=11 // pred_region
        _
      $region52: #{_lambda_.1} parent=11 // pred_fallthru
        _
      // Predicated region
      $region53: #{_lambda_.1} parent=11 // pred_check
        %p346 = pneg %p275
      $region54: #{_lambda_.1} parent=11 // pred_check_branch
        %348 = sbr.rel (%p346) target = $region56
      $region55: #{_lambda_.1} parent=11 // pred_region
        _
      $region56: #{_lambda_.1} parent=11 // pred_fallthru
        _
    $region12: #{_lambda_.1} parent=5 // pred_fallthru
      _
    %p349 = scmp.lt.s32.totalorder %s18, 2
    // Predicated region
    $region57: #{_lambda_.1} parent=5 // pred_check
      %p350 = pneg %p349
    $region58: #{_lambda_.1} parent=5 // pred_check_branch
      %352 = sbr.rel (%p350) target = $region60
    $region59: #{_lambda_.1} parent=5 // pred_region
      // Predicated region
      $region61: #{_lambda_.1} parent=59 // pred_check
        %p353 = pneg %p38
      $region62: #{_lambda_.1} parent=59 // pred_check_branch
        %355 = sbr.rel (%p353) target = $region64
      $region63: #{_lambda_.1} parent=59 // pred_region
        %p356 = scmp.lt.s32.totalorder %s18, 1
        %s357 = scalar_select %p356, %s18, 1
        %s358 = smul.addr %s357, 33
        %s359 = smul.addr %s358, 8
        %s360 = scalar_lea.vmem %s0, %s359
      $region64: #{_lambda_.1} parent=59 // pred_fallthru
        _
    $region60: #{_lambda_.1} parent=5 // pred_fallthru
      _
    %p361 = scmp.le.s32.totalorder 1, %s18
    %p362 = scmp.lt.s32.totalorder %s18, 3
    %p363 = pnand %p361, %p362
    %p364 = pneg %p363
    // Predicated region
    $region65: #{_lambda_.1} parent=5 // pred_check
      _
    $region66: #{_lambda_.1} parent=5 // pred_check_branch
      %366 = sbr.rel (%p363) target = $region68
    $region67: #{_lambda_.1} parent=5 // pred_region
      %s367 = ssub.s32 %s18, 1
      %p368 = scmp.lt.s32.totalorder %s23, 1
      %s369 = scalar_select %p368, %s23, 1
      %s370 = smul.addr %s369, 33
      %s371 = smul.addr %s370, 8
      %s372 = scalar_lea.vmem %s0, %s371
      %p373 = pneg %p44
      %p374 = pneg %p41
      %p375 = pneg %p65
      %p376 = pneg %p62
      %p377 = pneg %p86
      %p378 = pneg %p83
      %p379 = pneg %p107
      %p380 = pneg %p104
      %p381 = pneg %p128
      %p382 = pneg %p125
      %p383 = pneg %p149
      %p384 = pneg %p146
      %p385 = pneg %p170
      %p386 = pneg %p167
      %p387 = pneg %p191
      %p388 = pneg %p188
      %p389 = pneg %p212
      %p390 = pneg %p209
      %p391 = pneg %p233
      %p392 = pneg %p230
      %p393 = pneg %p254
      %p394 = pneg %p251
      %p395 = pneg %p275
      %p396 = pneg %p272
      %p397 = pneg %p301
      %p398 = pneg %p298
      %p399 = scmp.lt.s32.totalorder %s23, 1
      %s400 = scalar_select %p399, %s23, 1
      %s401 = smul.addr %s400, 8
      %s402 = scalar_lea.vmem %s12, %s401
      %p403 = scmp.lt.s32.totalorder %s23, 1
      %s404 = scalar_select %p403, %s23, 1
      %s405 = smul.addr %s404, 33
      %s406 = smul.addr %s405, 8
      %s407 = scalar_lea.vmem %s0, %s406
      %p408 = scmp.lt.s32.totalorder %s23, 1
      %s409 = scalar_select %p408, %s23, 1
      %s410 = smul.addr %s409, 8
      %s411 = scalar_lea.vmem %s12, %s410
      %v412 = vld [vmem:[%s407] sm:$0xff]
      %v413 = vld [vmem:[%s407 + $0x8] sm:$0xff]
      %v414 = vld [vmem:[%s407 + $0x10] sm:$0xff]
      %v415 = vld [vmem:[%s407 + $0x18] sm:$0xff]
      %v416 = vld [vmem:[%s407 + $0x20] sm:$0xff]
      %v417 = vld [vmem:[%s407 + $0x28] sm:$0xff]
      %v418 = vld [vmem:[%s407 + $0x30] sm:$0xff]
      %v419 = vld [vmem:[%s407 + $0x38] sm:$0xff]
      %v420 = vld [vmem:[%s407 + $0x40] sm:$0xff]
      %v421 = vld [vmem:[%s407 + $0x48] sm:$0xff]
      %v422 = vld [vmem:[%s407 + $0x50] sm:$0xff]
      %v423 = vld [vmem:[%s407 + $0x58] sm:$0xff]
      %v424 = vld [vmem:[%s407 + $0x60] sm:$0xff]
      %v425 = vld [vmem:[%s407 + $0x68] sm:$0xff]
      %v426 = vld [vmem:[%s407 + $0x1] sm:$0xff]
      %v427 = vld [vmem:[%s407 + $0x9] sm:$0xff]
      %v428 = vld [vmem:[%s407 + $0x11] sm:$0xff]
      %v429 = vld [vmem:[%s407 + $0x19] sm:$0xff]
      %v430 = vld [vmem:[%s407 + $0x21] sm:$0xff]
      %v431 = vld [vmem:[%s407 + $0x29] sm:$0xff]
      %v432 = vld [vmem:[%s407 + $0x31] sm:$0xff]
      %v433 = vld [vmem:[%s407 + $0x39] sm:$0xff]
      %v434 = vld [vmem:[%s407 + $0x41] sm:$0xff]
      %v435 = vld [vmem:[%s407 + $0x49] sm:$0xff]
      %v436 = vld [vmem:[%s407 + $0x51] sm:$0xff]
      %v437 = vld [vmem:[%s407 + $0x59] sm:$0xff]
      %v438 = vld [vmem:[%s407 + $0x61] sm:$0xff]
      %v439 = vld [vmem:[%s407 + $0x69] sm:$0xff]
      %440 = vrot.lane.b32.xlu0 %v426, 4
      %v441 = vpop.permute.xlu0 %440
      %442 = vrot.lane.b32.xlu0 %v427, 4
      %v443 = vpop.permute.xlu0 %442
      %444 = vrot.lane.b32.xlu0 %v428, 4
      %v445 = vpop.permute.xlu0 %444
      %446 = vrot.lane.b32.xlu0 %v429, 4
      %v447 = vpop.permute.xlu0 %446
      %448 = vrot.lane.b32.xlu0 %v430, 4
      %v449 = vpop.permute.xlu0 %448
      %450 = vrot.lane.b32.xlu0 %v431, 4
      %v451 = vpop.permute.xlu0 %450
      %452 = vrot.lane.b32.xlu0 %v432, 4
      %v453 = vpop.permute.xlu0 %452
      %454 = vrot.lane.b32.xlu0 %v433, 4
      %v455 = vpop.permute.xlu0 %454
      %456 = vrot.lane.b32.xlu0 %v434, 4
      %v457 = vpop.permute.xlu0 %456
      %458 = vrot.lane.b32.xlu0 %v435, 4
      %v459 = vpop.permute.xlu0 %458
      %460 = vrot.lane.b32.xlu0 %v436, 4
      %v461 = vpop.permute.xlu0 %460
      %462 = vrot.lane.b32.xlu0 %v437, 4
      %v463 = vpop.permute.xlu0 %462
      %464 = vrot.lane.b32.xlu0 %v438, 4
      %v465 = vpop.permute.xlu0 %464
      %466 = vrot.lane.b32.xlu0 %v439, 4
      %v467 = vpop.permute.xlu0 %466
      %v468 = vadd.f32 %v412, %v441
      %v469 = vadd.f32 %v413, %v443
      %v470 = vadd.f32 %v414, %v445
      %v471 = vadd.f32 %v415, %v447
      %v472 = vadd.f32 %v416, %v449
      %v473 = vadd.f32 %v417, %v451
      %v474 = vadd.f32 %v418, %v453
      %v475 = vadd.f32 %v419, %v455
      %v476 = vadd.f32 %v420, %v457
      %v477 = vadd.f32 %v421, %v459
      %v478 = vadd.f32 %v422, %v461
      %v479 = vadd.f32 %v423, %v463
      %v480 = vadd.f32 %v424, %v465
      %v481 = vadd.f32 %v425, %v467
      %v482 = vld [vmem:[%s407 + $0x2] sm:$0xff]
      %v483 = vld [vmem:[%s407 + $0xa] sm:$0xff]
      %v484 = vld [vmem:[%s407 + $0x12] sm:$0xff]
      %v485 = vld [vmem:[%s407 + $0x1a] sm:$0xff]
      %v486 = vld [vmem:[%s407 + $0x22] sm:$0xff]
      %v487 = vld [vmem:[%s407 + $0x2a] sm:$0xff]
      %v488 = vld [vmem:[%s407 + $0x32] sm:$0xff]
      %v489 = vld [vmem:[%s407 + $0x3a] sm:$0xff]
      %v490 = vld [vmem:[%s407 + $0x42] sm:$0xff]
      %v491 = vld [vmem:[%s407 + $0x4a] sm:$0xff]
      %v492 = vld [vmem:[%s407 + $0x52] sm:$0xff]
      %v493 = vld [vmem:[%s407 + $0x5a] sm:$0xff]
      %v494 = vld [vmem:[%s407 + $0x62] sm:$0xff]
      %v495 = vld [vmem:[%s407 + $0x6a] sm:$0xff]
      %496 = vrot.lane.b32.xlu0 %v482, 8
      %v497 = vpop.permute.xlu0 %496
      %498 = vrot.lane.b32.xlu0 %v483, 8
      %v499 = vpop.permute.xlu0 %498
      %500 = vrot.lane.b32.xlu0 %v484, 8
      %v501 = vpop.permute.xlu0 %500
      %502 = vrot.lane.b32.xlu0 %v485, 8
      %v503 = vpop.permute.xlu0 %502
      %504 = vrot.lane.b32.xlu0 %v486, 8
      %v505 = vpop.permute.xlu0 %504
      %506 = vrot.lane.b32.xlu0 %v487, 8
      %v507 = vpop.permute.xlu0 %506
      %508 = vrot.lane.b32.xlu0 %v488, 8
      %v509 = vpop.permute.xlu0 %508
      %510 = vrot.lane.b32.xlu0 %v489, 8
      %v511 = vpop.permute.xlu0 %510
      %512 = vrot.lane.b32.xlu0 %v490, 8
      %v513 = vpop.permute.xlu0 %512
      %514 = vrot.lane.b32.xlu0 %v491, 8
      %v515 = vpop.permute.xlu0 %514
      %516 = vrot.lane.b32.xlu0 %v492, 8
      %v517 = vpop.permute.xlu0 %516
      %518 = vrot.lane.b32.xlu0 %v493, 8
      %v519 = vpop.permute.xlu0 %518
      %520 = vrot.lane.b32.xlu0 %v494, 8
      %v521 = vpop.permute.xlu0 %520
      %522 = vrot.lane.b32.xlu0 %v495, 8
      %v523 = vpop.permute.xlu0 %522
      %v524 = vadd.f32 %v468, %v497
      %v525 = vadd.f32 %v469, %v499
      %v526 = vadd.f32 %v470, %v501
      %v527 = vadd.f32 %v471, %v503
      %v528 = vadd.f32 %v472, %v505
      %v529 = vadd.f32 %v473, %v507
      %v530 = vadd.f32 %v474, %v509
      %v531 = vadd.f32 %v475, %v511
      %v532 = vadd.f32 %v476, %v513
      %v533 = vadd.f32 %v477, %v515
      %v534 = vadd.f32 %v478, %v517
      %v535 = vadd.f32 %v479, %v519
      %v536 = vadd.f32 %v480, %v521
      %v537 = vadd.f32 %v481, %v523
      %v538 = vld [vmem:[%s407 + $0x70] sm:$0xff]
      %v539 = vld [vmem:[%s407 + $0x78] sm:$0xff]
      %540 = vrot.lane.b32.xlu0 %v414, 12
      %v541 = vpop.permute.xlu0 %540
      %542 = vrot.lane.b32.xlu0 %v415, 12
      %v543 = vpop.permute.xlu0 %542
      %544 = vrot.lane.b32.xlu0 %v416, 12
      %v545 = vpop.permute.xlu0 %544
      %546 = vrot.lane.b32.xlu0 %v417, 12
      %v547 = vpop.permute.xlu0 %546
      %548 = vrot.lane.b32.xlu0 %v418, 12
      %v549 = vpop.permute.xlu0 %548
      %550 = vrot.lane.b32.xlu0 %v419, 12
      %v551 = vpop.permute.xlu0 %550
      %552 = vrot.lane.b32.xlu0 %v420, 12
      %v553 = vpop.permute.xlu0 %552
      %554 = vrot.lane.b32.xlu0 %v421, 12
      %v555 = vpop.permute.xlu0 %554
      %556 = vrot.lane.b32.xlu0 %v422, 12
      %v557 = vpop.permute.xlu0 %556
      %558 = vrot.lane.b32.xlu0 %v423, 12
      %v559 = vpop.permute.xlu0 %558
      %560 = vrot.lane.b32.xlu0 %v424, 12
      %v561 = vpop.permute.xlu0 %560
      %562 = vrot.lane.b32.xlu0 %v425, 12
      %v563 = vpop.permute.xlu0 %562
      %564 = vrot.lane.b32.xlu0 %v538, 12
      %v565 = vpop.permute.xlu0 %564
      %566 = vrot.lane.b32.xlu0 %v539, 12
      %v567 = vpop.permute.xlu0 %566
      %v568 = vadd.f32 %v524, %v541
      %v569 = vadd.f32 %v525, %v543
      %v570 = vadd.f32 %v526, %v545
      %v571 = vadd.f32 %v527, %v547
      %v572 = vadd.f32 %v528, %v549
      %v573 = vadd.f32 %v529, %v551
      %v574 = vadd.f32 %v530, %v553
      %v575 = vadd.f32 %v531, %v555
      %v576 = vadd.f32 %v532, %v557
      %v577 = vadd.f32 %v533, %v559
      %v578 = vadd.f32 %v534, %v561
      %v579 = vadd.f32 %v535, %v563
      %v580 = vadd.f32 %v536, %v565
      %v581 = vadd.f32 %v537, %v567
      %v582 = vld [vmem:[%s407 + $0x71] sm:$0xff]
      %v583 = vld [vmem:[%s407 + $0x79] sm:$0xff]
      %584 = vrot.lane.b32.xlu0 %v428, 16
      %v585 = vpop.permute.xlu0 %584
      %586 = vrot.lane.b32.xlu0 %v429, 16
      %v587 = vpop.permute.xlu0 %586
      %588 = vrot.lane.b32.xlu0 %v430, 16
      %v589 = vpop.permute.xlu0 %588
      %590 = vrot.lane.b32.xlu0 %v431, 16
      %v591 = vpop.permute.xlu0 %590
      %592 = vrot.lane.b32.xlu0 %v432, 16
      %v593 = vpop.permute.xlu0 %592
      %594 = vrot.lane.b32.xlu0 %v433, 16
      %v595 = vpop.permute.xlu0 %594
      %596 = vrot.lane.b32.xlu0 %v434, 16
      %v597 = vpop.permute.xlu0 %596
      %598 = vrot.lane.b32.xlu0 %v435, 16
      %v599 = vpop.permute.xlu0 %598
      %600 = vrot.lane.b32.xlu0 %v436, 16
      %v601 = vpop.permute.xlu0 %600
      %602 = vrot.lane.b32.xlu0 %v437, 16
      %v603 = vpop.permute.xlu0 %602
      %604 = vrot.lane.b32.xlu0 %v438, 16
      %v605 = vpop.permute.xlu0 %604
      %606 = vrot.lane.b32.xlu0 %v439, 16
      %v607 = vpop.permute.xlu0 %606
      %608 = vrot.lane.b32.xlu0 %v582, 16
      %v609 = vpop.permute.xlu0 %608
      %610 = vrot.lane.b32.xlu0 %v583, 16
      %v611 = vpop.permute.xlu0 %610
      %v612 = vadd.f32 %v568, %v585
      %v613 = vadd.f32 %v569, %v587
      %v614 = vadd.f32 %v570, %v589
      %v615 = vadd.f32 %v571, %v591
      %v616 = vadd.f32 %v572, %v593
      %v617 = vadd.f32 %v573, %v595
      %v618 = vadd.f32 %v574, %v597
      %v619 = vadd.f32 %v575, %v599
      %v620 = vadd.f32 %v576, %v601
      %v621 = vadd.f32 %v577, %v603
      %v622 = vadd.f32 %v578, %v605
      %v623 = vadd.f32 %v579, %v607
      %v624 = vadd.f32 %v580, %v609
      %v625 = vadd.f32 %v581, %v611
      %v626 = vld [vmem:[%s407 + $0x72] sm:$0xff]
      %v627 = vld [vmem:[%s407 + $0x7a] sm:$0xff]
      %628 = vrot.lane.b32.xlu0 %v484, 20
      %v629 = vpop.permute.xlu0 %628
      %630 = vrot.lane.b32.xlu0 %v485, 20
      %v631 = vpop.permute.xlu0 %630
      %632 = vrot.lane.b32.xlu0 %v486, 20
      %v633 = vpop.permute.xlu0 %632
      %634 = vrot.lane.b32.xlu0 %v487, 20
      %v635 = vpop.permute.xlu0 %634
      %636 = vrot.lane.b32.xlu0 %v488, 20
      %v637 = vpop.permute.xlu0 %636
      %638 = vrot.lane.b32.xlu0 %v489, 20
      %v639 = vpop.permute.xlu0 %638
      %640 = vrot.lane.b32.xlu0 %v490, 20
      %v641 = vpop.permute.xlu0 %640
      %642 = vrot.lane.b32.xlu0 %v491, 20
      %v643 = vpop.permute.xlu0 %642
      %644 = vrot.lane.b32.xlu0 %v492, 20
      %v645 = vpop.permute.xlu0 %644
      %646 = vrot.lane.b32.xlu0 %v493, 20
      %v647 = vpop.permute.xlu0 %646
      %648 = vrot.lane.b32.xlu0 %v494, 20
      %v649 = vpop.permute.xlu0 %648
      %650 = vrot.lane.b32.xlu0 %v495, 20
      %v651 = vpop.permute.xlu0 %650
      %652 = vrot.lane.b32.xlu0 %v626, 20
      %v653 = vpop.permute.xlu0 %652
      %654 = vrot.lane.b32.xlu0 %v627, 20
      %v655 = vpop.permute.xlu0 %654
      %v656 = vadd.f32 %v612, %v629
      %v657 = vadd.f32 %v613, %v631
      %v658 = vadd.f32 %v614, %v633
      %v659 = vadd.f32 %v615, %v635
      %v660 = vadd.f32 %v616, %v637
      %v661 = vadd.f32 %v617, %v639
      %v662 = vadd.f32 %v618, %v641
      %v663 = vadd.f32 %v619, %v643
      %v664 = vadd.f32 %v620, %v645
      %v665 = vadd.f32 %v621, %v647
      %v666 = vadd.f32 %v622, %v649
      %v667 = vadd.f32 %v623, %v651
      %v668 = vadd.f32 %v624, %v653
      %v669 = vadd.f32 %v625, %v655
      %v670 = vld [vmem:[%s407 + $0x80] sm:$0xff]
      %v671 = vld [vmem:[%s407 + $0x88] sm:$0xff]
      %672 = vrot.lane.b32.xlu0 %v416, 24
      %v673 = vpop.permute.xlu0 %672
      %674 = vrot.lane.b32.xlu0 %v417, 24
      %v675 = vpop.permute.xlu0 %674
      %676 = vrot.lane.b32.xlu0 %v418, 24
      %v677 = vpop.permute.xlu0 %676
      %678 = vrot.lane.b32.xlu0 %v419, 24
      %v679 = vpop.permute.xlu0 %678
      %680 = vrot.lane.b32.xlu0 %v420, 24
      %v681 = vpop.permute.xlu0 %680
      %682 = vrot.lane.b32.xlu0 %v421, 24
      %v683 = vpop.permute.xlu0 %682
      %684 = vrot.lane.b32.xlu0 %v422, 24
      %v685 = vpop.permute.xlu0 %684
      %686 = vrot.lane.b32.xlu0 %v423, 24
      %v687 = vpop.permute.xlu0 %686
      %688 = vrot.lane.b32.xlu0 %v424, 24
      %v689 = vpop.permute.xlu0 %688
      %690 = vrot.lane.b32.xlu0 %v425, 24
      %v691 = vpop.permute.xlu0 %690
      %692 = vrot.lane.b32.xlu0 %v538, 24
      %v693 = vpop.permute.xlu0 %692
      %694 = vrot.lane.b32.xlu0 %v539, 24
      %v695 = vpop.permute.xlu0 %694
      %696 = vrot.lane.b32.xlu0 %v670, 24
      %v697 = vpop.permute.xlu0 %696
      %698 = vrot.lane.b32.xlu0 %v671, 24
      %v699 = vpop.permute.xlu0 %698
      %v700 = vadd.f32 %v656, %v673
      %v701 = vadd.f32 %v657, %v675
      %v702 = vadd.f32 %v658, %v677
      %v703 = vadd.f32 %v659, %v679
      %v704 = vadd.f32 %v660, %v681
      %v705 = vadd.f32 %v661, %v683
      %v706 = vadd.f32 %v662, %v685
      %v707 = vadd.f32 %v663, %v687
      %v708 = vadd.f32 %v664, %v689
      %v709 = vadd.f32 %v665, %v691
      %v710 = vadd.f32 %v666, %v693
      %v711 = vadd.f32 %v667, %v695
      %v712 = vadd.f32 %v668, %v697
      %v713 = vadd.f32 %v669, %v699
      %v714 = vld [vmem:[%s407 + $0x81] sm:$0xff]
      %v715 = vld [vmem:[%s407 + $0x89] sm:$0xff]
      %716 = vrot.lane.b32.xlu0 %v430, 28
      %v717 = vpop.permute.xlu0 %716
      %718 = vrot.lane.b32.xlu0 %v431, 28
      %v719 = vpop.permute.xlu0 %718
      %720 = vrot.lane.b32.xlu0 %v432, 28
      %v721 = vpop.permute.xlu0 %720
      %722 = vrot.lane.b32.xlu0 %v433, 28
      %v723 = vpop.permute.xlu0 %722
      %724 = vrot.lane.b32.xlu0 %v434, 28
      %v725 = vpop.permute.xlu0 %724
      %726 = vrot.lane.b32.xlu0 %v435, 28
      %v727 = vpop.permute.xlu0 %726
      %728 = vrot.lane.b32.xlu0 %v436, 28
      %v729 = vpop.permute.xlu0 %728
      %730 = vrot.lane.b32.xlu0 %v437, 28
      %v731 = vpop.permute.xlu0 %730
      %732 = vrot.lane.b32.xlu0 %v438, 28
      %v733 = vpop.permute.xlu0 %732
      %734 = vrot.lane.b32.xlu0 %v439, 28
      %v735 = vpop.permute.xlu0 %734
      %736 = vrot.lane.b32.xlu0 %v582, 28
      %v737 = vpop.permute.xlu0 %736
      %738 = vrot.lane.b32.xlu0 %v583, 28
      %v739 = vpop.permute.xlu0 %738
      %740 = vrot.lane.b32.xlu0 %v714, 28
      %v741 = vpop.permute.xlu0 %740
      %742 = vrot.lane.b32.xlu0 %v715, 28
      %v743 = vpop.permute.xlu0 %742
      %v744 = vadd.f32 %v700, %v717
      %v745 = vadd.f32 %v701, %v719
      %v746 = vadd.f32 %v702, %v721
      %v747 = vadd.f32 %v703, %v723
      %v748 = vadd.f32 %v704, %v725
      %v749 = vadd.f32 %v705, %v727
      %v750 = vadd.f32 %v706, %v729
      %v751 = vadd.f32 %v707, %v731
      %v752 = vadd.f32 %v708, %v733
      %v753 = vadd.f32 %v709, %v735
      %v754 = vadd.f32 %v710, %v737
      %v755 = vadd.f32 %v711, %v739
      %v756 = vadd.f32 %v712, %v741
      %v757 = vadd.f32 %v713, %v743
      %v758 = vld [vmem:[%s407 + $0x82] sm:$0xff]
      %v759 = vld [vmem:[%s407 + $0x8a] sm:$0xff]
      %760 = vrot.lane.b32.xlu0 %v486, 32
      %v761 = vpop.permute.xlu0 %760
      %762 = vrot.lane.b32.xlu0 %v487, 32
      %v763 = vpop.permute.xlu0 %762
      %764 = vrot.lane.b32.xlu0 %v488, 32
      %v765 = vpop.permute.xlu0 %764
      %766 = vrot.lane.b32.xlu0 %v489, 32
      %v767 = vpop.permute.xlu0 %766
      %768 = vrot.lane.b32.xlu0 %v490, 32
      %v769 = vpop.permute.xlu0 %768
      %770 = vrot.lane.b32.xlu0 %v491, 32
      %v771 = vpop.permute.xlu0 %770
      %772 = vrot.lane.b32.xlu0 %v492, 32
      %v773 = vpop.permute.xlu0 %772
      %774 = vrot.lane.b32.xlu0 %v493, 32
      %v775 = vpop.permute.xlu0 %774
      %776 = vrot.lane.b32.xlu0 %v494, 32
      %v777 = vpop.permute.xlu0 %776
      %778 = vrot.lane.b32.xlu0 %v495, 32
      %v779 = vpop.permute.xlu0 %778
      %780 = vrot.lane.b32.xlu0 %v626, 32
      %v781 = vpop.permute.xlu0 %780
      %782 = vrot.lane.b32.xlu0 %v627, 32
      %v783 = vpop.permute.xlu0 %782
      %784 = vrot.lane.b32.xlu0 %v758, 32
      %v785 = vpop.permute.xlu0 %784
      %786 = vrot.lane.b32.xlu0 %v759, 32
      %v787 = vpop.permute.xlu0 %786
      %v788 = vadd.f32 %v744, %v761
      %v789 = vadd.f32 %v745, %v763
      %v790 = vadd.f32 %v746, %v765
      %v791 = vadd.f32 %v747, %v767
      %v792 = vadd.f32 %v748, %v769
      %v793 = vadd.f32 %v749, %v771
      %v794 = vadd.f32 %v750, %v773
      %v795 = vadd.f32 %v751, %v775
      %v796 = vadd.f32 %v752, %v777
      %v797 = vadd.f32 %v753, %v779
      %v798 = vadd.f32 %v754, %v781
      %v799 = vadd.f32 %v755, %v783
      %v800 = vadd.f32 %v756, %v785
      %v801 = vadd.f32 %v757, %v787
      %v802 = vld [vmem:[%s1] sm:$0xff]
      %v803 = vld [vmem:[%s1 + $0x8] sm:$0xff]
      %v804 = vld [vmem:[%s1 + $0x10] sm:$0xff]
      %v805 = vld [vmem:[%s1 + $0x18] sm:$0xff]
      %v806 = vld [vmem:[%s1 + $0x20] sm:$0xff]
      %v807 = vld [vmem:[%s1 + $0x28] sm:$0xff]
      %v808 = vld [vmem:[%s1 + $0x30] sm:$0xff]
      %v809 = vld [vmem:[%s1 + $0x38] sm:$0xff]
      %v810 = vld [vmem:[%s1 + $0x40] sm:$0xff]
      %v811 = vld [vmem:[%s1 + $0x48] sm:$0xff]
      %v812 = vld [vmem:[%s1 + $0x50] sm:$0xff]
      %v813 = vld [vmem:[%s1 + $0x58] sm:$0xff]
      %v814 = vld [vmem:[%s1 + $0x60] sm:$0xff]
      %v815 = vld [vmem:[%s1 + $0x68] sm:$0xff]
      %v816 = vld [vmem:[%s1 + $0x70] sm:$0xff]
      %v817 = vld [vmem:[%s1 + $0x78] sm:$0xff]
      %v818 = vld [vmem:[%s2] sm:$0x1]
      %v820 = vlaneseq
      %v821 = vshrl.u32 %v820, 7
      %v822 = vsub.s32 0, %v821
      %v823 = vrot.slane %v818, %v822
      %825 = vmatprep.subr.mxu0 0.0
      %826 = vmatpush1.msra.mxu0 %v817
      %827 = vmatprep.subr.mxu0 0.0
      %828 = vmatpush1.msra.mxu0 %v816
      %829 = vmatprep.subr.mxu0 0.0
      %830 = vmatpush1.msra.mxu0 %v815
      %831 = vmatprep.subr.mxu0 0.0
      %832 = vmatpush1.msra.mxu0 %v814
      %833 = vmatprep.subr.mxu0 0.0
      %834 = vmatpush1.msra.mxu0 %v813
      %835 = vmatprep.subr.mxu0 0.0
      %836 = vmatpush1.msra.mxu0 %v812
      %837 = vmatprep.subr.mxu0 0.0
      %838 = vmatpush1.msra.mxu0 %v811
      %839 = vmatprep.subr.mxu0 0.0
      %840 = vmatpush1.msra.mxu0 %v810
      %841 = vmatprep.subr.mxu0 0.0
      %842 = vmatpush1.msra.mxu0 %v809
      %843 = vmatprep.subr.mxu0 0.0
      %844 = vmatpush1.msra.mxu0 %v808
      %845 = vmatprep.subr.mxu0 0.0
      %846 = vmatpush1.msra.mxu0 %v807
      %847 = vmatprep.subr.mxu0 0.0
      %848 = vmatpush1.msra.mxu0 %v806
      %849 = vmatprep.subr.mxu0 0.0
      %850 = vmatpush1.msra.mxu0 %v805
      %851 = vmatprep.subr.mxu0 0.0
      %852 = vmatpush1.msra.mxu0 %v804
      %853 = vmatprep.subr.mxu0 0.0
      %854 = vmatpush1.msra.mxu0 %v803
      %855 = vmatprep.subr.mxu0 0.0
      %856 = vmatpush1.msra.mxu0 %v802
      %857 = vmatprep.subr.mxu0 0.0
      %858 = vmatpush2.msra.mxu0 0.0
      %859 = vmatprep.subr.mxu0 0.0
      %860 = vmatpush2.msra.mxu0 0.0
      %861 = vmatprep.subr.mxu0 0.0
      %862 = vmatpush2.msra.mxu0 0.0
      %863 = vmatprep.subr.mxu0 0.0
      %864 = vmatpush2.msra.mxu0 0.0
      %865 = vmatprep.subr.mxu0 0.0
      %866 = vmatpush2.msra.mxu0 0.0
      %867 = vmatprep.subr.mxu0 0.0
      %868 = vmatpush2.msra.mxu0 0.0
      %869 = vmatprep.subr.mxu0 0.0
      %870 = vmatpush2.msra.mxu0 0.0
      %871 = vmatprep.subr.mxu0 0.0
      %872 = vmatpush2.msra.mxu0 0.0
      %873 = vmatprep.subr.mxu0 0.0
      %874 = vmatpush2.msra.mxu0 0.0
      %875 = vmatprep.subr.mxu0 0.0
      %876 = vmatpush2.msra.mxu0 0.0
      %877 = vmatprep.subr.mxu0 0.0
      %878 = vmatpush2.msra.mxu0 0.0
      %879 = vmatprep.subr.mxu0 0.0
      %880 = vmatpush2.msra.mxu0 0.0
      %881 = vmatprep.subr.mxu0 0.0
      %882 = vmatpush2.msra.mxu0 0.0
      %883 = vmatprep.subr.mxu0 0.0
      %884 = vmatpush2.msra.mxu0 0.0
      %885 = vmatprep.subr.mxu0 0.0
      %886 = vmatpush2.msra.mxu0 0.0
      %887 = vmatprep.subr.mxu0 0.0
      %888 = vmatpush2.msra.mxu0 0.0
      %889 = vmatprep.mubr.f32.mxu0 0.0
      %890 = vmatmul.mubr.f32.gmra.mxu0 %v788
      %v891 = vpop.f32.mrf.mxu0
      %v892 = vadd.f32 %v823, %v891
      %v893 = vpop.f32.mrf.mxu0
      %894 = vmatprep.mubr.f32.mxu0 0.0
      %895 = vmatmul.mubr.f32.gmra.mxu0 %v789
      %v896 = vpop.f32.mrf.mxu0
      %v897 = vadd.f32 %v823, %v896
      %v898 = vpop.f32.mrf.mxu0
      %899 = vmatprep.mubr.f32.mxu0 0.0
      %900 = vmatmul.mubr.f32.gmra.mxu0 %v790
      %v901 = vpop.f32.mrf.mxu0
      %v902 = vadd.f32 %v823, %v901
      %v903 = vpop.f32.mrf.mxu0
      %904 = vmatprep.mubr.f32.mxu0 0.0
      %905 = vmatmul.mubr.f32.gmra.mxu0 %v791
      %v906 = vpop.f32.mrf.mxu0
      %v907 = vadd.f32 %v823, %v906
      %v908 = vpop.f32.mrf.mxu0
      %909 = vmatprep.mubr.f32.mxu0 0.0
      %910 = vmatmul.mubr.f32.gmra.mxu0 %v792
      %v911 = vpop.f32.mrf.mxu0
      %v912 = vadd.f32 %v823, %v911
      %v913 = vpop.f32.mrf.mxu0
      %914 = vmatprep.mubr.f32.mxu0 0.0
      %915 = vmatmul.mubr.f32.gmra.mxu0 %v793
      %v916 = vpop.f32.mrf.mxu0
      %v917 = vadd.f32 %v823, %v916
      %v918 = vpop.f32.mrf.mxu0
      %919 = vmatprep.mubr.f32.mxu0 0.0
      %920 = vmatmul.mubr.f32.gmra.mxu0 %v794
      %v921 = vpop.f32.mrf.mxu0
      %v922 = vadd.f32 %v823, %v921
      %v923 = vpop.f32.mrf.mxu0
      %924 = vmatprep.mubr.f32.mxu0 0.0
      %925 = vmatmul.mubr.f32.gmra.mxu0 %v795
      %v926 = vpop.f32.mrf.mxu0
      %v927 = vadd.f32 %v823, %v926
      %v928 = vpop.f32.mrf.mxu0
      %929 = vmatprep.mubr.f32.mxu0 0.0
      %930 = vmatmul.mubr.f32.gmra.mxu0 %v796
      %v931 = vpop.f32.mrf.mxu0
      %v932 = vadd.f32 %v823, %v931
      %v933 = vpop.f32.mrf.mxu0
      %934 = vmatprep.mubr.f32.mxu0 0.0
      %935 = vmatmul.mubr.f32.gmra.mxu0 %v797
      %v936 = vpop.f32.mrf.mxu0
      %v937 = vadd.f32 %v823, %v936
      %v938 = vpop.f32.mrf.mxu0
      %939 = vmatprep.mubr.f32.mxu0 0.0
      %940 = vmatmul.mubr.f32.gmra.mxu0 %v798
      %v941 = vpop.f32.mrf.mxu0
      %v942 = vadd.f32 %v823, %v941
      %v943 = vpop.f32.mrf.mxu0
      %944 = vmatprep.mubr.f32.mxu0 0.0
      %945 = vmatmul.mubr.f32.gmra.mxu0 %v799
      %v946 = vpop.f32.mrf.mxu0
      %v947 = vadd.f32 %v823, %v946
      %v948 = vpop.f32.mrf.mxu0
      %949 = vmatprep.mubr.f32.mxu0 0.0
      %950 = vmatmul.mubr.f32.gmra.mxu0 %v800
      %v951 = vpop.f32.mrf.mxu0
      %v952 = vadd.f32 %v823, %v951
      %v953 = vpop.f32.mrf.mxu0
      %954 = vmatprep.mubr.f32.mxu0 0.0
      %955 = vmatmul.mubr.f32.gmra.mxu0 %v801
      %v956 = vpop.f32.mrf.mxu0
      %v957 = vadd.f32 %v823, %v956
      %v958 = vpop.f32.mrf.mxu0
      %959 = vdwg.mxu0
      %v960 = vmax.f32 %v892, 0.0
      %v961 = vmax.f32 %v897, 0.0
      %v962 = vmax.f32 %v902, 0.0
      %v963 = vmax.f32 %v907, 0.0
      %v964 = vmax.f32 %v912, 0.0
      %v965 = vmax.f32 %v917, 0.0
      %v966 = vmax.f32 %v922, 0.0
      %v967 = vmax.f32 %v927, 0.0
      %v968 = vmax.f32 %v932, 0.0
      %v969 = vmax.f32 %v937, 0.0
      %v970 = vmax.f32 %v942, 0.0
      %v971 = vmax.f32 %v947, 0.0
      %v972 = vmax.f32 %v952, 0.0
      %v973 = vmax.f32 %v957, 0.0
      %974 = vst [vmem:[#allocation2] sm:$0xff] %v960
      %975 = vst [vmem:[#allocation2 + $0x8] sm:$0xff] %v961
      %976 = vst [vmem:[#allocation2 + $0x10] sm:$0xff] %v962
      %977 = vst [vmem:[#allocation2 + $0x18] sm:$0xff] %v963
      %978 = vst [vmem:[#allocation2 + $0x20] sm:$0xff] %v964
      %979 = vst [vmem:[#allocation2 + $0x28] sm:$0xff] %v965
      %980 = vst [vmem:[#allocation2 + $0x30] sm:$0xff] %v966
      %981 = vst [vmem:[#allocation2 + $0x38] sm:$0xff] %v967
      %982 = vst [vmem:[#allocation2 + $0x40] sm:$0xff] %v968
      %983 = vst [vmem:[#allocation2 + $0x48] sm:$0xff] %v969
      %984 = vst [vmem:[#allocation2 + $0x50] sm:$0xff] %v970
      %985 = vst [vmem:[#allocation2 + $0x58] sm:$0xff] %v971
      %986 = vst [vmem:[#allocation2 + $0x60] sm:$0xff] %v972
      %987 = vst [vmem:[#allocation2 + $0x68] sm:$0xff] %v973
      %v988 = vld [vmem:[%s407 + $0x70] sm:$0xff]
      %v989 = vld [vmem:[%s407 + $0x78] sm:$0xff]
      %v990 = vld [vmem:[%s407 + $0x80] sm:$0xff]
      %v991 = vld [vmem:[%s407 + $0x88] sm:$0xff]
      %v992 = vld [vmem:[%s407 + $0x90] sm:$0xff]
      %v993 = vld [vmem:[%s407 + $0x98] sm:$0xff]
      %v994 = vld [vmem:[%s407 + $0xa0] sm:$0xff]
      %v995 = vld [vmem:[%s407 + $0xa8] sm:$0xff]
      %v996 = vld [vmem:[%s407 + $0xb0] sm:$0xff]
      %v997 = vld [vmem:[%s407 + $0xb8] sm:$0xff]
      %v998 = vld [vmem:[%s407 + $0xc0] sm:$0xff]
      %v999 = vld [vmem:[%s407 + $0xc8] sm:$0xff]
      %v1000 = vld [vmem:[%s407 + $0xd0] sm:$0xff]
      %v1001 = vld [vmem:[%s407 + $0xd8] sm:$0xff]
      %v1002 = vld [vmem:[%s407 + $0x71] sm:$0xff]
      %v1003 = vld [vmem:[%s407 + $0x79] sm:$0xff]
      %v1004 = vld [vmem:[%s407 + $0x81] sm:$0xff]
      %v1005 = vld [vmem:[%s407 + $0x89] sm:$0xff]
      %v1006 = vld [vmem:[%s407 + $0x91] sm:$0xff]
      %v1007 = vld [vmem:[%s407 + $0x99] sm:$0xff]
      %v1008 = vld [vmem:[%s407 + $0xa1] sm:$0xff]
      %v1009 = vld [vmem:[%s407 + $0xa9] sm:$0xff]
      %v1010 = vld [vmem:[%s407 + $0xb1] sm:$0xff]
      %v1011 = vld [vmem:[%s407 + $0xb9] sm:$0xff]
      %v1012 = vld [vmem:[%s407 + $0xc1] sm:$0xff]
      %v1013 = vld [vmem:[%s407 + $0xc9] sm:$0xff]
      %v1014 = vld [vmem:[%s407 + $0xd1] sm:$0xff]
      %v1015 = vld [vmem:[%s407 + $0xd9] sm:$0xff]
      %1016 = vrot.lane.b32.xlu0 %v1002, 4
      %v1017 = vpop.permute.xlu0 %1016
      %1018 = vrot.lane.b32.xlu0 %v1003, 4
      %v1019 = vpop.permute.xlu0 %1018
      %1020 = vrot.lane.b32.xlu0 %v1004, 4
      %v1021 = vpop.permute.xlu0 %1020
      %1022 = vrot.lane.b32.xlu0 %v1005, 4
      %v1023 = vpop.permute.xlu0 %1022
      %1024 = vrot.lane.b32.xlu0 %v1006, 4
      %v1025 = vpop.permute.xlu0 %1024
      %1026 = vrot.lane.b32.xlu0 %v1007, 4
      %v1027 = vpop.permute.xlu0 %1026
      %1028 = vrot.lane.b32.xlu0 %v1008, 4
      %v1029 = vpop.permute.xlu0 %1028
      %1030 = vrot.lane.b32.xlu0 %v1009, 4
      %v1031 = vpop.permute.xlu0 %1030
      %1032 = vrot.lane.b32.xlu0 %v1010, 4
      %v1033 = vpop.permute.xlu0 %1032
      %1034 = vrot.lane.b32.xlu0 %v1011, 4
      %v1035 = vpop.permute.xlu0 %1034
      %1036 = vrot.lane.b32.xlu0 %v1012, 4
      %v1037 = vpop.permute.xlu0 %1036
      %1038 = vrot.lane.b32.xlu0 %v1013, 4
      %v1039 = vpop.permute.xlu0 %1038
      %1040 = vrot.lane.b32.xlu0 %v1014, 4
      %v1041 = vpop.permute.xlu0 %1040
      %1042 = vrot.lane.b32.xlu0 %v1015, 4
      %v1043 = vpop.permute.xlu0 %1042
      %v1044 = vadd.f32 %v988, %v1017
      %v1045 = vadd.f32 %v989, %v1019
      %v1046 = vadd.f32 %v990, %v1021
      %v1047 = vadd.f32 %v991, %v1023
      %v1048 = vadd.f32 %v992, %v1025
      %v1049 = vadd.f32 %v993, %v1027
      %v1050 = vadd.f32 %v994, %v1029
      %v1051 = vadd.f32 %v995, %v1031
      %v1052 = vadd.f32 %v996, %v1033
      %v1053 = vadd.f32 %v997, %v1035
      %v1054 = vadd.f32 %v998, %v1037
      %v1055 = vadd.f32 %v999, %v1039
      %v1056 = vadd.f32 %v1000, %v1041
      %v1057 = vadd.f32 %v1001, %v1043
      %v1058 = vld [vmem:[%s407 + $0x72] sm:$0xff]
      %v1059 = vld [vmem:[%s407 + $0x7a] sm:$0xff]
      %v1060 = vld [vmem:[%s407 + $0x82] sm:$0xff]
      %v1061 = vld [vmem:[%s407 + $0x8a] sm:$0xff]
      %v1062 = vld [vmem:[%s407 + $0x92] sm:$0xff]
      %v1063 = vld [vmem:[%s407 + $0x9a] sm:$0xff]
      %v1064 = vld [vmem:[%s407 + $0xa2] sm:$0xff]
      %v1065 = vld [vmem:[%s407 + $0xaa] sm:$0xff]
      %v1066 = vld [vmem:[%s407 + $0xb2] sm:$0xff]
      %v1067 = vld [vmem:[%s407 + $0xba] sm:$0xff]
      %v1068 = vld [vmem:[%s407 + $0xc2] sm:$0xff]
      %v1069 = vld [vmem:[%s407 + $0xca] sm:$0xff]
      %v1070 = vld [vmem:[%s407 + $0xd2] sm:$0xff]
      %v1071 = vld [vmem:[%s407 + $0xda] sm:$0xff]
      %1072 = vrot.lane.b32.xlu0 %v1058, 8
      %v1073 = vpop.permute.xlu0 %1072
      %1074 = vrot.lane.b32.xlu0 %v1059, 8
      %v1075 = vpop.permute.xlu0 %1074
      %1076 = vrot.lane.b32.xlu0 %v1060, 8
      %v1077 = vpop.permute.xlu0 %1076
      %1078 = vrot.lane.b32.xlu0 %v1061, 8
      %v1079 = vpop.permute.xlu0 %1078
      %1080 = vrot.lane.b32.xlu0 %v1062, 8
      %v1081 = vpop.permute.xlu0 %1080
      %1082 = vrot.lane.b32.xlu0 %v1063, 8
      %v1083 = vpop.permute.xlu0 %1082
      %1084 = vrot.lane.b32.xlu0 %v1064, 8
      %v1085 = vpop.permute.xlu0 %1084
      %1086 = vrot.lane.b32.xlu0 %v1065, 8
      %v1087 = vpop.permute.xlu0 %1086
      %1088 = vrot.lane.b32.xlu0 %v1066, 8
      %v1089 = vpop.permute.xlu0 %1088
      %1090 = vrot.lane.b32.xlu0 %v1067, 8
      %v1091 = vpop.permute.xlu0 %1090
      %1092 = vrot.lane.b32.xlu0 %v1068, 8
      %v1093 = vpop.permute.xlu0 %1092
      %1094 = vrot.lane.b32.xlu0 %v1069, 8
      %v1095 = vpop.permute.xlu0 %1094
      %1096 = vrot.lane.b32.xlu0 %v1070, 8
      %v1097 = vpop.permute.xlu0 %1096
      %1098 = vrot.lane.b32.xlu0 %v1071, 8
      %v1099 = vpop.permute.xlu0 %1098
      %v1100 = vadd.f32 %v1044, %v1073
      %v1101 = vadd.f32 %v1045, %v1075
      %v1102 = vadd.f32 %v1046, %v1077
      %v1103 = vadd.f32 %v1047, %v1079
      %v1104 = vadd.f32 %v1048, %v1081
      %v1105 = vadd.f32 %v1049, %v1083
      %v1106 = vadd.f32 %v1050, %v1085
      %v1107 = vadd.f32 %v1051, %v1087
      %v1108 = vadd.f32 %v1052, %v1089
      %v1109 = vadd.f32 %v1053, %v1091
      %v1110 = vadd.f32 %v1054, %v1093
      %v1111 = vadd.f32 %v1055, %v1095
      %v1112 = vadd.f32 %v1056, %v1097
      %v1113 = vadd.f32 %v1057, %v1099
      %v1114 = vld [vmem:[%s407 + $0xe0] sm:$0xff]
      %v1115 = vld [vmem:[%s407 + $0xe8] sm:$0xff]
      %1116 = vrot.lane.b32.xlu0 %v990, 12
      %v1117 = vpop.permute.xlu0 %1116
      %1118 = vrot.lane.b32.xlu0 %v991, 12
      %v1119 = vpop.permute.xlu0 %1118
      %1120 = vrot.lane.b32.xlu0 %v992, 12
      %v1121 = vpop.permute.xlu0 %1120
      %1122 = vrot.lane.b32.xlu0 %v993, 12
      %v1123 = vpop.permute.xlu0 %1122
      %1124 = vrot.lane.b32.xlu0 %v994, 12
      %v1125 = vpop.permute.xlu0 %1124
      %1126 = vrot.lane.b32.xlu0 %v995, 12
      %v1127 = vpop.permute.xlu0 %1126
      %1128 = vrot.lane.b32.xlu0 %v996, 12
      %v1129 = vpop.permute.xlu0 %1128
      %1130 = vrot.lane.b32.xlu0 %v997, 12
      %v1131 = vpop.permute.xlu0 %1130
      %1132 = vrot.lane.b32.xlu0 %v998, 12
      %v1133 = vpop.permute.xlu0 %1132
      %1134 = vrot.lane.b32.xlu0 %v999, 12
      %v1135 = vpop.permute.xlu0 %1134
      %1136 = vrot.lane.b32.xlu0 %v1000, 12
      %v1137 = vpop.permute.xlu0 %1136
      %1138 = vrot.lane.b32.xlu0 %v1001, 12
      %v1139 = vpop.permute.xlu0 %1138
      %1140 = vrot.lane.b32.xlu0 %v1114, 12
      %v1141 = vpop.permute.xlu0 %1140
      %1142 = vrot.lane.b32.xlu0 %v1115, 12
      %v1143 = vpop.permute.xlu0 %1142
      %v1144 = vadd.f32 %v1100, %v1117
      %v1145 = vadd.f32 %v1101, %v1119
      %v1146 = vadd.f32 %v1102, %v1121
      %v1147 = vadd.f32 %v1103, %v1123
      %v1148 = vadd.f32 %v1104, %v1125
      %v1149 = vadd.f32 %v1105, %v1127
      %v1150 = vadd.f32 %v1106, %v1129
      %v1151 = vadd.f32 %v1107, %v1131
      %v1152 = vadd.f32 %v1108, %v1133
      %v1153 = vadd.f32 %v1109, %v1135
      %v1154 = vadd.f32 %v1110, %v1137
      %v1155 = vadd.f32 %v1111, %v1139
      %v1156 = vadd.f32 %v1112, %v1141
      %v1157 = vadd.f32 %v1113, %v1143
      %v1158 = vld [vmem:[%s407 + $0xe1] sm:$0xff]
      %v1159 = vld [vmem:[%s407 + $0xe9] sm:$0xff]
      %1160 = vrot.lane.b32.xlu0 %v1004, 16
      %v1161 = vpop.permute.xlu0 %1160
      %1162 = vrot.lane.b32.xlu0 %v1005, 16
      %v1163 = vpop.permute.xlu0 %1162
      %1164 = vrot.lane.b32.xlu0 %v1006, 16
      %v1165 = vpop.permute.xlu0 %1164
      %1166 = vrot.lane.b32.xlu0 %v1007, 16
      %v1167 = vpop.permute.xlu0 %1166
      %1168 = vrot.lane.b32.xlu0 %v1008, 16
      %v1169 = vpop.permute.xlu0 %1168
      %1170 = vrot.lane.b32.xlu0 %v1009, 16
      %v1171 = vpop.permute.xlu0 %1170
      %1172 = vrot.lane.b32.xlu0 %v1010, 16
      %v1173 = vpop.permute.xlu0 %1172
      %1174 = vrot.lane.b32.xlu0 %v1011, 16
      %v1175 = vpop.permute.xlu0 %1174
      %1176 = vrot.lane.b32.xlu0 %v1012, 16
      %v1177 = vpop.permute.xlu0 %1176
      %1178 = vrot.lane.b32.xlu0 %v1013, 16
      %v1179 = vpop.permute.xlu0 %1178
      %1180 = vrot.lane.b32.xlu0 %v1014, 16
      %v1181 = vpop.permute.xlu0 %1180
      %1182 = vrot.lane.b32.xlu0 %v1015, 16
      %v1183 = vpop.permute.xlu0 %1182
      %1184 = vrot.lane.b32.xlu0 %v1158, 16
      %v1185 = vpop.permute.xlu0 %1184
      %1186 = vrot.lane.b32.xlu0 %v1159, 16
      %v1187 = vpop.permute.xlu0 %1186
      %v1188 = vadd.f32 %v1144, %v1161
      %v1189 = vadd.f32 %v1145, %v1163
      %v1190 = vadd.f32 %v1146, %v1165
      %v1191 = vadd.f32 %v1147, %v1167
      %v1192 = vadd.f32 %v1148, %v1169
      %v1193 = vadd.f32 %v1149, %v1171
      %v1194 = vadd.f32 %v1150, %v1173
      %v1195 = vadd.f32 %v1151, %v1175
      %v1196 = vadd.f32 %v1152, %v1177
      %v1197 = vadd.f32 %v1153, %v1179
      %v1198 = vadd.f32 %v1154, %v1181
      %v1199 = vadd.f32 %v1155, %v1183
      %v1200 = vadd.f32 %v1156, %v1185
      %v1201 = vadd.f32 %v1157, %v1187
      %v1202 = vld [vmem:[%s407 + $0xe2] sm:$0xff]
      %v1203 = vld [vmem:[%s407 + $0xea] sm:$0xff]
      %1204 = vrot.lane.b32.xlu0 %v1060, 20
      %v1205 = vpop.permute.xlu0 %1204
      %1206 = vrot.lane.b32.xlu0 %v1061, 20
      %v1207 = vpop.permute.xlu0 %1206
      %1208 = vrot.lane.b32.xlu0 %v1062, 20
      %v1209 = vpop.permute.xlu0 %1208
      %1210 = vrot.lane.b32.xlu0 %v1063, 20
      %v1211 = vpop.permute.xlu0 %1210
      %1212 = vrot.lane.b32.xlu0 %v1064, 20
      %v1213 = vpop.permute.xlu0 %1212
      %1214 = vrot.lane.b32.xlu0 %v1065, 20
      %v1215 = vpop.permute.xlu0 %1214
      %1216 = vrot.lane.b32.xlu0 %v1066, 20
      %v1217 = vpop.permute.xlu0 %1216
      %1218 = vrot.lane.b32.xlu0 %v1067, 20
      %v1219 = vpop.permute.xlu0 %1218
      %1220 = vrot.lane.b32.xlu0 %v1068, 20
      %v1221 = vpop.permute.xlu0 %1220
      %1222 = vrot.lane.b32.xlu0 %v1069, 20
      %v1223 = vpop.permute.xlu0 %1222
      %1224 = vrot.lane.b32.xlu0 %v1070, 20
      %v1225 = vpop.permute.xlu0 %1224
      %1226 = vrot.lane.b32.xlu0 %v1071, 20
      %v1227 = vpop.permute.xlu0 %1226
      %1228 = vrot.lane.b32.xlu0 %v1202, 20
      %v1229 = vpop.permute.xlu0 %1228
      %1230 = vrot.lane.b32.xlu0 %v1203, 20
      %v1231 = vpop.permute.xlu0 %1230
      %v1232 = vadd.f32 %v1188, %v1205
      %v1233 = vadd.f32 %v1189, %v1207
      %v1234 = vadd.f32 %v1190, %v1209
      %v1235 = vadd.f32 %v1191, %v1211
      %v1236 = vadd.f32 %v1192, %v1213
      %v1237 = vadd.f32 %v1193, %v1215
      %v1238 = vadd.f32 %v1194, %v1217
      %v1239 = vadd.f32 %v1195, %v1219
      %v1240 = vadd.f32 %v1196, %v1221
      %v1241 = vadd.f32 %v1197, %v1223
      %v1242 = vadd.f32 %v1198, %v1225
      %v1243 = vadd.f32 %v1199, %v1227
      %v1244 = vadd.f32 %v1200, %v1229
      %v1245 = vadd.f32 %v1201, %v1231
      %v1246 = vld [vmem:[%s407 + $0xf0] sm:$0xff]
      %v1247 = vld [vmem:[%s407 + $0xf8] sm:$0xff]
      %1248 = vrot.lane.b32.xlu0 %v992, 24
      %v1249 = vpop.permute.xlu0 %1248
      %1250 = vrot.lane.b32.xlu0 %v993, 24
      %v1251 = vpop.permute.xlu0 %1250
      %1252 = vrot.lane.b32.xlu0 %v994, 24
      %v1253 = vpop.permute.xlu0 %1252
      %1254 = vrot.lane.b32.xlu0 %v995, 24
      %v1255 = vpop.permute.xlu0 %1254
      %1256 = vrot.lane.b32.xlu0 %v996, 24
      %v1257 = vpop.permute.xlu0 %1256
      %1258 = vrot.lane.b32.xlu0 %v997, 24
      %v1259 = vpop.permute.xlu0 %1258
      %1260 = vrot.lane.b32.xlu0 %v998, 24
      %v1261 = vpop.permute.xlu0 %1260
      %1262 = vrot.lane.b32.xlu0 %v999, 24
      %v1263 = vpop.permute.xlu0 %1262
      %1264 = vrot.lane.b32.xlu0 %v1000, 24
      %v1265 = vpop.permute.xlu0 %1264
      %1266 = vrot.lane.b32.xlu0 %v1001, 24
      %v1267 = vpop.permute.xlu0 %1266
      %1268 = vrot.lane.b32.xlu0 %v1114, 24
      %v1269 = vpop.permute.xlu0 %1268
      %1270 = vrot.lane.b32.xlu0 %v1115, 24
      %v1271 = vpop.permute.xlu0 %1270
      %1272 = vrot.lane.b32.xlu0 %v1246, 24
      %v1273 = vpop.permute.xlu0 %1272
      %1274 = vrot.lane.b32.xlu0 %v1247, 24
      %v1275 = vpop.permute.xlu0 %1274
      %v1276 = vadd.f32 %v1232, %v1249
      %v1277 = vadd.f32 %v1233, %v1251
      %v1278 = vadd.f32 %v1234, %v1253
      %v1279 = vadd.f32 %v1235, %v1255
      %v1280 = vadd.f32 %v1236, %v1257
      %v1281 = vadd.f32 %v1237, %v1259
      %v1282 = vadd.f32 %v1238, %v1261
      %v1283 = vadd.f32 %v1239, %v1263
      %v1284 = vadd.f32 %v1240, %v1265
      %v1285 = vadd.f32 %v1241, %v1267
      %v1286 = vadd.f32 %v1242, %v1269
      %v1287 = vadd.f32 %v1243, %v1271
      %v1288 = vadd.f32 %v1244, %v1273
      %v1289 = vadd.f32 %v1245, %v1275
      %v1290 = vld [vmem:[%s407 + $0xf1] sm:$0xff]
      %v1291 = vld [vmem:[%s407 + $0xf9] sm:$0xff]
      %1292 = vrot.lane.b32.xlu0 %v1006, 28
      %v1293 = vpop.permute.xlu0 %1292
      %1294 = vrot.lane.b32.xlu0 %v1007, 28
      %v1295 = vpop.permute.xlu0 %1294
      %1296 = vrot.lane.b32.xlu0 %v1008, 28
      %v1297 = vpop.permute.xlu0 %1296
      %1298 = vrot.lane.b32.xlu0 %v1009, 28
      %v1299 = vpop.permute.xlu0 %1298
      %1300 = vrot.lane.b32.xlu0 %v1010, 28
      %v1301 = vpop.permute.xlu0 %1300
      %1302 = vrot.lane.b32.xlu0 %v1011, 28
      %v1303 = vpop.permute.xlu0 %1302
      %1304 = vrot.lane.b32.xlu0 %v1012, 28
      %v1305 = vpop.permute.xlu0 %1304
      %1306 = vrot.lane.b32.xlu0 %v1013, 28
      %v1307 = vpop.permute.xlu0 %1306
      %1308 = vrot.lane.b32.xlu0 %v1014, 28
      %v1309 = vpop.permute.xlu0 %1308
      %1310 = vrot.lane.b32.xlu0 %v1015, 28
      %v1311 = vpop.permute.xlu0 %1310
      %1312 = vrot.lane.b32.xlu0 %v1158, 28
      %v1313 = vpop.permute.xlu0 %1312
      %1314 = vrot.lane.b32.xlu0 %v1159, 28
      %v1315 = vpop.permute.xlu0 %1314
      %1316 = vrot.lane.b32.xlu0 %v1290, 28
      %v1317 = vpop.permute.xlu0 %1316
      %1318 = vrot.lane.b32.xlu0 %v1291, 28
      %v1319 = vpop.permute.xlu0 %1318
      %v1320 = vadd.f32 %v1276, %v1293
      %v1321 = vadd.f32 %v1277, %v1295
      %v1322 = vadd.f32 %v1278, %v1297
      %v1323 = vadd.f32 %v1279, %v1299
      %v1324 = vadd.f32 %v1280, %v1301
      %v1325 = vadd.f32 %v1281, %v1303
      %v1326 = vadd.f32 %v1282, %v1305
      %v1327 = vadd.f32 %v1283, %v1307
      %v1328 = vadd.f32 %v1284, %v1309
      %v1329 = vadd.f32 %v1285, %v1311
      %v1330 = vadd.f32 %v1286, %v1313
      %v1331 = vadd.f32 %v1287, %v1315
      %v1332 = vadd.f32 %v1288, %v1317
      %v1333 = vadd.f32 %v1289, %v1319
      %v1334 = vld [vmem:[%s407 + $0xf2] sm:$0xff]
      %v1335 = vld [vmem:[%s407 + $0xfa] sm:$0xff]
      %1336 = vrot.lane.b32.xlu0 %v1062, 32
      %v1337 = vpop.permute.xlu0 %1336
      %1338 = vrot.lane.b32.xlu0 %v1063, 32
      %v1339 = vpop.permute.xlu0 %1338
      %1340 = vrot.lane.b32.xlu0 %v1064, 32
      %v1341 = vpop.permute.xlu0 %1340
      %1342 = vrot.lane.b32.xlu0 %v1065, 32
      %v1343 = vpop.permute.xlu0 %1342
      %1344 = vrot.lane.b32.xlu0 %v1066, 32
      %v1345 = vpop.permute.xlu0 %1344
      %1346 = vrot.lane.b32.xlu0 %v1067, 32
      %v1347 = vpop.permute.xlu0 %1346
      %1348 = vrot.lane.b32.xlu0 %v1068, 32
      %v1349 = vpop.permute.xlu0 %1348
      %1350 = vrot.lane.b32.xlu0 %v1069, 32
      %v1351 = vpop.permute.xlu0 %1350
      %1352 = vrot.lane.b32.xlu0 %v1070, 32
      %v1353 = vpop.permute.xlu0 %1352
      %1354 = vrot.lane.b32.xlu0 %v1071, 32
      %v1355 = vpop.permute.xlu0 %1354
      %1356 = vrot.lane.b32.xlu0 %v1202, 32
      %v1357 = vpop.permute.xlu0 %1356
      %1358 = vrot.lane.b32.xlu0 %v1203, 32
      %v1359 = vpop.permute.xlu0 %1358
      %1360 = vrot.lane.b32.xlu0 %v1334, 32
      %v1361 = vpop.permute.xlu0 %1360
      %1362 = vrot.lane.b32.xlu0 %v1335, 32
      %v1363 = vpop.permute.xlu0 %1362
      %v1364 = vadd.f32 %v1320, %v1337
      %v1365 = vadd.f32 %v1321, %v1339
      %v1366 = vadd.f32 %v1322, %v1341
      %v1367 = vadd.f32 %v1323, %v1343
      %v1368 = vadd.f32 %v1324, %v1345
      %v1369 = vadd.f32 %v1325, %v1347
      %v1370 = vadd.f32 %v1326, %v1349
      %v1371 = vadd.f32 %v1327, %v1351
      %v1372 = vadd.f32 %v1328, %v1353
      %v1373 = vadd.f32 %v1329, %v1355
      %v1374 = vadd.f32 %v1330, %v1357
      %v1375 = vadd.f32 %v1331, %v1359
      %v1376 = vadd.f32 %v1332, %v1361
      %v1377 = vadd.f32 %v1333, %v1363
      %v1378 = vld [vmem:[%s1] sm:$0xff]
      %v1379 = vld [vmem:[%s1 + $0x8] sm:$0xff]
      %v1380 = vld [vmem:[%s1 + $0x10] sm:$0xff]
      %v1381 = vld [vmem:[%s1 + $0x18] sm:$0xff]
      %v1382 = vld [vmem:[%s1 + $0x20] sm:$0xff]
      %v1383 = vld [vmem:[%s1 + $0x28] sm:$0xff]
      %v1384 = vld [vmem:[%s1 + $0x30] sm:$0xff]
      %v1385 = vld [vmem:[%s1 + $0x38] sm:$0xff]
      %v1386 = vld [vmem:[%s1 + $0x40] sm:$0xff]
      %v1387 = vld [vmem:[%s1 + $0x48] sm:$0xff]
      %v1388 = vld [vmem:[%s1 + $0x50] sm:$0xff]
      %v1389 = vld [vmem:[%s1 + $0x58] sm:$0xff]
      %v1390 = vld [vmem:[%s1 + $0x60] sm:$0xff]
      %v1391 = vld [vmem:[%s1 + $0x68] sm:$0xff]
      %v1392 = vld [vmem:[%s1 + $0x70] sm:$0xff]
      %v1393 = vld [vmem:[%s1 + $0x78] sm:$0xff]
      %v1394 = vld [vmem:[%s2] sm:$0x1]
      %v1396 = vlaneseq
      %v1397 = vshrl.u32 %v1396, 7
      %v1398 = vsub.s32 0, %v1397
      %v1399 = vrot.slane %v1394, %v1398
      %1401 = vmatprep.subr.mxu0 0.0
      %1402 = vmatpush1.msra.mxu0 %v1393
      %1403 = vmatprep.subr.mxu0 0.0
      %1404 = vmatpush1.msra.mxu0 %v1392
      %1405 = vmatprep.subr.mxu0 0.0
      %1406 = vmatpush1.msra.mxu0 %v1391
      %1407 = vmatprep.subr.mxu0 0.0
      %1408 = vmatpush1.msra.mxu0 %v1390
      %1409 = vmatprep.subr.mxu0 0.0
      %1410 = vmatpush1.msra.mxu0 %v1389
      %1411 = vmatprep.subr.mxu0 0.0
      %1412 = vmatpush1.msra.mxu0 %v1388
      %1413 = vmatprep.subr.mxu0 0.0
      %1414 = vmatpush1.msra.mxu0 %v1387
      %1415 = vmatprep.subr.mxu0 0.0
      %1416 = vmatpush1.msra.mxu0 %v1386
      %1417 = vmatprep.subr.mxu0 0.0
      %1418 = vmatpush1.msra.mxu0 %v1385
      %1419 = vmatprep.subr.mxu0 0.0
      %1420 = vmatpush1.msra.mxu0 %v1384
      %1421 = vmatprep.subr.mxu0 0.0
      %1422 = vmatpush1.msra.mxu0 %v1383
      %1423 = vmatprep.subr.mxu0 0.0
      %1424 = vmatpush1.msra.mxu0 %v1382
      %1425 = vmatprep.subr.mxu0 0.0
      %1426 = vmatpush1.msra.mxu0 %v1381
      %1427 = vmatprep.subr.mxu0 0.0
      %1428 = vmatpush1.msra.mxu0 %v1380
      %1429 = vmatprep.subr.mxu0 0.0
      %1430 = vmatpush1.msra.mxu0 %v1379
      %1431 = vmatprep.subr.mxu0 0.0
      %1432 = vmatpush1.msra.mxu0 %v1378
      %1433 = vmatprep.subr.mxu0 0.0
      %1434 = vmatpush2.msra.mxu0 0.0
      %1435 = vmatprep.subr.mxu0 0.0
      %1436 = vmatpush2.msra.mxu0 0.0
      %1437 = vmatprep.subr.mxu0 0.0
      %1438 = vmatpush2.msra.mxu0 0.0
      %1439 = vmatprep.subr.mxu0 0.0
      %1440 = vmatpush2.msra.mxu0 0.0
      %1441 = vmatprep.subr.mxu0 0.0
      %1442 = vmatpush2.msra.mxu0 0.0
      %1443 = vmatprep.subr.mxu0 0.0
      %1444 = vmatpush2.msra.mxu0 0.0
      %1445 = vmatprep.subr.mxu0 0.0
      %1446 = vmatpush2.msra.mxu0 0.0
      %1447 = vmatprep.subr.mxu0 0.0
      %1448 = vmatpush2.msra.mxu0 0.0
      %1449 = vmatprep.subr.mxu0 0.0
      %1450 = vmatpush2.msra.mxu0 0.0
      %1451 = vmatprep.subr.mxu0 0.0
      %1452 = vmatpush2.msra.mxu0 0.0
      %1453 = vmatprep.subr.mxu0 0.0
      %1454 = vmatpush2.msra.mxu0 0.0
      %1455 = vmatprep.subr.mxu0 0.0
      %1456 = vmatpush2.msra.mxu0 0.0
      %1457 = vmatprep.subr.mxu0 0.0
      %1458 = vmatpush2.msra.mxu0 0.0
      %1459 = vmatprep.subr.mxu0 0.0
      %1460 = vmatpush2.msra.mxu0 0.0
      %1461 = vmatprep.subr.mxu0 0.0
      %1462 = vmatpush2.msra.mxu0 0.0
      %1463 = vmatprep.subr.mxu0 0.0
      %1464 = vmatpush2.msra.mxu0 0.0
      %1465 = vmatprep.mubr.f32.mxu0 0.0
      %1466 = vmatmul.mubr.f32.gmra.mxu0 %v1364
      %v1467 = vpop.f32.mrf.mxu0
      %v1468 = vadd.f32 %v1399, %v1467
      %v1469 = vpop.f32.mrf.mxu0
      %1470 = vmatprep.mubr.f32.mxu0 0.0
      %1471 = vmatmul.mubr.f32.gmra.mxu0 %v1365
      %v1472 = vpop.f32.mrf.mxu0
      %v1473 = vadd.f32 %v1399, %v1472
      %v1474 = vpop.f32.mrf.mxu0
      %1475 = vmatprep.mubr.f32.mxu0 0.0
      %1476 = vmatmul.mubr.f32.gmra.mxu0 %v1366
      %v1477 = vpop.f32.mrf.mxu0
      %v1478 = vadd.f32 %v1399, %v1477
      %v1479 = vpop.f32.mrf.mxu0
      %1480 = vmatprep.mubr.f32.mxu0 0.0
      %1481 = vmatmul.mubr.f32.gmra.mxu0 %v1367
      %v1482 = vpop.f32.mrf.mxu0
      %v1483 = vadd.f32 %v1399, %v1482
      %v1484 = vpop.f32.mrf.mxu0
      %1485 = vmatprep.mubr.f32.mxu0 0.0
      %1486 = vmatmul.mubr.f32.gmra.mxu0 %v1368
      %v1487 = vpop.f32.mrf.mxu0
      %v1488 = vadd.f32 %v1399, %v1487
      %v1489 = vpop.f32.mrf.mxu0
      %1490 = vmatprep.mubr.f32.mxu0 0.0
      %1491 = vmatmul.mubr.f32.gmra.mxu0 %v1369
      %v1492 = vpop.f32.mrf.mxu0
      %v1493 = vadd.f32 %v1399, %v1492
      %v1494 = vpop.f32.mrf.mxu0
      %1495 = vmatprep.mubr.f32.mxu0 0.0
      %1496 = vmatmul.mubr.f32.gmra.mxu0 %v1370
      %v1497 = vpop.f32.mrf.mxu0
      %v1498 = vadd.f32 %v1399, %v1497
      %v1499 = vpop.f32.mrf.mxu0
      %1500 = vmatprep.mubr.f32.mxu0 0.0
      %1501 = vmatmul.mubr.f32.gmra.mxu0 %v1371
      %v1502 = vpop.f32.mrf.mxu0
      %v1503 = vadd.f32 %v1399, %v1502
      %v1504 = vpop.f32.mrf.mxu0
      %1505 = vmatprep.mubr.f32.mxu0 0.0
      %1506 = vmatmul.mubr.f32.gmra.mxu0 %v1372
      %v1507 = vpop.f32.mrf.mxu0
      %v1508 = vadd.f32 %v1399, %v1507
      %v1509 = vpop.f32.mrf.mxu0
      %1510 = vmatprep.mubr.f32.mxu0 0.0
      %1511 = vmatmul.mubr.f32.gmra.mxu0 %v1373
      %v1512 = vpop.f32.mrf.mxu0
      %v1513 = vadd.f32 %v1399, %v1512
      %v1514 = vpop.f32.mrf.mxu0
      %1515 = vmatprep.mubr.f32.mxu0 0.0
      %1516 = vmatmul.mubr.f32.gmra.mxu0 %v1374
      %v1517 = vpop.f32.mrf.mxu0
      %v1518 = vadd.f32 %v1399, %v1517
      %v1519 = vpop.f32.mrf.mxu0
      %1520 = vmatprep.mubr.f32.mxu0 0.0
      %1521 = vmatmul.mubr.f32.gmra.mxu0 %v1375
      %v1522 = vpop.f32.mrf.mxu0
      %v1523 = vadd.f32 %v1399, %v1522
      %v1524 = vpop.f32.mrf.mxu0
      %1525 = vmatprep.mubr.f32.mxu0 0.0
      %1526 = vmatmul.mubr.f32.gmra.mxu0 %v1376
      %v1527 = vpop.f32.mrf.mxu0
      %v1528 = vadd.f32 %v1399, %v1527
      %v1529 = vpop.f32.mrf.mxu0
      %1530 = vmatprep.mubr.f32.mxu0 0.0
      %1531 = vmatmul.mubr.f32.gmra.mxu0 %v1377
      %v1532 = vpop.f32.mrf.mxu0
      %v1533 = vadd.f32 %v1399, %v1532
      %v1534 = vpop.f32.mrf.mxu0
      %1535 = vdwg.mxu0
      %v1536 = vmax.f32 %v1468, 0.0
      %v1537 = vmax.f32 %v1473, 0.0
      %v1538 = vmax.f32 %v1478, 0.0
      %v1539 = vmax.f32 %v1483, 0.0
      %v1540 = vmax.f32 %v1488, 0.0
      %v1541 = vmax.f32 %v1493, 0.0
      %v1542 = vmax.f32 %v1498, 0.0
      %v1543 = vmax.f32 %v1503, 0.0
      %v1544 = vmax.f32 %v1508, 0.0
      %v1545 = vmax.f32 %v1513, 0.0
      %v1546 = vmax.f32 %v1518, 0.0
      %v1547 = vmax.f32 %v1523, 0.0
      %v1548 = vmax.f32 %v1528, 0.0
      %v1549 = vmax.f32 %v1533, 0.0
      %1550 = vst [vmem:[#allocation2 + $0x70] sm:$0xff] %v1536
      %1551 = vst [vmem:[#allocation2 + $0x78] sm:$0xff] %v1537
      %1552 = vst [vmem:[#allocation2 + $0x80] sm:$0xff] %v1538
      %1553 = vst [vmem:[#allocation2 + $0x88] sm:$0xff] %v1539
      %1554 = vst [vmem:[#allocation2 + $0x90] sm:$0xff] %v1540
      %1555 = vst [vmem:[#allocation2 + $0x98] sm:$0xff] %v1541
      %1556 = vst [vmem:[#allocation2 + $0xa0] sm:$0xff] %v1542
      %1557 = vst [vmem:[#allocation2 + $0xa8] sm:$0xff] %v1543
      %1558 = vst [vmem:[#allocation2 + $0xb0] sm:$0xff] %v1544
      %1559 = vst [vmem:[#allocation2 + $0xb8] sm:$0xff] %v1545
      %1560 = vst [vmem:[#allocation2 + $0xc0] sm:$0xff] %v1546
      %1561 = vst [vmem:[#allocation2 + $0xc8] sm:$0xff] %v1547
      %1562 = vst [vmem:[#allocation2 + $0xd0] sm:$0xff] %v1548
      %1563 = vst [vmem:[#allocation2 + $0xd8] sm:$0xff] %v1549
      %1564 = vst [vmem:[#allocation2 + $0xe0] sm:$0xff] 0.0
      %v1565 = vld [vmem:[#allocation2] sm:$0xff]
      %v1566 = vld [vmem:[#allocation2 + $0x8] sm:$0xff]
      %v1567 = vld [vmem:[#allocation2 + $0x10] sm:$0xff]
      %v1568 = vld [vmem:[#allocation2 + $0x18] sm:$0xff]
      %v1569 = vld [vmem:[#allocation2 + $0x20] sm:$0xff]
      %v1570 = vld [vmem:[#allocation2 + $0x28] sm:$0xff]
      %v1571 = vld [vmem:[#allocation2 + $0x30] sm:$0xff]
      %v1572 = vld [vmem:[#allocation2 + $0x38] sm:$0xff]
      %v1573 = vld [vmem:[#allocation2 + $0x40] sm:$0xff]
      %v1574 = vld [vmem:[#allocation2 + $0x48] sm:$0xff]
      %v1575 = vld [vmem:[#allocation2 + $0x50] sm:$0xff]
      %v1576 = vld [vmem:[#allocation2 + $0x58] sm:$0xff]
      %v1577 = vld [vmem:[#allocation2 + $0x60] sm:$0xff]
      %v1578 = vld [vmem:[#allocation2 + $0x68] sm:$0xff]
      %v1579 = vld [vmem:[#allocation2 + $0x70] sm:$0xff]
      %v1580 = vld [vmem:[#allocation2 + $0x78] sm:$0xff]
      %v1581 = vld [vmem:[#allocation2 + $0x80] sm:$0xff]
      %v1582 = vld [vmem:[#allocation2 + $0x88] sm:$0xff]
      %v1583 = vld [vmem:[#allocation2 + $0x90] sm:$0xff]
      %v1584 = vld [vmem:[#allocation2 + $0x98] sm:$0xff]
      %v1585 = vld [vmem:[#allocation2 + $0xa0] sm:$0xff]
      %v1586 = vld [vmem:[#allocation2 + $0xa8] sm:$0xff]
      %v1587 = vld [vmem:[#allocation2 + $0xb0] sm:$0xff]
      %v1588 = vld [vmem:[#allocation2 + $0xb8] sm:$0xff]
      %v1589 = vld [vmem:[#allocation2 + $0x1] sm:$0xff]
      %v1590 = vld [vmem:[#allocation2 + $0x9] sm:$0xff]
      %v1591 = vld [vmem:[#allocation2 + $0x11] sm:$0xff]
      %v1592 = vld [vmem:[#allocation2 + $0x19] sm:$0xff]
      %v1593 = vld [vmem:[#allocation2 + $0x21] sm:$0xff]
      %v1594 = vld [vmem:[#allocation2 + $0x29] sm:$0xff]
      %v1595 = vld [vmem:[#allocation2 + $0x31] sm:$0xff]
      %v1596 = vld [vmem:[#allocation2 + $0x39] sm:$0xff]
      %v1597 = vld [vmem:[#allocation2 + $0x41] sm:$0xff]
      %v1598 = vld [vmem:[#allocation2 + $0x49] sm:$0xff]
      %v1599 = vld [vmem:[#allocation2 + $0x51] sm:$0xff]
      %v1600 = vld [vmem:[#allocation2 + $0x59] sm:$0xff]
      %v1601 = vld [vmem:[#allocation2 + $0x61] sm:$0xff]
      %v1602 = vld [vmem:[#allocation2 + $0x69] sm:$0xff]
      %v1603 = vld [vmem:[#allocation2 + $0x71] sm:$0xff]
      %v1604 = vld [vmem:[#allocation2 + $0x79] sm:$0xff]
      %v1605 = vld [vmem:[#allocation2 + $0x81] sm:$0xff]
      %v1606 = vld [vmem:[#allocation2 + $0x89] sm:$0xff]
      %v1607 = vld [vmem:[#allocation2 + $0x91] sm:$0xff]
      %v1608 = vld [vmem:[#allocation2 + $0x99] sm:$0xff]
      %v1609 = vld [vmem:[#allocation2 + $0xa1] sm:$0xff]
      %v1610 = vld [vmem:[#allocation2 + $0xa9] sm:$0xff]
      %v1611 = vld [vmem:[#allocation2 + $0xb1] sm:$0xff]
      %v1612 = vld [vmem:[#allocation2 + $0xb9] sm:$0xff]
      %1613 = vrot.lane.b32.xlu0 %v1589, 8
      %v1614 = vpop.permute.xlu0 %1613
      %1615 = vrot.lane.b32.xlu0 %v1590, 8
      %v1616 = vpop.permute.xlu0 %1615
      %1617 = vrot.lane.b32.xlu0 %v1591, 8
      %v1618 = vpop.permute.xlu0 %1617
      %1619 = vrot.lane.b32.xlu0 %v1592, 8
      %v1620 = vpop.permute.xlu0 %1619
      %1621 = vrot.lane.b32.xlu0 %v1593, 8
      %v1622 = vpop.permute.xlu0 %1621
      %1623 = vrot.lane.b32.xlu0 %v1594, 8
      %v1624 = vpop.permute.xlu0 %1623
      %1625 = vrot.lane.b32.xlu0 %v1595, 8
      %v1626 = vpop.permute.xlu0 %1625
      %1627 = vrot.lane.b32.xlu0 %v1596, 8
      %v1628 = vpop.permute.xlu0 %1627
      %1629 = vrot.lane.b32.xlu0 %v1597, 8
      %v1630 = vpop.permute.xlu0 %1629
      %1631 = vrot.lane.b32.xlu0 %v1598, 8
      %v1632 = vpop.permute.xlu0 %1631
      %1633 = vrot.lane.b32.xlu0 %v1599, 8
      %v1634 = vpop.permute.xlu0 %1633
      %1635 = vrot.lane.b32.xlu0 %v1600, 8
      %v1636 = vpop.permute.xlu0 %1635
      %1637 = vrot.lane.b32.xlu0 %v1601, 8
      %v1638 = vpop.permute.xlu0 %1637
      %1639 = vrot.lane.b32.xlu0 %v1602, 8
      %v1640 = vpop.permute.xlu0 %1639
      %1641 = vrot.lane.b32.xlu0 %v1603, 8
      %v1642 = vpop.permute.xlu0 %1641
      %1643 = vrot.lane.b32.xlu0 %v1604, 8
      %v1644 = vpop.permute.xlu0 %1643
      %1645 = vrot.lane.b32.xlu0 %v1605, 8
      %v1646 = vpop.permute.xlu0 %1645
      %1647 = vrot.lane.b32.xlu0 %v1606, 8
      %v1648 = vpop.permute.xlu0 %1647
      %1649 = vrot.lane.b32.xlu0 %v1607, 8
      %v1650 = vpop.permute.xlu0 %1649
      %1651 = vrot.lane.b32.xlu0 %v1608, 8
      %v1652 = vpop.permute.xlu0 %1651
      %1653 = vrot.lane.b32.xlu0 %v1609, 8
      %v1654 = vpop.permute.xlu0 %1653
      %1655 = vrot.lane.b32.xlu0 %v1610, 8
      %v1656 = vpop.permute.xlu0 %1655
      %1657 = vrot.lane.b32.xlu0 %v1611, 8
      %v1658 = vpop.permute.xlu0 %1657
      %1659 = vrot.lane.b32.xlu0 %v1612, 8
      %v1660 = vpop.permute.xlu0 %1659
      %v1661 = vadd.f32 %v1565, %v1614
      %v1662 = vadd.f32 %v1566, %v1616
      %v1663 = vadd.f32 %v1567, %v1618
      %v1664 = vadd.f32 %v1568, %v1620
      %v1665 = vadd.f32 %v1569, %v1622
      %v1666 = vadd.f32 %v1570, %v1624
      %v1667 = vadd.f32 %v1571, %v1626
      %v1668 = vadd.f32 %v1572, %v1628
      %v1669 = vadd.f32 %v1573, %v1630
      %v1670 = vadd.f32 %v1574, %v1632
      %v1671 = vadd.f32 %v1575, %v1634
      %v1672 = vadd.f32 %v1576, %v1636
      %v1673 = vadd.f32 %v1577, %v1638
      %v1674 = vadd.f32 %v1578, %v1640
      %v1675 = vadd.f32 %v1579, %v1642
      %v1676 = vadd.f32 %v1580, %v1644
      %v1677 = vadd.f32 %v1581, %v1646
      %v1678 = vadd.f32 %v1582, %v1648
      %v1679 = vadd.f32 %v1583, %v1650
      %v1680 = vadd.f32 %v1584, %v1652
      %v1681 = vadd.f32 %v1585, %v1654
      %v1682 = vadd.f32 %v1586, %v1656
      %v1683 = vadd.f32 %v1587, %v1658
      %v1684 = vadd.f32 %v1588, %v1660
      %v1685 = vld [vmem:[#allocation2 + $0x2] sm:$0xff]
      %v1686 = vld [vmem:[#allocation2 + $0xa] sm:$0xff]
      %v1687 = vld [vmem:[#allocation2 + $0x12] sm:$0xff]
      %v1688 = vld [vmem:[#allocation2 + $0x1a] sm:$0xff]
      %v1689 = vld [vmem:[#allocation2 + $0x22] sm:$0xff]
      %v1690 = vld [vmem:[#allocation2 + $0x2a] sm:$0xff]
      %v1691 = vld [vmem:[#allocation2 + $0x32] sm:$0xff]
      %v1692 = vld [vmem:[#allocation2 + $0x3a] sm:$0xff]
      %v1693 = vld [vmem:[#allocation2 + $0x42] sm:$0xff]
      %v1694 = vld [vmem:[#allocation2 + $0x4a] sm:$0xff]
      %v1695 = vld [vmem:[#allocation2 + $0x52] sm:$0xff]
      %v1696 = vld [vmem:[#allocation2 + $0x5a] sm:$0xff]
      %v1697 = vld [vmem:[#allocation2 + $0x62] sm:$0xff]
      %v1698 = vld [vmem:[#allocation2 + $0x6a] sm:$0xff]
      %v1699 = vld [vmem:[#allocation2 + $0x72] sm:$0xff]
      %v1700 = vld [vmem:[#allocation2 + $0x7a] sm:$0xff]
      %v1701 = vld [vmem:[#allocation2 + $0x82] sm:$0xff]
      %v1702 = vld [vmem:[#allocation2 + $0x8a] sm:$0xff]
      %v1703 = vld [vmem:[#allocation2 + $0x92] sm:$0xff]
      %v1704 = vld [vmem:[#allocation2 + $0x9a] sm:$0xff]
      %v1705 = vld [vmem:[#allocation2 + $0xa2] sm:$0xff]
      %v1706 = vld [vmem:[#allocation2 + $0xaa] sm:$0xff]
      %v1707 = vld [vmem:[#allocation2 + $0xb2] sm:$0xff]
      %v1708 = vld [vmem:[#allocation2 + $0xba] sm:$0xff]
      %1709 = vrot.lane.b32.xlu0 %v1685, 16
      %v1710 = vpop.permute.xlu0 %1709
      %1711 = vrot.lane.b32.xlu0 %v1686, 16
      %v1712 = vpop.permute.xlu0 %1711
      %1713 = vrot.lane.b32.xlu0 %v1687, 16
      %v1714 = vpop.permute.xlu0 %1713
      %1715 = vrot.lane.b32.xlu0 %v1688, 16
      %v1716 = vpop.permute.xlu0 %1715
      %1717 = vrot.lane.b32.xlu0 %v1689, 16
      %v1718 = vpop.permute.xlu0 %1717
      %1719 = vrot.lane.b32.xlu0 %v1690, 16
      %v1720 = vpop.permute.xlu0 %1719
      %1721 = vrot.lane.b32.xlu0 %v1691, 16
      %v1722 = vpop.permute.xlu0 %1721
      %1723 = vrot.lane.b32.xlu0 %v1692, 16
      %v1724 = vpop.permute.xlu0 %1723
      %1725 = vrot.lane.b32.xlu0 %v1693, 16
      %v1726 = vpop.permute.xlu0 %1725
      %1727 = vrot.lane.b32.xlu0 %v1694, 16
      %v1728 = vpop.permute.xlu0 %1727
      %1729 = vrot.lane.b32.xlu0 %v1695, 16
      %v1730 = vpop.permute.xlu0 %1729
      %1731 = vrot.lane.b32.xlu0 %v1696, 16
      %v1732 = vpop.permute.xlu0 %1731
      %1733 = vrot.lane.b32.xlu0 %v1697, 16
      %v1734 = vpop.permute.xlu0 %1733
      %1735 = vrot.lane.b32.xlu0 %v1698, 16
      %v1736 = vpop.permute.xlu0 %1735
      %1737 = vrot.lane.b32.xlu0 %v1699, 16
      %v1738 = vpop.permute.xlu0 %1737
      %1739 = vrot.lane.b32.xlu0 %v1700, 16
      %v1740 = vpop.permute.xlu0 %1739
      %1741 = vrot.lane.b32.xlu0 %v1701, 16
      %v1742 = vpop.permute.xlu0 %1741
      %1743 = vrot.lane.b32.xlu0 %v1702, 16
      %v1744 = vpop.permute.xlu0 %1743
      %1745 = vrot.lane.b32.xlu0 %v1703, 16
      %v1746 = vpop.permute.xlu0 %1745
      %1747 = vrot.lane.b32.xlu0 %v1704, 16
      %v1748 = vpop.permute.xlu0 %1747
      %1749 = vrot.lane.b32.xlu0 %v1705, 16
      %v1750 = vpop.permute.xlu0 %1749
      %1751 = vrot.lane.b32.xlu0 %v1706, 16
      %v1752 = vpop.permute.xlu0 %1751
      %1753 = vrot.lane.b32.xlu0 %v1707, 16
      %v1754 = vpop.permute.xlu0 %1753
      %1755 = vrot.lane.b32.xlu0 %v1708, 16
      %v1756 = vpop.permute.xlu0 %1755
      %v1757 = vadd.f32 %v1661, %v1710
      %v1758 = vadd.f32 %v1662, %v1712
      %v1759 = vadd.f32 %v1663, %v1714
      %v1760 = vadd.f32 %v1664, %v1716
      %v1761 = vadd.f32 %v1665, %v1718
      %v1762 = vadd.f32 %v1666, %v1720
      %v1763 = vadd.f32 %v1667, %v1722
      %v1764 = vadd.f32 %v1668, %v1724
      %v1765 = vadd.f32 %v1669, %v1726
      %v1766 = vadd.f32 %v1670, %v1728
      %v1767 = vadd.f32 %v1671, %v1730
      %v1768 = vadd.f32 %v1672, %v1732
      %v1769 = vadd.f32 %v1673, %v1734
      %v1770 = vadd.f32 %v1674, %v1736
      %v1771 = vadd.f32 %v1675, %v1738
      %v1772 = vadd.f32 %v1676, %v1740
      %v1773 = vadd.f32 %v1677, %v1742
      %v1774 = vadd.f32 %v1678, %v1744
      %v1775 = vadd.f32 %v1679, %v1746
      %v1776 = vadd.f32 %v1680, %v1748
      %v1777 = vadd.f32 %v1681, %v1750
      %v1778 = vadd.f32 %v1682, %v1752
      %v1779 = vadd.f32 %v1683, %v1754
      %v1780 = vadd.f32 %v1684, %v1756
      %v1781 = vld [vmem:[#allocation2 + $0xc0] sm:$0xff]
      %v1782 = vld [vmem:[#allocation2 + $0xc8] sm:$0xff]
      %1783 = vrot.lane.b32.xlu0 %v1567, 24
      %v1784 = vpop.permute.xlu0 %1783
      %1785 = vrot.lane.b32.xlu0 %v1568, 24
      %v1786 = vpop.permute.xlu0 %1785
      %1787 = vrot.lane.b32.xlu0 %v1569, 24
      %v1788 = vpop.permute.xlu0 %1787
      %1789 = vrot.lane.b32.xlu0 %v1570, 24
      %v1790 = vpop.permute.xlu0 %1789
      %1791 = vrot.lane.b32.xlu0 %v1571, 24
      %v1792 = vpop.permute.xlu0 %1791
      %1793 = vrot.lane.b32.xlu0 %v1572, 24
      %v1794 = vpop.permute.xlu0 %1793
      %1795 = vrot.lane.b32.xlu0 %v1573, 24
      %v1796 = vpop.permute.xlu0 %1795
      %1797 = vrot.lane.b32.xlu0 %v1574, 24
      %v1798 = vpop.permute.xlu0 %1797
      %1799 = vrot.lane.b32.xlu0 %v1575, 24
      %v1800 = vpop.permute.xlu0 %1799
      %1801 = vrot.lane.b32.xlu0 %v1576, 24
      %v1802 = vpop.permute.xlu0 %1801
      %1803 = vrot.lane.b32.xlu0 %v1577, 24
      %v1804 = vpop.permute.xlu0 %1803
      %1805 = vrot.lane.b32.xlu0 %v1578, 24
      %v1806 = vpop.permute.xlu0 %1805
      %1807 = vrot.lane.b32.xlu0 %v1579, 24
      %v1808 = vpop.permute.xlu0 %1807
      %1809 = vrot.lane.b32.xlu0 %v1580, 24
      %v1810 = vpop.permute.xlu0 %1809
      %1811 = vrot.lane.b32.xlu0 %v1581, 24
      %v1812 = vpop.permute.xlu0 %1811
      %1813 = vrot.lane.b32.xlu0 %v1582, 24
      %v1814 = vpop.permute.xlu0 %1813
      %1815 = vrot.lane.b32.xlu0 %v1583, 24
      %v1816 = vpop.permute.xlu0 %1815
      %1817 = vrot.lane.b32.xlu0 %v1584, 24
      %v1818 = vpop.permute.xlu0 %1817
      %1819 = vrot.lane.b32.xlu0 %v1585, 24
      %v1820 = vpop.permute.xlu0 %1819
      %1821 = vrot.lane.b32.xlu0 %v1586, 24
      %v1822 = vpop.permute.xlu0 %1821
      %1823 = vrot.lane.b32.xlu0 %v1587, 24
      %v1824 = vpop.permute.xlu0 %1823
      %1825 = vrot.lane.b32.xlu0 %v1588, 24
      %v1826 = vpop.permute.xlu0 %1825
      %1827 = vrot.lane.b32.xlu0 %v1781, 24
      %v1828 = vpop.permute.xlu0 %1827
      %1829 = vrot.lane.b32.xlu0 %v1782, 24
      %v1830 = vpop.permute.xlu0 %1829
      %v1831 = vadd.f32 %v1757, %v1784
      %v1832 = vadd.f32 %v1758, %v1786
      %v1833 = vadd.f32 %v1759, %v1788
      %v1834 = vadd.f32 %v1760, %v1790
      %v1835 = vadd.f32 %v1761, %v1792
      %v1836 = vadd.f32 %v1762, %v1794
      %v1837 = vadd.f32 %v1763, %v1796
      %v1838 = vadd.f32 %v1764, %v1798
      %v1839 = vadd.f32 %v1765, %v1800
      %v1840 = vadd.f32 %v1766, %v1802
      %v1841 = vadd.f32 %v1767, %v1804
      %v1842 = vadd.f32 %v1768, %v1806
      %v1843 = vadd.f32 %v1769, %v1808
      %v1844 = vadd.f32 %v1770, %v1810
      %v1845 = vadd.f32 %v1771, %v1812
      %v1846 = vadd.f32 %v1772, %v1814
      %v1847 = vadd.f32 %v1773, %v1816
      %v1848 = vadd.f32 %v1774, %v1818
      %v1849 = vadd.f32 %v1775, %v1820
      %v1850 = vadd.f32 %v1776, %v1822
      %v1851 = vadd.f32 %v1777, %v1824
      %v1852 = vadd.f32 %v1778, %v1826
      %v1853 = vadd.f32 %v1779, %v1828
      %v1854 = vadd.f32 %v1780, %v1830
      %v1855 = vld [vmem:[#allocation2 + $0xc1] sm:$0xff]
      %v1856 = vld [vmem:[#allocation2 + $0xc9] sm:$0xff]
      %1857 = vrot.lane.b32.xlu0 %v1591, 32
      %v1858 = vpop.permute.xlu0 %1857
      %1859 = vrot.lane.b32.xlu0 %v1592, 32
      %v1860 = vpop.permute.xlu0 %1859
      %1861 = vrot.lane.b32.xlu0 %v1593, 32
      %v1862 = vpop.permute.xlu0 %1861
      %1863 = vrot.lane.b32.xlu0 %v1594, 32
      %v1864 = vpop.permute.xlu0 %1863
      %1865 = vrot.lane.b32.xlu0 %v1595, 32
      %v1866 = vpop.permute.xlu0 %1865
      %1867 = vrot.lane.b32.xlu0 %v1596, 32
      %v1868 = vpop.permute.xlu0 %1867
      %1869 = vrot.lane.b32.xlu0 %v1597, 32
      %v1870 = vpop.permute.xlu0 %1869
      %1871 = vrot.lane.b32.xlu0 %v1598, 32
      %v1872 = vpop.permute.xlu0 %1871
      %1873 = vrot.lane.b32.xlu0 %v1599, 32
      %v1874 = vpop.permute.xlu0 %1873
      %1875 = vrot.lane.b32.xlu0 %v1600, 32
      %v1876 = vpop.permute.xlu0 %1875
      %1877 = vrot.lane.b32.xlu0 %v1601, 32
      %v1878 = vpop.permute.xlu0 %1877
      %1879 = vrot.lane.b32.xlu0 %v1602, 32
      %v1880 = vpop.permute.xlu0 %1879
      %1881 = vrot.lane.b32.xlu0 %v1603, 32
      %v1882 = vpop.permute.xlu0 %1881
      %1883 = vrot.lane.b32.xlu0 %v1604, 32
      %v1884 = vpop.permute.xlu0 %1883
      %1885 = vrot.lane.b32.xlu0 %v1605, 32
      %v1886 = vpop.permute.xlu0 %1885
      %1887 = vrot.lane.b32.xlu0 %v1606, 32
      %v1888 = vpop.permute.xlu0 %1887
      %1889 = vrot.lane.b32.xlu0 %v1607, 32
      %v1890 = vpop.permute.xlu0 %1889
      %1891 = vrot.lane.b32.xlu0 %v1608, 32
      %v1892 = vpop.permute.xlu0 %1891
      %1893 = vrot.lane.b32.xlu0 %v1609, 32
      %v1894 = vpop.permute.xlu0 %1893
      %1895 = vrot.lane.b32.xlu0 %v1610, 32
      %v1896 = vpop.permute.xlu0 %1895
      %1897 = vrot.lane.b32.xlu0 %v1611, 32
      %v1898 = vpop.permute.xlu0 %1897
      %1899 = vrot.lane.b32.xlu0 %v1612, 32
      %v1900 = vpop.permute.xlu0 %1899
      %1901 = vrot.lane.b32.xlu0 %v1855, 32
      %v1902 = vpop.permute.xlu0 %1901
      %1903 = vrot.lane.b32.xlu0 %v1856, 32
      %v1904 = vpop.permute.xlu0 %1903
      %v1905 = vadd.f32 %v1831, %v1858
      %v1906 = vadd.f32 %v1832, %v1860
      %v1907 = vadd.f32 %v1833, %v1862
      %v1908 = vadd.f32 %v1834, %v1864
      %v1909 = vadd.f32 %v1835, %v1866
      %v1910 = vadd.f32 %v1836, %v1868
      %v1911 = vadd.f32 %v1837, %v1870
      %v1912 = vadd.f32 %v1838, %v1872
      %v1913 = vadd.f32 %v1839, %v1874
      %v1914 = vadd.f32 %v1840, %v1876
      %v1915 = vadd.f32 %v1841, %v1878
      %v1916 = vadd.f32 %v1842, %v1880
      %v1917 = vadd.f32 %v1843, %v1882
      %v1918 = vadd.f32 %v1844, %v1884
      %v1919 = vadd.f32 %v1845, %v1886
      %v1920 = vadd.f32 %v1846, %v1888
      %v1921 = vadd.f32 %v1847, %v1890
      %v1922 = vadd.f32 %v1848, %v1892
      %v1923 = vadd.f32 %v1849, %v1894
      %v1924 = vadd.f32 %v1850, %v1896
      %v1925 = vadd.f32 %v1851, %v1898
      %v1926 = vadd.f32 %v1852, %v1900
      %v1927 = vadd.f32 %v1853, %v1902
      %v1928 = vadd.f32 %v1854, %v1904
      %v1929 = vld [vmem:[#allocation2 + $0xc2] sm:$0xff]
      %v1930 = vld [vmem:[#allocation2 + $0xca] sm:$0xff]
      %1931 = vrot.lane.b32.xlu0 %v1687, 40
      %v1932 = vpop.permute.xlu0 %1931
      %1933 = vrot.lane.b32.xlu0 %v1688, 40
      %v1934 = vpop.permute.xlu0 %1933
      %1935 = vrot.lane.b32.xlu0 %v1689, 40
      %v1936 = vpop.permute.xlu0 %1935
      %1937 = vrot.lane.b32.xlu0 %v1690, 40
      %v1938 = vpop.permute.xlu0 %1937
      %1939 = vrot.lane.b32.xlu0 %v1691, 40
      %v1940 = vpop.permute.xlu0 %1939
      %1941 = vrot.lane.b32.xlu0 %v1692, 40
      %v1942 = vpop.permute.xlu0 %1941
      %1943 = vrot.lane.b32.xlu0 %v1693, 40
      %v1944 = vpop.permute.xlu0 %1943
      %1945 = vrot.lane.b32.xlu0 %v1694, 40
      %v1946 = vpop.permute.xlu0 %1945
      %1947 = vrot.lane.b32.xlu0 %v1695, 40
      %v1948 = vpop.permute.xlu0 %1947
      %1949 = vrot.lane.b32.xlu0 %v1696, 40
      %v1950 = vpop.permute.xlu0 %1949
      %1951 = vrot.lane.b32.xlu0 %v1697, 40
      %v1952 = vpop.permute.xlu0 %1951
      %1953 = vrot.lane.b32.xlu0 %v1698, 40
      %v1954 = vpop.permute.xlu0 %1953
      %1955 = vrot.lane.b32.xlu0 %v1699, 40
      %v1956 = vpop.permute.xlu0 %1955
      %1957 = vrot.lane.b32.xlu0 %v1700, 40
      %v1958 = vpop.permute.xlu0 %1957
      %1959 = vrot.lane.b32.xlu0 %v1701, 40
      %v1960 = vpop.permute.xlu0 %1959
      %1961 = vrot.lane.b32.xlu0 %v1702, 40
      %v1962 = vpop.permute.xlu0 %1961
      %1963 = vrot.lane.b32.xlu0 %v1703, 40
      %v1964 = vpop.permute.xlu0 %1963
      %1965 = vrot.lane.b32.xlu0 %v1704, 40
      %v1966 = vpop.permute.xlu0 %1965
      %1967 = vrot.lane.b32.xlu0 %v1705, 40
      %v1968 = vpop.permute.xlu0 %1967
      %1969 = vrot.lane.b32.xlu0 %v1706, 40
      %v1970 = vpop.permute.xlu0 %1969
      %1971 = vrot.lane.b32.xlu0 %v1707, 40
      %v1972 = vpop.permute.xlu0 %1971
      %1973 = vrot.lane.b32.xlu0 %v1708, 40
      %v1974 = vpop.permute.xlu0 %1973
      %1975 = vrot.lane.b32.xlu0 %v1929, 40
      %v1976 = vpop.permute.xlu0 %1975
      %1977 = vrot.lane.b32.xlu0 %v1930, 40
      %v1978 = vpop.permute.xlu0 %1977
      %v1979 = vadd.f32 %v1905, %v1932
      %v1980 = vadd.f32 %v1906, %v1934
      %v1981 = vadd.f32 %v1907, %v1936
      %v1982 = vadd.f32 %v1908, %v1938
      %v1983 = vadd.f32 %v1909, %v1940
      %v1984 = vadd.f32 %v1910, %v1942
      %v1985 = vadd.f32 %v1911, %v1944
      %v1986 = vadd.f32 %v1912, %v1946
      %v1987 = vadd.f32 %v1913, %v1948
      %v1988 = vadd.f32 %v1914, %v1950
      %v1989 = vadd.f32 %v1915, %v1952
      %v1990 = vadd.f32 %v1916, %v1954
      %v1991 = vadd.f32 %v1917, %v1956
      %v1992 = vadd.f32 %v1918, %v1958
      %v1993 = vadd.f32 %v1919, %v1960
      %v1994 = vadd.f32 %v1920, %v1962
      %v1995 = vadd.f32 %v1921, %v1964
      %v1996 = vadd.f32 %v1922, %v1966
      %v1997 = vadd.f32 %v1923, %v1968
      %v1998 = vadd.f32 %v1924, %v1970
      %v1999 = vadd.f32 %v1925, %v1972
      %v2000 = vadd.f32 %v1926, %v1974
      %v2001 = vadd.f32 %v1927, %v1976
      %v2002 = vadd.f32 %v1928, %v1978
      %v2003 = vld [vmem:[#allocation2 + $0xd0] sm:$0xff]
      %v2004 = vld [vmem:[#allocation2 + $0xd8] sm:$0xff]
      %2005 = vrot.lane.b32.xlu0 %v1569, 48
      %v2006 = vpop.permute.xlu0 %2005
      %2007 = vrot.lane.b32.xlu0 %v1570, 48
      %v2008 = vpop.permute.xlu0 %2007
      %2009 = vrot.lane.b32.xlu0 %v1571, 48
      %v2010 = vpop.permute.xlu0 %2009
      %2011 = vrot.lane.b32.xlu0 %v1572, 48
      %v2012 = vpop.permute.xlu0 %2011
      %2013 = vrot.lane.b32.xlu0 %v1573, 48
      %v2014 = vpop.permute.xlu0 %2013
      %2015 = vrot.lane.b32.xlu0 %v1574, 48
      %v2016 = vpop.permute.xlu0 %2015
      %2017 = vrot.lane.b32.xlu0 %v1575, 48
      %v2018 = vpop.permute.xlu0 %2017
      %2019 = vrot.lane.b32.xlu0 %v1576, 48
      %v2020 = vpop.permute.xlu0 %2019
      %2021 = vrot.lane.b32.xlu0 %v1577, 48
      %v2022 = vpop.permute.xlu0 %2021
      %2023 = vrot.lane.b32.xlu0 %v1578, 48
      %v2024 = vpop.permute.xlu0 %2023
      %2025 = vrot.lane.b32.xlu0 %v1579, 48
      %v2026 = vpop.permute.xlu0 %2025
      %2027 = vrot.lane.b32.xlu0 %v1580, 48
      %v2028 = vpop.permute.xlu0 %2027
      %2029 = vrot.lane.b32.xlu0 %v1581, 48
      %v2030 = vpop.permute.xlu0 %2029
      %2031 = vrot.lane.b32.xlu0 %v1582, 48
      %v2032 = vpop.permute.xlu0 %2031
      %2033 = vrot.lane.b32.xlu0 %v1583, 48
      %v2034 = vpop.permute.xlu0 %2033
      %2035 = vrot.lane.b32.xlu0 %v1584, 48
      %v2036 = vpop.permute.xlu0 %2035
      %2037 = vrot.lane.b32.xlu0 %v1585, 48
      %v2038 = vpop.permute.xlu0 %2037
      %2039 = vrot.lane.b32.xlu0 %v1586, 48
      %v2040 = vpop.permute.xlu0 %2039
      %2041 = vrot.lane.b32.xlu0 %v1587, 48
      %v2042 = vpop.permute.xlu0 %2041
      %2043 = vrot.lane.b32.xlu0 %v1588, 48
      %v2044 = vpop.permute.xlu0 %2043
      %2045 = vrot.lane.b32.xlu0 %v1781, 48
      %v2046 = vpop.permute.xlu0 %2045
      %2047 = vrot.lane.b32.xlu0 %v1782, 48
      %v2048 = vpop.permute.xlu0 %2047
      %2049 = vrot.lane.b32.xlu0 %v2003, 48
      %v2050 = vpop.permute.xlu0 %2049
      %2051 = vrot.lane.b32.xlu0 %v2004, 48
      %v2052 = vpop.permute.xlu0 %2051
      %v2053 = vadd.f32 %v1979, %v2006
      %v2054 = vadd.f32 %v1980, %v2008
      %v2055 = vadd.f32 %v1981, %v2010
      %v2056 = vadd.f32 %v1982, %v2012
      %v2057 = vadd.f32 %v1983, %v2014
      %v2058 = vadd.f32 %v1984, %v2016
      %v2059 = vadd.f32 %v1985, %v2018
      %v2060 = vadd.f32 %v1986, %v2020
      %v2061 = vadd.f32 %v1987, %v2022
      %v2062 = vadd.f32 %v1988, %v2024
      %v2063 = vadd.f32 %v1989, %v2026
      %v2064 = vadd.f32 %v1990, %v2028
      %v2065 = vadd.f32 %v1991, %v2030
      %v2066 = vadd.f32 %v1992, %v2032
      %v2067 = vadd.f32 %v1993, %v2034
      %v2068 = vadd.f32 %v1994, %v2036
      %v2069 = vadd.f32 %v1995, %v2038
      %v2070 = vadd.f32 %v1996, %v2040
      %v2071 = vadd.f32 %v1997, %v2042
      %v2072 = vadd.f32 %v1998, %v2044
      %v2073 = vadd.f32 %v1999, %v2046
      %v2074 = vadd.f32 %v2000, %v2048
      %v2075 = vadd.f32 %v2001, %v2050
      %v2076 = vadd.f32 %v2002, %v2052
      %v2077 = vld [vmem:[#allocation2 + $0xd1] sm:$0xff]
      %v2078 = vld [vmem:[#allocation2 + $0xd9] sm:$0xff]
      %2079 = vrot.lane.b32.xlu0 %v1593, 56
      %v2080 = vpop.permute.xlu0 %2079
      %2081 = vrot.lane.b32.xlu0 %v1594, 56
      %v2082 = vpop.permute.xlu0 %2081
      %2083 = vrot.lane.b32.xlu0 %v1595, 56
      %v2084 = vpop.permute.xlu0 %2083
      %2085 = vrot.lane.b32.xlu0 %v1596, 56
      %v2086 = vpop.permute.xlu0 %2085
      %2087 = vrot.lane.b32.xlu0 %v1597, 56
      %v2088 = vpop.permute.xlu0 %2087
      %2089 = vrot.lane.b32.xlu0 %v1598, 56
      %v2090 = vpop.permute.xlu0 %2089
      %2091 = vrot.lane.b32.xlu0 %v1599, 56
      %v2092 = vpop.permute.xlu0 %2091
      %2093 = vrot.lane.b32.xlu0 %v1600, 56
      %v2094 = vpop.permute.xlu0 %2093
      %2095 = vrot.lane.b32.xlu0 %v1601, 56
      %v2096 = vpop.permute.xlu0 %2095
      %2097 = vrot.lane.b32.xlu0 %v1602, 56
      %v2098 = vpop.permute.xlu0 %2097
      %2099 = vrot.lane.b32.xlu0 %v1603, 56
      %v2100 = vpop.permute.xlu0 %2099
      %2101 = vrot.lane.b32.xlu0 %v1604, 56
      %v2102 = vpop.permute.xlu0 %2101
      %2103 = vrot.lane.b32.xlu0 %v1605, 56
      %v2104 = vpop.permute.xlu0 %2103
      %2105 = vrot.lane.b32.xlu0 %v1606, 56
      %v2106 = vpop.permute.xlu0 %2105
      %2107 = vrot.lane.b32.xlu0 %v1607, 56
      %v2108 = vpop.permute.xlu0 %2107
      %2109 = vrot.lane.b32.xlu0 %v1608, 56
      %v2110 = vpop.permute.xlu0 %2109
      %2111 = vrot.lane.b32.xlu0 %v1609, 56
      %v2112 = vpop.permute.xlu0 %2111
      %2113 = vrot.lane.b32.xlu0 %v1610, 56
      %v2114 = vpop.permute.xlu0 %2113
      %2115 = vrot.lane.b32.xlu0 %v1611, 56
      %v2116 = vpop.permute.xlu0 %2115
      %2117 = vrot.lane.b32.xlu0 %v1612, 56
      %v2118 = vpop.permute.xlu0 %2117
      %2119 = vrot.lane.b32.xlu0 %v1855, 56
      %v2120 = vpop.permute.xlu0 %2119
      %2121 = vrot.lane.b32.xlu0 %v1856, 56
      %v2122 = vpop.permute.xlu0 %2121
      %2123 = vrot.lane.b32.xlu0 %v2077, 56
      %v2124 = vpop.permute.xlu0 %2123
      %2125 = vrot.lane.b32.xlu0 %v2078, 56
      %v2126 = vpop.permute.xlu0 %2125
      %v2127 = vadd.f32 %v2053, %v2080
      %v2128 = vadd.f32 %v2054, %v2082
      %v2129 = vadd.f32 %v2055, %v2084
      %v2130 = vadd.f32 %v2056, %v2086
      %v2131 = vadd.f32 %v2057, %v2088
      %v2132 = vadd.f32 %v2058, %v2090
      %v2133 = vadd.f32 %v2059, %v2092
      %v2134 = vadd.f32 %v2060, %v2094
      %v2135 = vadd.f32 %v2061, %v2096
      %v2136 = vadd.f32 %v2062, %v2098
      %v2137 = vadd.f32 %v2063, %v2100
      %v2138 = vadd.f32 %v2064, %v2102
      %v2139 = vadd.f32 %v2065, %v2104
      %v2140 = vadd.f32 %v2066, %v2106
      %v2141 = vadd.f32 %v2067, %v2108
      %v2142 = vadd.f32 %v2068, %v2110
      %v2143 = vadd.f32 %v2069, %v2112
      %v2144 = vadd.f32 %v2070, %v2114
      %v2145 = vadd.f32 %v2071, %v2116
      %v2146 = vadd.f32 %v2072, %v2118
      %v2147 = vadd.f32 %v2073, %v2120
      %v2148 = vadd.f32 %v2074, %v2122
      %v2149 = vadd.f32 %v2075, %v2124
      %v2150 = vadd.f32 %v2076, %v2126
      %v2151 = vld [vmem:[#allocation2 + $0xd2] sm:$0xff]
      %v2152 = vld [vmem:[#allocation2 + $0xda] sm:$0xff]
      %2153 = vrot.lane.b32.xlu0 %v1689, 64
      %v2154 = vpop.permute.xlu0 %2153
      %2155 = vrot.lane.b32.xlu0 %v1690, 64
      %v2156 = vpop.permute.xlu0 %2155
      %2157 = vrot.lane.b32.xlu0 %v1691, 64
      %v2158 = vpop.permute.xlu0 %2157
      %2159 = vrot.lane.b32.xlu0 %v1692, 64
      %v2160 = vpop.permute.xlu0 %2159
      %2161 = vrot.lane.b32.xlu0 %v1693, 64
      %v2162 = vpop.permute.xlu0 %2161
      %2163 = vrot.lane.b32.xlu0 %v1694, 64
      %v2164 = vpop.permute.xlu0 %2163
      %2165 = vrot.lane.b32.xlu0 %v1695, 64
      %v2166 = vpop.permute.xlu0 %2165
      %2167 = vrot.lane.b32.xlu0 %v1696, 64
      %v2168 = vpop.permute.xlu0 %2167
      %2169 = vrot.lane.b32.xlu0 %v1697, 64
      %v2170 = vpop.permute.xlu0 %2169
      %2171 = vrot.lane.b32.xlu0 %v1698, 64
      %v2172 = vpop.permute.xlu0 %2171
      %2173 = vrot.lane.b32.xlu0 %v1699, 64
      %v2174 = vpop.permute.xlu0 %2173
      %2175 = vrot.lane.b32.xlu0 %v1700, 64
      %v2176 = vpop.permute.xlu0 %2175
      %2177 = vrot.lane.b32.xlu0 %v1701, 64
      %v2178 = vpop.permute.xlu0 %2177
      %2179 = vrot.lane.b32.xlu0 %v1702, 64
      %v2180 = vpop.permute.xlu0 %2179
      %2181 = vrot.lane.b32.xlu0 %v1703, 64
      %v2182 = vpop.permute.xlu0 %2181
      %2183 = vrot.lane.b32.xlu0 %v1704, 64
      %v2184 = vpop.permute.xlu0 %2183
      %2185 = vrot.lane.b32.xlu0 %v1705, 64
      %v2186 = vpop.permute.xlu0 %2185
      %2187 = vrot.lane.b32.xlu0 %v1706, 64
      %v2188 = vpop.permute.xlu0 %2187
      %2189 = vrot.lane.b32.xlu0 %v1707, 64
      %v2190 = vpop.permute.xlu0 %2189
      %2191 = vrot.lane.b32.xlu0 %v1708, 64
      %v2192 = vpop.permute.xlu0 %2191
      %2193 = vrot.lane.b32.xlu0 %v1929, 64
      %v2194 = vpop.permute.xlu0 %2193
      %2195 = vrot.lane.b32.xlu0 %v1930, 64
      %v2196 = vpop.permute.xlu0 %2195
      %2197 = vrot.lane.b32.xlu0 %v2151, 64
      %v2198 = vpop.permute.xlu0 %2197
      %2199 = vrot.lane.b32.xlu0 %v2152, 64
      %v2200 = vpop.permute.xlu0 %2199
      %v2201 = vadd.f32 %v2127, %v2154
      %v2202 = vadd.f32 %v2128, %v2156
      %v2203 = vadd.f32 %v2129, %v2158
      %v2204 = vadd.f32 %v2130, %v2160
      %v2205 = vadd.f32 %v2131, %v2162
      %v2206 = vadd.f32 %v2132, %v2164
      %v2207 = vadd.f32 %v2133, %v2166
      %v2208 = vadd.f32 %v2134, %v2168
      %v2209 = vadd.f32 %v2135, %v2170
      %v2210 = vadd.f32 %v2136, %v2172
      %v2211 = vadd.f32 %v2137, %v2174
      %v2212 = vadd.f32 %v2138, %v2176
      %v2213 = vadd.f32 %v2139, %v2178
      %v2214 = vadd.f32 %v2140, %v2180
      %v2215 = vadd.f32 %v2141, %v2182
      %v2216 = vadd.f32 %v2142, %v2184
      %v2217 = vadd.f32 %v2143, %v2186
      %v2218 = vadd.f32 %v2144, %v2188
      %v2219 = vadd.f32 %v2145, %v2190
      %v2220 = vadd.f32 %v2146, %v2192
      %v2221 = vadd.f32 %v2147, %v2194
      %v2222 = vadd.f32 %v2148, %v2196
      %v2223 = vadd.f32 %v2149, %v2198
      %v2224 = vadd.f32 %v2150, %v2200
      %v2225 = vld [vmem:[%s3] sm:$0xff]
      %v2226 = vld [vmem:[%s3 + $0x8] sm:$0xff]
      %v2227 = vld [vmem:[%s3 + $0x10] sm:$0xff]
      %v2228 = vld [vmem:[%s3 + $0x18] sm:$0xff]
      %v2229 = vld [vmem:[%s3 + $0x20] sm:$0xff]
      %v2230 = vld [vmem:[%s3 + $0x28] sm:$0xff]
      %v2231 = vld [vmem:[%s3 + $0x30] sm:$0xff]
      %v2232 = vld [vmem:[%s3 + $0x38] sm:$0xff]
      %v2233 = vld [vmem:[%s3 + $0x40] sm:$0xff]
      %v2234 = vld [vmem:[%s3 + $0x48] sm:$0xff]
      %v2235 = vld [vmem:[%s3 + $0x50] sm:$0xff]
      %v2236 = vld [vmem:[%s3 + $0x58] sm:$0xff]
      %v2237 = vld [vmem:[%s3 + $0x60] sm:$0xff]
      %v2238 = vld [vmem:[%s3 + $0x68] sm:$0xff]
      %v2239 = vld [vmem:[%s3 + $0x70] sm:$0xff]
      %v2240 = vld [vmem:[%s3 + $0x78] sm:$0xff]
      %v2241 = vld [vmem:[%s4] sm:$0x1]
      %v2243 = vlaneseq
      %v2244 = vshrl.u32 %v2243, 7
      %v2245 = vsub.s32 0, %v2244
      %v2246 = vrot.slane %v2241, %v2245
      %2248 = vmatprep.subr.mxu0 0.0
      %2249 = vmatpush1.msra.mxu0 %v2240
      %2250 = vmatprep.subr.mxu0 0.0
      %2251 = vmatpush1.msra.mxu0 %v2239
      %2252 = vmatprep.subr.mxu0 0.0
      %2253 = vmatpush1.msra.mxu0 %v2238
      %2254 = vmatprep.subr.mxu0 0.0
      %2255 = vmatpush1.msra.mxu0 %v2237
      %2256 = vmatprep.subr.mxu0 0.0
      %2257 = vmatpush1.msra.mxu0 %v2236
      %2258 = vmatprep.subr.mxu0 0.0
      %2259 = vmatpush1.msra.mxu0 %v2235
      %2260 = vmatprep.subr.mxu0 0.0
      %2261 = vmatpush1.msra.mxu0 %v2234
      %2262 = vmatprep.subr.mxu0 0.0
      %2263 = vmatpush1.msra.mxu0 %v2233
      %2264 = vmatprep.subr.mxu0 0.0
      %2265 = vmatpush1.msra.mxu0 %v2232
      %2266 = vmatprep.subr.mxu0 0.0
      %2267 = vmatpush1.msra.mxu0 %v2231
      %2268 = vmatprep.subr.mxu0 0.0
      %2269 = vmatpush1.msra.mxu0 %v2230
      %2270 = vmatprep.subr.mxu0 0.0
      %2271 = vmatpush1.msra.mxu0 %v2229
      %2272 = vmatprep.subr.mxu0 0.0
      %2273 = vmatpush1.msra.mxu0 %v2228
      %2274 = vmatprep.subr.mxu0 0.0
      %2275 = vmatpush1.msra.mxu0 %v2227
      %2276 = vmatprep.subr.mxu0 0.0
      %2277 = vmatpush1.msra.mxu0 %v2226
      %2278 = vmatprep.subr.mxu0 0.0
      %2279 = vmatpush1.msra.mxu0 %v2225
      %2280 = vmatprep.subr.mxu0 0.0
      %2281 = vmatpush2.msra.mxu0 0.0
      %2282 = vmatprep.subr.mxu0 0.0
      %2283 = vmatpush2.msra.mxu0 0.0
      %2284 = vmatprep.subr.mxu0 0.0
      %2285 = vmatpush2.msra.mxu0 0.0
      %2286 = vmatprep.subr.mxu0 0.0
      %2287 = vmatpush2.msra.mxu0 0.0
      %2288 = vmatprep.subr.mxu0 0.0
      %2289 = vmatpush2.msra.mxu0 0.0
      %2290 = vmatprep.subr.mxu0 0.0
      %2291 = vmatpush2.msra.mxu0 0.0
      %2292 = vmatprep.subr.mxu0 0.0
      %2293 = vmatpush2.msra.mxu0 0.0
      %2294 = vmatprep.subr.mxu0 0.0
      %2295 = vmatpush2.msra.mxu0 0.0
      %2296 = vmatprep.subr.mxu0 0.0
      %2297 = vmatpush2.msra.mxu0 0.0
      %2298 = vmatprep.subr.mxu0 0.0
      %2299 = vmatpush2.msra.mxu0 0.0
      %2300 = vmatprep.subr.mxu0 0.0
      %2301 = vmatpush2.msra.mxu0 0.0
      %2302 = vmatprep.subr.mxu0 0.0
      %2303 = vmatpush2.msra.mxu0 0.0
      %2304 = vmatprep.subr.mxu0 0.0
      %2305 = vmatpush2.msra.mxu0 0.0
      %2306 = vmatprep.subr.mxu0 0.0
      %2307 = vmatpush2.msra.mxu0 0.0
      %2308 = vmatprep.subr.mxu0 0.0
      %2309 = vmatpush2.msra.mxu0 0.0
      %2310 = vmatprep.subr.mxu0 0.0
      %2311 = vmatpush2.msra.mxu0 0.0
      %2312 = vmatprep.mubr.f32.mxu0 0.0
      %2313 = vmatmul.mubr.f32.gmra.mxu0 %v2201
      %v2314 = vpop.f32.mrf.mxu0
      %v2315 = vadd.f32 %v2246, %v2314
      %v2316 = vpop.f32.mrf.mxu0
      %2317 = vmatprep.mubr.f32.mxu0 0.0
      %2318 = vmatmul.mubr.f32.gmra.mxu0 %v2202
      %v2319 = vpop.f32.mrf.mxu0
      %v2320 = vadd.f32 %v2246, %v2319
      %v2321 = vpop.f32.mrf.mxu0
      %2322 = vmatprep.mubr.f32.mxu0 0.0
      %2323 = vmatmul.mubr.f32.gmra.mxu0 %v2203
      %v2324 = vpop.f32.mrf.mxu0
      %v2325 = vadd.f32 %v2246, %v2324
      %v2326 = vpop.f32.mrf.mxu0
      %2327 = vmatprep.mubr.f32.mxu0 0.0
      %2328 = vmatmul.mubr.f32.gmra.mxu0 %v2204
      %v2329 = vpop.f32.mrf.mxu0
      %v2330 = vadd.f32 %v2246, %v2329
      %v2331 = vpop.f32.mrf.mxu0
      %2332 = vmatprep.mubr.f32.mxu0 0.0
      %2333 = vmatmul.mubr.f32.gmra.mxu0 %v2205
      %v2334 = vpop.f32.mrf.mxu0
      %v2335 = vadd.f32 %v2246, %v2334
      %v2336 = vpop.f32.mrf.mxu0
      %2337 = vmatprep.mubr.f32.mxu0 0.0
      %2338 = vmatmul.mubr.f32.gmra.mxu0 %v2206
      %v2339 = vpop.f32.mrf.mxu0
      %v2340 = vadd.f32 %v2246, %v2339
      %v2341 = vpop.f32.mrf.mxu0
      %2342 = vmatprep.mubr.f32.mxu0 0.0
      %2343 = vmatmul.mubr.f32.gmra.mxu0 %v2207
      %v2344 = vpop.f32.mrf.mxu0
      %v2345 = vadd.f32 %v2246, %v2344
      %v2346 = vpop.f32.mrf.mxu0
      %2347 = vmatprep.mubr.f32.mxu0 0.0
      %2348 = vmatmul.mubr.f32.gmra.mxu0 %v2208
      %v2349 = vpop.f32.mrf.mxu0
      %v2350 = vadd.f32 %v2246, %v2349
      %v2351 = vpop.f32.mrf.mxu0
      %2352 = vmatprep.mubr.f32.mxu0 0.0
      %2353 = vmatmul.mubr.f32.gmra.mxu0 %v2209
      %v2354 = vpop.f32.mrf.mxu0
      %v2355 = vadd.f32 %v2246, %v2354
      %v2356 = vpop.f32.mrf.mxu0
      %2357 = vmatprep.mubr.f32.mxu0 0.0
      %2358 = vmatmul.mubr.f32.gmra.mxu0 %v2210
      %v2359 = vpop.f32.mrf.mxu0
      %v2360 = vadd.f32 %v2246, %v2359
      %v2361 = vpop.f32.mrf.mxu0
      %2362 = vmatprep.mubr.f32.mxu0 0.0
      %2363 = vmatmul.mubr.f32.gmra.mxu0 %v2211
      %v2364 = vpop.f32.mrf.mxu0
      %v2365 = vadd.f32 %v2246, %v2364
      %v2366 = vpop.f32.mrf.mxu0
      %2367 = vmatprep.mubr.f32.mxu0 0.0
      %2368 = vmatmul.mubr.f32.gmra.mxu0 %v2212
      %v2369 = vpop.f32.mrf.mxu0
      %v2370 = vadd.f32 %v2246, %v2369
      %v2371 = vpop.f32.mrf.mxu0
      %2372 = vmatprep.mubr.f32.mxu0 0.0
      %2373 = vmatmul.mubr.f32.gmra.mxu0 %v2213
      %v2374 = vpop.f32.mrf.mxu0
      %v2375 = vadd.f32 %v2246, %v2374
      %v2376 = vpop.f32.mrf.mxu0
      %2377 = vmatprep.mubr.f32.mxu0 0.0
      %2378 = vmatmul.mubr.f32.gmra.mxu0 %v2214
      %v2379 = vpop.f32.mrf.mxu0
      %v2380 = vadd.f32 %v2246, %v2379
      %v2381 = vpop.f32.mrf.mxu0
      %2382 = vmatprep.mubr.f32.mxu0 0.0
      %2383 = vmatmul.mubr.f32.gmra.mxu0 %v2215
      %v2384 = vpop.f32.mrf.mxu0
      %v2385 = vadd.f32 %v2246, %v2384
      %v2386 = vpop.f32.mrf.mxu0
      %2387 = vmatprep.mubr.f32.mxu0 0.0
      %2388 = vmatmul.mubr.f32.gmra.mxu0 %v2216
      %v2389 = vpop.f32.mrf.mxu0
      %v2390 = vadd.f32 %v2246, %v2389
      %v2391 = vpop.f32.mrf.mxu0
      %2392 = vmatprep.mubr.f32.mxu0 0.0
      %2393 = vmatmul.mubr.f32.gmra.mxu0 %v2217
      %v2394 = vpop.f32.mrf.mxu0
      %v2395 = vadd.f32 %v2246, %v2394
      %v2396 = vpop.f32.mrf.mxu0
      %2397 = vmatprep.mubr.f32.mxu0 0.0
      %2398 = vmatmul.mubr.f32.gmra.mxu0 %v2218
      %v2399 = vpop.f32.mrf.mxu0
      %v2400 = vadd.f32 %v2246, %v2399
      %v2401 = vpop.f32.mrf.mxu0
      %2402 = vmatprep.mubr.f32.mxu0 0.0
      %2403 = vmatmul.mubr.f32.gmra.mxu0 %v2219
      %v2404 = vpop.f32.mrf.mxu0
      %v2405 = vadd.f32 %v2246, %v2404
      %v2406 = vpop.f32.mrf.mxu0
      %2407 = vmatprep.mubr.f32.mxu0 0.0
      %2408 = vmatmul.mubr.f32.gmra.mxu0 %v2220
      %v2409 = vpop.f32.mrf.mxu0
      %v2410 = vadd.f32 %v2246, %v2409
      %v2411 = vpop.f32.mrf.mxu0
      %2412 = vmatprep.mubr.f32.mxu0 0.0
      %2413 = vmatmul.mubr.f32.gmra.mxu0 %v2221
      %v2414 = vpop.f32.mrf.mxu0
      %v2415 = vadd.f32 %v2246, %v2414
      %v2416 = vpop.f32.mrf.mxu0
      %2417 = vmatprep.mubr.f32.mxu0 0.0
      %2418 = vmatmul.mubr.f32.gmra.mxu0 %v2222
      %v2419 = vpop.f32.mrf.mxu0
      %v2420 = vadd.f32 %v2246, %v2419
      %v2421 = vpop.f32.mrf.mxu0
      %2422 = vmatprep.mubr.f32.mxu0 0.0
      %2423 = vmatmul.mubr.f32.gmra.mxu0 %v2223
      %v2424 = vpop.f32.mrf.mxu0
      %v2425 = vadd.f32 %v2246, %v2424
      %v2426 = vpop.f32.mrf.mxu0
      %2427 = vmatprep.mubr.f32.mxu0 0.0
      %2428 = vmatmul.mubr.f32.gmra.mxu0 %v2224
      %v2429 = vpop.f32.mrf.mxu0
      %v2430 = vadd.f32 %v2246, %v2429
      %v2431 = vpop.f32.mrf.mxu0
      %2432 = vdwg.mxu0
      %v2433 = vmax.f32 %v2315, 0.0
      %v2434 = vmax.f32 %v2320, 0.0
      %v2435 = vmax.f32 %v2325, 0.0
      %v2436 = vmax.f32 %v2330, 0.0
      %v2437 = vmax.f32 %v2335, 0.0
      %v2438 = vmax.f32 %v2340, 0.0
      %v2439 = vmax.f32 %v2345, 0.0
      %v2440 = vmax.f32 %v2350, 0.0
      %v2441 = vmax.f32 %v2355, 0.0
      %v2442 = vmax.f32 %v2360, 0.0
      %v2443 = vmax.f32 %v2365, 0.0
      %v2444 = vmax.f32 %v2370, 0.0
      %v2445 = vmax.f32 %v2375, 0.0
      %v2446 = vmax.f32 %v2380, 0.0
      %v2447 = vmax.f32 %v2385, 0.0
      %v2448 = vmax.f32 %v2390, 0.0
      %v2449 = vmax.f32 %v2395, 0.0
      %v2450 = vmax.f32 %v2400, 0.0
      %v2451 = vmax.f32 %v2405, 0.0
      %v2452 = vmax.f32 %v2410, 0.0
      %v2453 = vmax.f32 %v2415, 0.0
      %v2454 = vmax.f32 %v2420, 0.0
      %v2455 = vmax.f32 %v2425, 0.0
      %v2456 = vmax.f32 %v2430, 0.0
      %v2457 = vld [vmem:[%s5] sm:$0xff]
      %v2458 = vld [vmem:[%s5 + $0x8] sm:$0xff]
      %v2459 = vld [vmem:[%s5 + $0x10] sm:$0xff]
      %v2460 = vld [vmem:[%s5 + $0x18] sm:$0xff]
      %v2461 = vld [vmem:[%s5 + $0x20] sm:$0xff]
      %v2462 = vld [vmem:[%s5 + $0x28] sm:$0xff]
      %v2463 = vld [vmem:[%s5 + $0x30] sm:$0xff]
      %v2464 = vld [vmem:[%s5 + $0x38] sm:$0xff]
      %v2465 = vld [vmem:[%s5 + $0x40] sm:$0xff]
      %v2466 = vld [vmem:[%s5 + $0x48] sm:$0xff]
      %v2467 = vld [vmem:[%s5 + $0x50] sm:$0xff]
      %v2468 = vld [vmem:[%s5 + $0x58] sm:$0xff]
      %v2469 = vld [vmem:[%s5 + $0x60] sm:$0xff]
      %v2470 = vld [vmem:[%s5 + $0x68] sm:$0xff]
      %vm2471 = vcmask 523264
      %v2473 = vsel %vm2471, %v2458, 0
      %v2476 = vsel %vm2471, %v2460, 0
      %v2479 = vsel %vm2471, %v2462, 0
      %v2482 = vsel %vm2471, %v2464, 0
      %v2485 = vsel %vm2471, %v2466, 0
      %v2488 = vsel %vm2471, %v2468, 0
      %v2491 = vsel %vm2471, %v2470, 0
      %2493 = vmatprep.subr.mxu0 0.0
      %2494 = vmatpush1.msra.mxu0 %v2448
      %2495 = vmatprep.subr.mxu0 0.0
      %2496 = vmatpush1.msra.mxu0 %v2447
      %2497 = vmatprep.subr.mxu0 0.0
      %2498 = vmatpush1.msra.mxu0 %v2446
      %2499 = vmatprep.subr.mxu0 0.0
      %2500 = vmatpush1.msra.mxu0 %v2445
      %2501 = vmatprep.subr.mxu0 0.0
      %2502 = vmatpush1.msra.mxu0 %v2444
      %2503 = vmatprep.subr.mxu0 0.0
      %2504 = vmatpush1.msra.mxu0 %v2443
      %2505 = vmatprep.subr.mxu0 0.0
      %2506 = vmatpush1.msra.mxu0 %v2442
      %2507 = vmatprep.subr.mxu0 0.0
      %2508 = vmatpush1.msra.mxu0 %v2441
      %2509 = vmatprep.subr.mxu0 0.0
      %2510 = vmatpush1.msra.mxu0 %v2440
      %2511 = vmatprep.subr.mxu0 0.0
      %2512 = vmatpush1.msra.mxu0 %v2439
      %2513 = vmatprep.subr.mxu0 0.0
      %2514 = vmatpush1.msra.mxu0 %v2438
      %2515 = vmatprep.subr.mxu0 0.0
      %2516 = vmatpush1.msra.mxu0 %v2437
      %2517 = vmatprep.subr.mxu0 0.0
      %2518 = vmatpush1.msra.mxu0 %v2436
      %2519 = vmatprep.subr.mxu0 0.0
      %2520 = vmatpush1.msra.mxu0 %v2435
      %2521 = vmatprep.subr.mxu0 0.0
      %2522 = vmatpush1.msra.mxu0 %v2434
      %2523 = vmatprep.subr.mxu0 0.0
      %2524 = vmatpush1.msra.mxu0 %v2433
      %2525 = vmatprep.subr.mxu0 0.0
      %2526 = vmatpush2.msra.mxu0 0.0
      %2527 = vmatprep.subr.mxu0 0.0
      %2528 = vmatpush2.msra.mxu0 0.0
      %2529 = vmatprep.subr.mxu0 0.0
      %2530 = vmatpush2.msra.mxu0 0.0
      %2531 = vmatprep.subr.mxu0 0.0
      %2532 = vmatpush2.msra.mxu0 0.0
      %2533 = vmatprep.subr.mxu0 0.0
      %2534 = vmatpush2.msra.mxu0 0.0
      %2535 = vmatprep.subr.mxu0 0.0
      %2536 = vmatpush2.msra.mxu0 0.0
      %2537 = vmatprep.subr.mxu0 0.0
      %2538 = vmatpush2.msra.mxu0 0.0
      %2539 = vmatprep.subr.mxu0 0.0
      %2540 = vmatpush2.msra.mxu0 0.0
      %2541 = vmatprep.subr.mxu0 0.0
      %2542 = vmatpush2.msra.mxu0 %v2456
      %2543 = vmatprep.subr.mxu0 0.0
      %2544 = vmatpush2.msra.mxu0 %v2455
      %2545 = vmatprep.subr.mxu0 0.0
      %2546 = vmatpush2.msra.mxu0 %v2454
      %2547 = vmatprep.subr.mxu0 0.0
      %2548 = vmatpush2.msra.mxu0 %v2453
      %2549 = vmatprep.subr.mxu0 0.0
      %2550 = vmatpush2.msra.mxu0 %v2452
      %2551 = vmatprep.subr.mxu0 0.0
      %2552 = vmatpush2.msra.mxu0 %v2451
      %2553 = vmatprep.subr.mxu0 0.0
      %2554 = vmatpush2.msra.mxu0 %v2450
      %2555 = vmatprep.subr.mxu0 0.0
      %2556 = vmatpush2.msra.mxu0 %v2449
      %2557 = vmatprep.mubr.f32.mxu0 %v2473
      %2558 = vmatmul.mubr.f32.gmra.mxu0 %v2457
      %v2559 = vpop.f32.mrf.mxu0
      %v2560 = vadd.f32 0.0, %v2559
      %v2561 = vpop.f32.mrf.mxu0
      %2562 = vmatprep.mubr.f32.mxu0 %v2476
      %2563 = vmatmul.mubr.f32.gmra.mxu0 %v2459
      %v2564 = vpop.f32.mrf.mxu0
      %v2565 = vadd.f32 0.0, %v2564
      %v2566 = vpop.f32.mrf.mxu0
      %2567 = vmatprep.mubr.f32.mxu0 %v2479
      %2568 = vmatmul.mubr.f32.gmra.mxu0 %v2461
      %v2569 = vpop.f32.mrf.mxu0
      %v2570 = vadd.f32 0.0, %v2569
      %v2571 = vpop.f32.mrf.mxu0
      %2572 = vmatprep.mubr.f32.mxu0 %v2482
      %2573 = vmatmul.mubr.f32.gmra.mxu0 %v2463
      %v2574 = vpop.f32.mrf.mxu0
      %v2575 = vadd.f32 0.0, %v2574
      %v2576 = vpop.f32.mrf.mxu0
      %2577 = vmatprep.mubr.f32.mxu0 %v2485
      %2578 = vmatmul.mubr.f32.gmra.mxu0 %v2465
      %v2579 = vpop.f32.mrf.mxu0
      %v2580 = vadd.f32 0.0, %v2579
      %v2581 = vpop.f32.mrf.mxu0
      %2582 = vmatprep.mubr.f32.mxu0 %v2488
      %2583 = vmatmul.mubr.f32.gmra.mxu0 %v2467
      %v2584 = vpop.f32.mrf.mxu0
      %v2585 = vadd.f32 0.0, %v2584
      %v2586 = vpop.f32.mrf.mxu0
      %2587 = vmatprep.mubr.f32.mxu0 %v2491
      %2588 = vmatmul.mubr.f32.gmra.mxu0 %v2469
      %v2589 = vpop.f32.mrf.mxu0
      %v2590 = vadd.f32 0.0, %v2589
      %v2591 = vpop.f32.mrf.mxu0
      %2592 = vdwg.mxu0
      %v2593 = vld [vmem:[%s6] sm:$0xff]
      %v2594 = vld [vmem:[%s6 + $0x8] sm:$0xff]
      %v2595 = vld [vmem:[%s6 + $0x10] sm:$0xff]
      %v2596 = vld [vmem:[%s6 + $0x18] sm:$0xff]
      %v2597 = vld [vmem:[%s6 + $0x20] sm:$0xff]
      %v2598 = vld [vmem:[%s6 + $0x28] sm:$0xff]
      %v2599 = vld [vmem:[%s6 + $0x30] sm:$0xff]
      %2601 = vset.pattern.permute.xlu0 0
      %2602 = vperm.xlu0 %2601, %v2560
      %v2603 = vpop.permute.xlu0 %2602
      %2606 = vset.pattern.permute.xlu0 0
      %2607 = vperm.xlu0 %2606, %v2565
      %v2608 = vpop.permute.xlu0 %2607
      %2611 = vset.pattern.permute.xlu0 0
      %2612 = vperm.xlu0 %2611, %v2570
      %v2613 = vpop.permute.xlu0 %2612
      %2616 = vset.pattern.permute.xlu0 0
      %2617 = vperm.xlu0 %2616, %v2575
      %v2618 = vpop.permute.xlu0 %2617
      %2621 = vset.pattern.permute.xlu0 0
      %2622 = vperm.xlu0 %2621, %v2580
      %v2623 = vpop.permute.xlu0 %2622
      %2626 = vset.pattern.permute.xlu0 0
      %2627 = vperm.xlu0 %2626, %v2585
      %v2628 = vpop.permute.xlu0 %2627
      %2631 = vset.pattern.permute.xlu0 0
      %2632 = vperm.xlu0 %2631, %v2590
      %v2633 = vpop.permute.xlu0 %2632
      %v2635 = vmul.f32 %v2603, %v2593
      %v2636 = vmul.f32 %v2608, %v2594
      %v2637 = vmul.f32 %v2613, %v2595
      %v2638 = vmul.f32 %v2618, %v2596
      %v2639 = vmul.f32 %v2623, %v2597
      %v2640 = vmul.f32 %v2628, %v2598
      %v2641 = vmul.f32 %v2633, %v2599
      %s2642 = scalar_lea.vmem %s6, 56
      %v2643 = vld [vmem:[%s2642] sm:$0xff]
      %v2644 = vld [vmem:[%s2642 + $0x8] sm:$0xff]
      %v2645 = vld [vmem:[%s2642 + $0x10] sm:$0xff]
      %v2646 = vld [vmem:[%s2642 + $0x18] sm:$0xff]
      %v2647 = vld [vmem:[%s2642 + $0x20] sm:$0xff]
      %v2648 = vld [vmem:[%s2642 + $0x28] sm:$0xff]
      %v2649 = vld [vmem:[%s2642 + $0x30] sm:$0xff]
      %2650 = vset.pattern.permute.xlu0 1
      %2651 = vperm.xlu0 %2650, %v2560
      %v2652 = vpop.permute.xlu0 %2651
      %2654 = vset.pattern.permute.xlu0 1
      %2655 = vperm.xlu0 %2654, %v2565
      %v2656 = vpop.permute.xlu0 %2655
      %2658 = vset.pattern.permute.xlu0 1
      %2659 = vperm.xlu0 %2658, %v2570
      %v2660 = vpop.permute.xlu0 %2659
      %2662 = vset.pattern.permute.xlu0 1
      %2663 = vperm.xlu0 %2662, %v2575
      %v2664 = vpop.permute.xlu0 %2663
      %2666 = vset.pattern.permute.xlu0 1
      %2667 = vperm.xlu0 %2666, %v2580
      %v2668 = vpop.permute.xlu0 %2667
      %2670 = vset.pattern.permute.xlu0 1
      %2671 = vperm.xlu0 %2670, %v2585
      %v2672 = vpop.permute.xlu0 %2671
      %2674 = vset.pattern.permute.xlu0 1
      %2675 = vperm.xlu0 %2674, %v2590
      %v2676 = vpop.permute.xlu0 %2675
      %v2678 = vmul.f32 %v2652, %v2643
      %v2679 = vmul.f32 %v2656, %v2644
      %v2680 = vmul.f32 %v2660, %v2645
      %v2681 = vmul.f32 %v2664, %v2646
      %v2682 = vmul.f32 %v2668, %v2647
      %v2683 = vmul.f32 %v2672, %v2648
      %v2684 = vmul.f32 %v2676, %v2649
      %v2685 = vadd.f32 %v2635, %v2678
      %v2686 = vadd.f32 %v2636, %v2679
      %v2687 = vadd.f32 %v2637, %v2680
      %v2688 = vadd.f32 %v2638, %v2681
      %v2689 = vadd.f32 %v2639, %v2682
      %v2690 = vadd.f32 %v2640, %v2683
      %v2691 = vadd.f32 %v2641, %v2684
      %s2692 = scalar_lea.vmem %s6, 112
      %v2693 = vld [vmem:[%s2692] sm:$0xff]
      %v2694 = vld [vmem:[%s2692 + $0x8] sm:$0xff]
      %v2695 = vld [vmem:[%s2692 + $0x10] sm:$0xff]
      %v2696 = vld [vmem:[%s2692 + $0x18] sm:$0xff]
      %v2697 = vld [vmem:[%s2692 + $0x20] sm:$0xff]
      %v2698 = vld [vmem:[%s2692 + $0x28] sm:$0xff]
      %v2699 = vld [vmem:[%s2692 + $0x30] sm:$0xff]
      %2700 = vset.pattern.permute.xlu0 2
      %2701 = vperm.xlu0 %2700, %v2560
      %v2702 = vpop.permute.xlu0 %2701
      %2704 = vset.pattern.permute.xlu0 2
      %2705 = vperm.xlu0 %2704, %v2565
      %v2706 = vpop.permute.xlu0 %2705
      %2708 = vset.pattern.permute.xlu0 2
      %2709 = vperm.xlu0 %2708, %v2570
      %v2710 = vpop.permute.xlu0 %2709
      %2712 = vset.pattern.permute.xlu0 2
      %2713 = vperm.xlu0 %2712, %v2575
      %v2714 = vpop.permute.xlu0 %2713
      %2716 = vset.pattern.permute.xlu0 2
      %2717 = vperm.xlu0 %2716, %v2580
      %v2718 = vpop.permute.xlu0 %2717
      %2720 = vset.pattern.permute.xlu0 2
      %2721 = vperm.xlu0 %2720, %v2585
      %v2722 = vpop.permute.xlu0 %2721
      %2724 = vset.pattern.permute.xlu0 2
      %2725 = vperm.xlu0 %2724, %v2590
      %v2726 = vpop.permute.xlu0 %2725
      %v2728 = vmul.f32 %v2702, %v2693
      %v2729 = vmul.f32 %v2706, %v2694
      %v2730 = vmul.f32 %v2710, %v2695
      %v2731 = vmul.f32 %v2714, %v2696
      %v2732 = vmul.f32 %v2718, %v2697
      %v2733 = vmul.f32 %v2722, %v2698
      %v2734 = vmul.f32 %v2726, %v2699
      %v2735 = vadd.f32 %v2685, %v2728
      %v2736 = vadd.f32 %v2686, %v2729
      %v2737 = vadd.f32 %v2687, %v2730
      %v2738 = vadd.f32 %v2688, %v2731
      %v2739 = vadd.f32 %v2689, %v2732
      %v2740 = vadd.f32 %v2690, %v2733
      %v2741 = vadd.f32 %v2691, %v2734
      %s2742 = scalar_lea.vmem %s6, 168
      %v2743 = vld [vmem:[%s2742] sm:$0xff]
      %v2744 = vld [vmem:[%s2742 + $0x8] sm:$0xff]
      %v2745 = vld [vmem:[%s2742 + $0x10] sm:$0xff]
      %v2746 = vld [vmem:[%s2742 + $0x18] sm:$0xff]
      %v2747 = vld [vmem:[%s2742 + $0x20] sm:$0xff]
      %v2748 = vld [vmem:[%s2742 + $0x28] sm:$0xff]
      %v2749 = vld [vmem:[%s2742 + $0x30] sm:$0xff]
      %2750 = vset.pattern.permute.xlu0 3
      %2751 = vperm.xlu0 %2750, %v2560
      %v2752 = vpop.permute.xlu0 %2751
      %2754 = vset.pattern.permute.xlu0 3
      %2755 = vperm.xlu0 %2754, %v2565
      %v2756 = vpop.permute.xlu0 %2755
      %2758 = vset.pattern.permute.xlu0 3
      %2759 = vperm.xlu0 %2758, %v2570
      %v2760 = vpop.permute.xlu0 %2759
      %2762 = vset.pattern.permute.xlu0 3
      %2763 = vperm.xlu0 %2762, %v2575
      %v2764 = vpop.permute.xlu0 %2763
      %2766 = vset.pattern.permute.xlu0 3
      %2767 = vperm.xlu0 %2766, %v2580
      %v2768 = vpop.permute.xlu0 %2767
      %2770 = vset.pattern.permute.xlu0 3
      %2771 = vperm.xlu0 %2770, %v2585
      %v2772 = vpop.permute.xlu0 %2771
      %2774 = vset.pattern.permute.xlu0 3
      %2775 = vperm.xlu0 %2774, %v2590
      %v2776 = vpop.permute.xlu0 %2775
      %v2778 = vmul.f32 %v2752, %v2743
      %v2779 = vmul.f32 %v2756, %v2744
      %v2780 = vmul.f32 %v2760, %v2745
      %v2781 = vmul.f32 %v2764, %v2746
      %v2782 = vmul.f32 %v2768, %v2747
      %v2783 = vmul.f32 %v2772, %v2748
      %v2784 = vmul.f32 %v2776, %v2749
      %v2785 = vadd.f32 %v2735, %v2778
      %v2786 = vadd.f32 %v2736, %v2779
      %v2787 = vadd.f32 %v2737, %v2780
      %v2788 = vadd.f32 %v2738, %v2781
      %v2789 = vadd.f32 %v2739, %v2782
      %v2790 = vadd.f32 %v2740, %v2783
      %v2791 = vadd.f32 %v2741, %v2784
      %s2792 = scalar_lea.vmem %s6, 224
      %v2793 = vld [vmem:[%s2792] sm:$0xff]
      %v2794 = vld [vmem:[%s2792 + $0x8] sm:$0xff]
      %v2795 = vld [vmem:[%s2792 + $0x10] sm:$0xff]
      %v2796 = vld [vmem:[%s2792 + $0x18] sm:$0xff]
      %v2797 = vld [vmem:[%s2792 + $0x20] sm:$0xff]
      %v2798 = vld [vmem:[%s2792 + $0x28] sm:$0xff]
      %v2799 = vld [vmem:[%s2792 + $0x30] sm:$0xff]
      %2800 = vset.pattern.permute.xlu0 4
      %2801 = vperm.xlu0 %2800, %v2560
      %v2802 = vpop.permute.xlu0 %2801
      %2804 = vset.pattern.permute.xlu0 4
      %2805 = vperm.xlu0 %2804, %v2565
      %v2806 = vpop.permute.xlu0 %2805
      %2808 = vset.pattern.permute.xlu0 4
      %2809 = vperm.xlu0 %2808, %v2570
      %v2810 = vpop.permute.xlu0 %2809
      %2812 = vset.pattern.permute.xlu0 4
      %2813 = vperm.xlu0 %2812, %v2575
      %v2814 = vpop.permute.xlu0 %2813
      %2816 = vset.pattern.permute.xlu0 4
      %2817 = vperm.xlu0 %2816, %v2580
      %v2818 = vpop.permute.xlu0 %2817
      %2820 = vset.pattern.permute.xlu0 4
      %2821 = vperm.xlu0 %2820, %v2585
      %v2822 = vpop.permute.xlu0 %2821
      %2824 = vset.pattern.permute.xlu0 4
      %2825 = vperm.xlu0 %2824, %v2590
      %v2826 = vpop.permute.xlu0 %2825
      %v2828 = vmul.f32 %v2802, %v2793
      %v2829 = vmul.f32 %v2806, %v2794
      %v2830 = vmul.f32 %v2810, %v2795
      %v2831 = vmul.f32 %v2814, %v2796
      %v2832 = vmul.f32 %v2818, %v2797
      %v2833 = vmul.f32 %v2822, %v2798
      %v2834 = vmul.f32 %v2826, %v2799
      %v2835 = vadd.f32 %v2785, %v2828
      %v2836 = vadd.f32 %v2786, %v2829
      %v2837 = vadd.f32 %v2787, %v2830
      %v2838 = vadd.f32 %v2788, %v2831
      %v2839 = vadd.f32 %v2789, %v2832
      %v2840 = vadd.f32 %v2790, %v2833
      %v2841 = vadd.f32 %v2791, %v2834
      %s2842 = scalar_lea.vmem %s6, 280
      %v2843 = vld [vmem:[%s2842] sm:$0xff]
      %v2844 = vld [vmem:[%s2842 + $0x8] sm:$0xff]
      %v2845 = vld [vmem:[%s2842 + $0x10] sm:$0xff]
      %v2846 = vld [vmem:[%s2842 + $0x18] sm:$0xff]
      %v2847 = vld [vmem:[%s2842 + $0x20] sm:$0xff]
      %v2848 = vld [vmem:[%s2842 + $0x28] sm:$0xff]
      %v2849 = vld [vmem:[%s2842 + $0x30] sm:$0xff]
      %2850 = vset.pattern.permute.xlu0 5
      %2851 = vperm.xlu0 %2850, %v2560
      %v2852 = vpop.permute.xlu0 %2851
      %2854 = vset.pattern.permute.xlu0 5
      %2855 = vperm.xlu0 %2854, %v2565
      %v2856 = vpop.permute.xlu0 %2855
      %2858 = vset.pattern.permute.xlu0 5
      %2859 = vperm.xlu0 %2858, %v2570
      %v2860 = vpop.permute.xlu0 %2859
      %2862 = vset.pattern.permute.xlu0 5
      %2863 = vperm.xlu0 %2862, %v2575
      %v2864 = vpop.permute.xlu0 %2863
      %2866 = vset.pattern.permute.xlu0 5
      %2867 = vperm.xlu0 %2866, %v2580
      %v2868 = vpop.permute.xlu0 %2867
      %2870 = vset.pattern.permute.xlu0 5
      %2871 = vperm.xlu0 %2870, %v2585
      %v2872 = vpop.permute.xlu0 %2871
      %2874 = vset.pattern.permute.xlu0 5
      %2875 = vperm.xlu0 %2874, %v2590
      %v2876 = vpop.permute.xlu0 %2875
      %v2878 = vmul.f32 %v2852, %v2843
      %v2879 = vmul.f32 %v2856, %v2844
      %v2880 = vmul.f32 %v2860, %v2845
      %v2881 = vmul.f32 %v2864, %v2846
      %v2882 = vmul.f32 %v2868, %v2847
      %v2883 = vmul.f32 %v2872, %v2848
      %v2884 = vmul.f32 %v2876, %v2849
      %v2885 = vadd.f32 %v2835, %v2878
      %v2886 = vadd.f32 %v2836, %v2879
      %v2887 = vadd.f32 %v2837, %v2880
      %v2888 = vadd.f32 %v2838, %v2881
      %v2889 = vadd.f32 %v2839, %v2882
      %v2890 = vadd.f32 %v2840, %v2883
      %v2891 = vadd.f32 %v2841, %v2884
      %s2892 = scalar_lea.vmem %s6, 336
      %v2893 = vld [vmem:[%s2892] sm:$0xff]
      %v2894 = vld [vmem:[%s2892 + $0x8] sm:$0xff]
      %v2895 = vld [vmem:[%s2892 + $0x10] sm:$0xff]
      %v2896 = vld [vmem:[%s2892 + $0x18] sm:$0xff]
      %v2897 = vld [vmem:[%s2892 + $0x20] sm:$0xff]
      %v2898 = vld [vmem:[%s2892 + $0x28] sm:$0xff]
      %v2899 = vld [vmem:[%s2892 + $0x30] sm:$0xff]
      %2900 = vset.pattern.permute.xlu0 6
      %2901 = vperm.xlu0 %2900, %v2560
      %v2902 = vpop.permute.xlu0 %2901
      %2904 = vset.pattern.permute.xlu0 6
      %2905 = vperm.xlu0 %2904, %v2565
      %v2906 = vpop.permute.xlu0 %2905
      %2908 = vset.pattern.permute.xlu0 6
      %2909 = vperm.xlu0 %2908, %v2570
      %v2910 = vpop.permute.xlu0 %2909
      %2912 = vset.pattern.permute.xlu0 6
      %2913 = vperm.xlu0 %2912, %v2575
      %v2914 = vpop.permute.xlu0 %2913
      %2916 = vset.pattern.permute.xlu0 6
      %2917 = vperm.xlu0 %2916, %v2580
      %v2918 = vpop.permute.xlu0 %2917
      %2920 = vset.pattern.permute.xlu0 6
      %2921 = vperm.xlu0 %2920, %v2585
      %v2922 = vpop.permute.xlu0 %2921
      %2924 = vset.pattern.permute.xlu0 6
      %2925 = vperm.xlu0 %2924, %v2590
      %v2926 = vpop.permute.xlu0 %2925
      %v2928 = vmul.f32 %v2902, %v2893
      %v2929 = vmul.f32 %v2906, %v2894
      %v2930 = vmul.f32 %v2910, %v2895
      %v2931 = vmul.f32 %v2914, %v2896
      %v2932 = vmul.f32 %v2918, %v2897
      %v2933 = vmul.f32 %v2922, %v2898
      %v2934 = vmul.f32 %v2926, %v2899
      %v2935 = vadd.f32 %v2885, %v2928
      %v2936 = vadd.f32 %v2886, %v2929
      %v2937 = vadd.f32 %v2887, %v2930
      %v2938 = vadd.f32 %v2888, %v2931
      %v2939 = vadd.f32 %v2889, %v2932
      %v2940 = vadd.f32 %v2890, %v2933
      %v2941 = vadd.f32 %v2891, %v2934
      %s2942 = scalar_lea.vmem %s6, 392
      %v2943 = vld [vmem:[%s2942] sm:$0xff]
      %v2944 = vld [vmem:[%s2942 + $0x8] sm:$0xff]
      %v2945 = vld [vmem:[%s2942 + $0x10] sm:$0xff]
      %v2946 = vld [vmem:[%s2942 + $0x18] sm:$0xff]
      %v2947 = vld [vmem:[%s2942 + $0x20] sm:$0xff]
      %v2948 = vld [vmem:[%s2942 + $0x28] sm:$0xff]
      %v2949 = vld [vmem:[%s2942 + $0x30] sm:$0xff]
      %2950 = vset.pattern.permute.xlu0 7
      %2951 = vperm.xlu0 %2950, %v2560
      %v2952 = vpop.permute.xlu0 %2951
      %2954 = vset.pattern.permute.xlu0 7
      %2955 = vperm.xlu0 %2954, %v2565
      %v2956 = vpop.permute.xlu0 %2955
      %2958 = vset.pattern.permute.xlu0 7
      %2959 = vperm.xlu0 %2958, %v2570
      %v2960 = vpop.permute.xlu0 %2959
      %2962 = vset.pattern.permute.xlu0 7
      %2963 = vperm.xlu0 %2962, %v2575
      %v2964 = vpop.permute.xlu0 %2963
      %2966 = vset.pattern.permute.xlu0 7
      %2967 = vperm.xlu0 %2966, %v2580
      %v2968 = vpop.permute.xlu0 %2967
      %2970 = vset.pattern.permute.xlu0 7
      %2971 = vperm.xlu0 %2970, %v2585
      %v2972 = vpop.permute.xlu0 %2971
      %2974 = vset.pattern.permute.xlu0 7
      %2975 = vperm.xlu0 %2974, %v2590
      %v2976 = vpop.permute.xlu0 %2975
      %v2978 = vmul.f32 %v2952, %v2943
      %v2979 = vmul.f32 %v2956, %v2944
      %v2980 = vmul.f32 %v2960, %v2945
      %v2981 = vmul.f32 %v2964, %v2946
      %v2982 = vmul.f32 %v2968, %v2947
      %v2983 = vmul.f32 %v2972, %v2948
      %v2984 = vmul.f32 %v2976, %v2949
      %v2985 = vadd.f32 %v2935, %v2978
      %v2986 = vadd.f32 %v2936, %v2979
      %v2987 = vadd.f32 %v2937, %v2980
      %v2988 = vadd.f32 %v2938, %v2981
      %v2989 = vadd.f32 %v2939, %v2982
      %v2990 = vadd.f32 %v2940, %v2983
      %v2991 = vadd.f32 %v2941, %v2984
      %v2992 = vadd.f32 %v2985, %v2986
      %v2993 = vadd.f32 %v2992, %v2987
      %v2994 = vadd.f32 %v2993, %v2988
      %v2995 = vadd.f32 %v2994, %v2989
      %v2996 = vadd.f32 %v2995, %v2990
      %v2997 = vadd.f32 %v2996, %v2991
      %v2998 = vrot.slane %v2997, 4
      %v2999 = vadd.f32 %v2997, %v2998
      %v3000 = vrot.slane %v2999, 2
      %v3001 = vadd.f32 %v2999, %v3000
      %v3002 = vrot.slane %v3001, 1
      %v3003 = vadd.f32 %v3001, %v3002
      %v3004 = vld [vmem:[%s7] sm:$0x1]
      %v3005 = vadd.f32 %v3003, %v3004
      %v3006 = vmax.f32 %v3005, 0.0
      %v3007 = vlaneseq
      %v3008 = vshrl.u32 %v3007, 7
      %v3009 = vsub.s32 0, %v3008
      %v3010 = vrot.slane %v3006, %v3009
      %v3011 = vld [vmem:[%s8] sm:$0xff]
      %v3012 = vld [vmem:[%s8 + $0x8] sm:$0xff]
      %v3013 = vld [vmem:[%s8 + $0x10] sm:$0xff]
      %v3014 = vld [vmem:[%s8 + $0x18] sm:$0xff]
      %v3015 = vld [vmem:[%s8 + $0x20] sm:$0xff]
      %v3016 = vld [vmem:[%s8 + $0x28] sm:$0xff]
      %v3017 = vld [vmem:[%s8 + $0x30] sm:$0xff]
      %v3018 = vld [vmem:[%s8 + $0x38] sm:$0xff]
      %v3019 = vld [vmem:[%s8 + $0x40] sm:$0xff]
      %v3020 = vld [vmem:[%s8 + $0x48] sm:$0xff]
      %v3021 = vld [vmem:[%s8 + $0x50] sm:$0xff]
      %v3022 = vld [vmem:[%s8 + $0x58] sm:$0xff]
      %v3023 = vld [vmem:[%s8 + $0x60] sm:$0xff]
      %v3024 = vld [vmem:[%s8 + $0x68] sm:$0xff]
      %v3025 = vld [vmem:[%s8 + $0x70] sm:$0xff]
      %v3026 = vld [vmem:[%s8 + $0x78] sm:$0xff]
      %v3027 = vld [vmem:[%s9] sm:$0x1]
      %v3029 = vlaneseq
      %v3030 = vshrl.u32 %v3029, 7
      %v3031 = vsub.s32 0, %v3030
      %v3032 = vrot.slane %v3027, %v3031
      %3034 = vmatprep.subr.mxu0 0.0
      %3035 = vmatpush1.msra.mxu0 %v3026
      %3036 = vmatprep.subr.mxu0 0.0
      %3037 = vmatpush1.msra.mxu0 %v3025
      %3038 = vmatprep.subr.mxu0 0.0
      %3039 = vmatpush1.msra.mxu0 %v3024
      %3040 = vmatprep.subr.mxu0 0.0
      %3041 = vmatpush1.msra.mxu0 %v3023
      %3042 = vmatprep.subr.mxu0 0.0
      %3043 = vmatpush1.msra.mxu0 %v3022
      %3044 = vmatprep.subr.mxu0 0.0
      %3045 = vmatpush1.msra.mxu0 %v3021
      %3046 = vmatprep.subr.mxu0 0.0
      %3047 = vmatpush1.msra.mxu0 %v3020
      %3048 = vmatprep.subr.mxu0 0.0
      %3049 = vmatpush1.msra.mxu0 %v3019
      %3050 = vmatprep.subr.mxu0 0.0
      %3051 = vmatpush1.msra.mxu0 %v3018
      %3052 = vmatprep.subr.mxu0 0.0
      %3053 = vmatpush1.msra.mxu0 %v3017
      %3054 = vmatprep.subr.mxu0 0.0
      %3055 = vmatpush1.msra.mxu0 %v3016
      %3056 = vmatprep.subr.mxu0 0.0
      %3057 = vmatpush1.msra.mxu0 %v3015
      %3058 = vmatprep.subr.mxu0 0.0
      %3059 = vmatpush1.msra.mxu0 %v3014
      %3060 = vmatprep.subr.mxu0 0.0
      %3061 = vmatpush1.msra.mxu0 %v3013
      %3062 = vmatprep.subr.mxu0 0.0
      %3063 = vmatpush1.msra.mxu0 %v3012
      %3064 = vmatprep.subr.mxu0 0.0
      %3065 = vmatpush1.msra.mxu0 %v3011
      %3066 = vmatprep.subr.mxu0 0.0
      %3067 = vmatpush2.msra.mxu0 0.0
      %3068 = vmatprep.subr.mxu0 0.0
      %3069 = vmatpush2.msra.mxu0 0.0
      %3070 = vmatprep.subr.mxu0 0.0
      %3071 = vmatpush2.msra.mxu0 0.0
      %3072 = vmatprep.subr.mxu0 0.0
      %3073 = vmatpush2.msra.mxu0 0.0
      %3074 = vmatprep.subr.mxu0 0.0
      %3075 = vmatpush2.msra.mxu0 0.0
      %3076 = vmatprep.subr.mxu0 0.0
      %3077 = vmatpush2.msra.mxu0 0.0
      %3078 = vmatprep.subr.mxu0 0.0
      %3079 = vmatpush2.msra.mxu0 0.0
      %3080 = vmatprep.subr.mxu0 0.0
      %3081 = vmatpush2.msra.mxu0 0.0
      %3082 = vmatprep.subr.mxu0 0.0
      %3083 = vmatpush2.msra.mxu0 0.0
      %3084 = vmatprep.subr.mxu0 0.0
      %3085 = vmatpush2.msra.mxu0 0.0
      %3086 = vmatprep.subr.mxu0 0.0
      %3087 = vmatpush2.msra.mxu0 0.0
      %3088 = vmatprep.subr.mxu0 0.0
      %3089 = vmatpush2.msra.mxu0 0.0
      %3090 = vmatprep.subr.mxu0 0.0
      %3091 = vmatpush2.msra.mxu0 0.0
      %3092 = vmatprep.subr.mxu0 0.0
      %3093 = vmatpush2.msra.mxu0 0.0
      %3094 = vmatprep.subr.mxu0 0.0
      %3095 = vmatpush2.msra.mxu0 0.0
      %3096 = vmatprep.subr.mxu0 0.0
      %3097 = vmatpush2.msra.mxu0 0.0
      %3098 = vmatprep.mubr.f32.mxu0 0.0
      %3099 = vmatmul.mubr.f32.gmra.mxu0 %v3010
      %v3100 = vpop.f32.mrf.mxu0
      %v3101 = vadd.f32 %v3032, %v3100
      %v3102 = vpop.f32.mrf.mxu0
      %3103 = vdwg.mxu0
      %v3104 = vmax.f32 %v3101, 0.0
      %v3105 = vld [vmem:[%s10] sm:$0xff]
      %v3106 = vld [vmem:[%s10 + $0x8] sm:$0xff]
      %v3107 = vld [vmem:[%s10 + $0x10] sm:$0xff]
      %v3108 = vld [vmem:[%s10 + $0x18] sm:$0xff]
      %v3109 = vld [vmem:[%s10 + $0x20] sm:$0xff]
      %v3110 = vld [vmem:[%s10 + $0x28] sm:$0xff]
      %v3111 = vld [vmem:[%s10 + $0x30] sm:$0xff]
      %v3112 = vld [vmem:[%s10 + $0x38] sm:$0xff]
      %v3113 = vld [vmem:[%s10 + $0x40] sm:$0xff]
      %v3114 = vld [vmem:[%s10 + $0x48] sm:$0xff]
      %v3115 = vld [vmem:[%s10 + $0x50] sm:$0xff]
      %v3116 = vld [vmem:[%s10 + $0x58] sm:$0xff]
      %v3117 = vld [vmem:[%s10 + $0x60] sm:$0xff]
      %v3118 = vld [vmem:[%s10 + $0x68] sm:$0xff]
      %v3119 = vld [vmem:[%s10 + $0x70] sm:$0xff]
      %v3120 = vld [vmem:[%s10 + $0x78] sm:$0xff]
      %v3121 = vld [vmem:[%s11] sm:$0x1]
      %v3123 = vlaneseq
      %v3124 = vshrl.u32 %v3123, 7
      %v3125 = vsub.s32 0, %v3124
      %v3126 = vrot.slane %v3121, %v3125
      %3128 = vmatprep.subr.mxu0 0.0
      %3129 = vmatpush1.msra.mxu0 %v3120
      %3130 = vmatprep.subr.mxu0 0.0
      %3131 = vmatpush1.msra.mxu0 %v3119
      %3132 = vmatprep.subr.mxu0 0.0
      %3133 = vmatpush1.msra.mxu0 %v3118
      %3134 = vmatprep.subr.mxu0 0.0
      %3135 = vmatpush1.msra.mxu0 %v3117
      %3136 = vmatprep.subr.mxu0 0.0
      %3137 = vmatpush1.msra.mxu0 %v3116
      %3138 = vmatprep.subr.mxu0 0.0
      %3139 = vmatpush1.msra.mxu0 %v3115
      %3140 = vmatprep.subr.mxu0 0.0
      %3141 = vmatpush1.msra.mxu0 %v3114
      %3142 = vmatprep.subr.mxu0 0.0
      %3143 = vmatpush1.msra.mxu0 %v3113
      %3144 = vmatprep.subr.mxu0 0.0
      %3145 = vmatpush1.msra.mxu0 %v3112
      %3146 = vmatprep.subr.mxu0 0.0
      %3147 = vmatpush1.msra.mxu0 %v3111
      %3148 = vmatprep.subr.mxu0 0.0
      %3149 = vmatpush1.msra.mxu0 %v3110
      %3150 = vmatprep.subr.mxu0 0.0
      %3151 = vmatpush1.msra.mxu0 %v3109
      %3152 = vmatprep.subr.mxu0 0.0
      %3153 = vmatpush1.msra.mxu0 %v3108
      %3154 = vmatprep.subr.mxu0 0.0
      %3155 = vmatpush1.msra.mxu0 %v3107
      %3156 = vmatprep.subr.mxu0 0.0
      %3157 = vmatpush1.msra.mxu0 %v3106
      %3158 = vmatprep.subr.mxu0 0.0
      %3159 = vmatpush1.msra.mxu0 %v3105
      %3160 = vmatprep.subr.mxu0 0.0
      %3161 = vmatpush2.msra.mxu0 0.0
      %3162 = vmatprep.subr.mxu0 0.0
      %3163 = vmatpush2.msra.mxu0 0.0
      %3164 = vmatprep.subr.mxu0 0.0
      %3165 = vmatpush2.msra.mxu0 0.0
      %3166 = vmatprep.subr.mxu0 0.0
      %3167 = vmatpush2.msra.mxu0 0.0
      %3168 = vmatprep.subr.mxu0 0.0
      %3169 = vmatpush2.msra.mxu0 0.0
      %3170 = vmatprep.subr.mxu0 0.0
      %3171 = vmatpush2.msra.mxu0 0.0
      %3172 = vmatprep.subr.mxu0 0.0
      %3173 = vmatpush2.msra.mxu0 0.0
      %3174 = vmatprep.subr.mxu0 0.0
      %3175 = vmatpush2.msra.mxu0 0.0
      %3176 = vmatprep.subr.mxu0 0.0
      %3177 = vmatpush2.msra.mxu0 0.0
      %3178 = vmatprep.subr.mxu0 0.0
      %3179 = vmatpush2.msra.mxu0 0.0
      %3180 = vmatprep.subr.mxu0 0.0
      %3181 = vmatpush2.msra.mxu0 0.0
      %3182 = vmatprep.subr.mxu0 0.0
      %3183 = vmatpush2.msra.mxu0 0.0
      %3184 = vmatprep.subr.mxu0 0.0
      %3185 = vmatpush2.msra.mxu0 0.0
      %3186 = vmatprep.subr.mxu0 0.0
      %3187 = vmatpush2.msra.mxu0 0.0
      %3188 = vmatprep.subr.mxu0 0.0
      %3189 = vmatpush2.msra.mxu0 0.0
      %3190 = vmatprep.subr.mxu0 0.0
      %3191 = vmatpush2.msra.mxu0 0.0
      %3192 = vmatprep.mubr.f32.mxu0 0.0
      %3193 = vmatmul.mubr.f32.gmra.mxu0 %v3104
      %v3194 = vpop.f32.mrf.mxu0
      %v3195 = vadd.f32 %v3126, %v3194
      %v3196 = vpop.f32.mrf.mxu0
      %3197 = vdwg.mxu0
      %3198 = vst [vmem:[%s411] sm:$0xff] %v3195
      %p3199 = scmp.lt.s32.totalorder %s23, 1
      %s3200 = scalar_select %p3199, %s23, 1
      %s3201 = smul.addr %s3200, 8
      %s3202 = scalar_lea.vmem %s12, %s3201
      // Predicated region
      $region69: #{_lambda_.1} parent=67 // pred_check
        %p3203 = pneg %p298
      $region70: #{_lambda_.1} parent=67 // pred_check_branch
        %3205 = sbr.rel (%p3203) target = $region72
      $region71: #{_lambda_.1} parent=67 // pred_region
        _
      $region72: #{_lambda_.1} parent=67 // pred_fallthru
        _
    $region68: #{_lambda_.1} parent=5 // pred_fallthru
      _
    %p3206 = scmp.le.s32.totalorder 2, %s18
    // Predicated region
    $region73: #{_lambda_.1} parent=5 // pred_check
      %p3207 = pneg %p3206
    $region74: #{_lambda_.1} parent=5 // pred_check_branch
      %3209 = sbr.rel (%p3207) target = $region76
    $region75: #{_lambda_.1} parent=5 // pred_region
      %s3210 = ssub.s32 %s18, 2
      // Predicated region
      $region77: #{_lambda_.1} parent=75 // pred_check
        %p3211 = pneg %p304
      $region78: #{_lambda_.1} parent=75 // pred_check_branch
        %3213 = sbr.rel (%p3211) target = $region80
      $region79: #{_lambda_.1} parent=75 // pred_region
        %p3214 = scmp.lt.s32.totalorder %s24, 1
        %s3215 = scalar_select %p3214, %s24, 1
        %s3216 = smul.addr %s3215, 8
        %s3217 = scalar_lea.vmem %s12, %s3216
      $region80: #{_lambda_.1} parent=75 // pred_fallthru
        _
    $region76: #{_lambda_.1} parent=5 // pred_fallthru
      _
  $region6: #{_lambda_.1} parent=0 // loop_footer
    %s22 = sadd.s32 1, %s18
  $region7: #{_lambda_.1} parent=0 // loop_footer_branch
    %17 = sbr.rel target = $region3
  $region8: #{_lambda_.1} parent=0 // loop_exit
    _

</llo_original>
